<compile_context>
chip_gen: v7x
topology: tpu7x:2x2x1
jax: 0.10.0
libtpu: 0.0.40
codegen_flags: <defaults>
</compile_context>

<pallas_src>
import jax
import jax.numpy as jnp
from jax.experimental import pallas as pl
from jax.experimental.pallas import tpu as pltpu


def _round_up(x, m):
    return (x + m - 1) // m * m


def mean_pool_kernel(h_ref, m_ref, out_ref, acc_ref, cnt_ref):
    # h_ref:   (TB, TS, H)   hidden-state tile (native dtype)
    # m_ref:   (TB, 1, TS)   mask tile (pre-shaped for a batched matmul lhs)
    # out_ref: (TB, 1, H)    output tile (float32), written on last seq step
    # acc_ref: (TB, 1, H)    f32 running masked sum      (VMEM scratch)
    # cnt_ref: (TB, 1, 1)    f32 running mask count      (VMEM scratch)
    s = pl.program_id(1)

    @pl.when(s == 0)
    def _init():
        acc_ref[...] = jnp.zeros_like(acc_ref)
        cnt_ref[...] = jnp.zeros_like(cnt_ref)

    m = m_ref[...].astype(jnp.float32)          # (TB, 1, TS)
    h = h_ref[...]                              # (TB, TS, H), native dtype

    # Masked sum over this sequence tile as a batched (1,TS)x(TS,H) MXU matmul,
    # accumulated in float32.
    acc_ref[...] += jnp.einsum(
        "bqs,bsh->bqh", m, h,
        preferred_element_type=jnp.float32,
        precision=jax.lax.Precision.HIGHEST,
    )
    cnt_ref[...] += jnp.sum(m, axis=2, keepdims=True)   # (TB, 1, 1)

    @pl.when(s == pl.num_programs(1) - 1)
    def _finish():
        denom = jnp.maximum(cnt_ref[...], jnp.float32(1e-9))  # torch.clamp(min=1e-9)
        # Runs once per batch tile -> divide cost is negligible (off the
        # streaming critical path), and it keeps exact PyTorch numerics.
        out_ref[...] = (acc_ref[...] / denom).astype(out_ref.dtype)


def mean_pooling(last_hidden_state, attention_mask, *, tb=8, ts_max=512):
    """Masked mean pooling: [B, S, H], [B, S] -> [B, H] (float32)."""
    B, S, H = last_hidden_state.shape
    assert attention_mask.shape == (B, S)

    # Batch padded to a multiple of TB (sublane-dense tiles); sequence padded so
    # it tiles evenly into TS-wide chunks (TS a multiple of 128 when tiled, or
    # the full padded length when S is small). Padded positions carry mask=0,
    # so they contribute nothing; padded batch rows are sliced off at the end.
    Bp = _round_up(B, tb)
    if S <= ts_max:
        TS = _round_up(S, 8)
        Sp = TS
    else:
        TS = ts_max
        Sp = _round_up(S, TS)

    h = last_hidden_state
    m = attention_mask
    if (Bp, Sp) != (B, S):
        h = jnp.pad(h, ((0, Bp - B), (0, Sp - S), (0, 0)))
        m = jnp.pad(m, ((0, Bp - B), (0, Sp - S)))
    m3 = m[:, None, :]  # (Bp, 1, Sp): ready-made batched-matmul lhs layout

    grid = (Bp // tb, Sp // TS)

    cost = pl.CostEstimate(
        flops=2 * Bp * Sp * H,
        transcendentals=0,
        bytes_accessed=(Bp * Sp * H * last_hidden_state.dtype.itemsize
                        + Bp * Sp * attention_mask.dtype.itemsize
                        + Bp * H * 4),
    )

    out = pl.pallas_call(
        mean_pool_kernel,
        out_shape=jax.ShapeDtypeStruct((Bp, 1, H), jnp.float32),
        grid_spec=pltpu.PrefetchScalarGridSpec(
            num_scalar_prefetch=0,
            grid=grid,
            in_specs=[
                pl.BlockSpec((tb, TS, H), lambda b, s: (b, s, 0)),
                pl.BlockSpec((tb, 1, TS), lambda b, s: (b, 0, s)),
            ],
            out_specs=pl.BlockSpec((tb, 1, H), lambda b, s: (b, 0, 0)),
            scratch_shapes=[
                pltpu.VMEM((tb, 1, H), jnp.float32),   # masked-sum accumulator
                pltpu.VMEM((tb, 1, 1), jnp.float32),   # mask-count accumulator
            ],
        ),
        compiler_params=pltpu.CompilerParams(
            dimension_semantics=("parallel", "arbitrary"),
        ),
        cost_estimate=cost,
    )(h, m3)

    return out[:B, 0, :]


def mean_pooling_ref(last_hidden_state, attention_mask):
    # Pure-JAX reference mirroring the PyTorch forward exactly.
    m = attention_mask[..., None].astype(jnp.float32)
    sum_emb = jnp.sum(last_hidden_state.astype(jnp.float32) * m, axis=1)
    sum_mask = jnp.maximum(jnp.sum(m, axis=1), jnp.float32(1e-9))
    return sum_emb / sum_mask


if __name__ == "__main__":
    key = jax.random.PRNGKey(0)
    k1, k2, k3, k4 = jax.random.split(key, 4)

    # Small shapes consistent with the module: [B, S, H] hidden, [B, S] mask.
    B, S, H = 2, 8, 32
    last_hidden_state = jax.random.normal(k1, (B, S, H), dtype=jnp.float32)
    attention_mask = (jax.random.uniform(k2, (B, S)) > 0.3).astype(jnp.float32)

    out = jax.block_until_ready(mean_pooling(last_hidden_state, attention_mask))
    ref = mean_pooling_ref(last_hidden_state, attention_mask)
    assert out.shape == (B, H)
    assert jnp.allclose(out, ref, atol=1e-5, rtol=1e-5), "mismatch vs reference"

    # Second check: exercises batch padding and multi-step sequence accumulation.
    B2, S2, H2 = 3, 300, 64
    h2 = jax.random.normal(k3, (B2, S2, H2), dtype=jnp.float32)
    m2 = (jax.random.uniform(k4, (B2, S2)) > 0.5).astype(jnp.float32)
    out2 = jax.block_until_ready(mean_pooling(h2, m2, ts_max=128))
    ref2 = mean_pooling_ref(h2, m2)
    assert out2.shape == (B2, H2)
    assert jnp.allclose(out2, ref2, atol=1e-5, rtol=1e-5), "mismatch vs reference (tiled)"

    print("KERNEL_OK")
</pallas_src>

<mosaic_0001>
module attributes {stable_mosaic.version = 11 : i64} {
  func.func @mean_pool_kernel(%arg0: i32, %arg1: i32, %arg2: memref<8x8x32xf32, #tpu.memory_space<vmem>>, %arg3: memref<8x1x8xf32, #tpu.memory_space<vmem>>, %arg4: memref<8x1x32xf32, #tpu.memory_space<vmem>>, %arg5: memref<8x1x32xf32, #tpu.memory_space<vmem>>, %arg6: memref<8x1x1xf32, #tpu.memory_space<vmem>>) attributes {dimension_semantics = [#tpu.dimension_semantics<parallel>, #tpu.dimension_semantics<arbitrary>], iteration_bounds = array<i64: 1, 1>, scalar_prefetch = 0 : i64, scratch_operands = 2 : i64, tpu.core_type = #tpu.core_type<tc>, window_params = [{transform_indices = @transform_0, window_bounds = array<i64: 8, 8, 32>}, {transform_indices = @transform_1, window_bounds = array<i64: 8, 1, 8>}, {transform_indices = @transform_2, window_bounds = array<i64: 8, 1, 32>}]} {
    %c0_i32 = arith.constant 0 : i32
    %0 = arith.cmpi eq, %arg1, %c0_i32 : i32
    %1 = arith.extui %0 : i1 to i32
    %c0_i32_0 = arith.constant 0 : i32
    %2 = arith.cmpi ne, %1, %c0_i32_0 : i32
    scf.if %2 {
      %cst_21 = arith.constant 0.000000e+00 : f32
      %17 = vector.broadcast %cst_21 : f32 to vector<8x1x32xf32>
      %c0_22 = arith.constant 0 : index
      %c0_23 = arith.constant 0 : index
      %c0_24 = arith.constant 0 : index
      %18 = vector.load %arg5[%c0_22, %c0_23, %c0_24] : memref<8x1x32xf32, #tpu.memory_space<vmem>>, vector<8x1x32xf32>
      tpu.vector_store %arg5[%c0_22, %c0_23, %c0_24], %17 {strides = array<i32>} : memref<8x1x32xf32, #tpu.memory_space<vmem>>, vector<8x1x32xf32>,
      %cst_25 = arith.constant 0.000000e+00 : f32
      %19 = vector.broadcast %cst_25 : f32 to vector<8x1x1xf32>
      %c0_26 = arith.constant 0 : index
      %c0_27 = arith.constant 0 : index
      %c0_28 = arith.constant 0 : index
      %20 = vector.load %arg6[%c0_26, %c0_27, %c0_28] : memref<8x1x1xf32, #tpu.memory_space<vmem>>, vector<8x1x1xf32>
      tpu.vector_store %arg6[%c0_26, %c0_27, %c0_28], %19 {strides = array<i32>} : memref<8x1x1xf32, #tpu.memory_space<vmem>>, vector<8x1x1xf32>,
    } else {
    }
    %c0 = arith.constant 0 : index
    %c0_1 = arith.constant 0 : index
    %c0_2 = arith.constant 0 : index
    %3 = vector.load %arg3[%c0, %c0_1, %c0_2] : memref<8x1x8xf32, #tpu.memory_space<vmem>>, vector<8x1x8xf32>
    %c0_3 = arith.constant 0 : index
    %c0_4 = arith.constant 0 : index
    %c0_5 = arith.constant 0 : index
    %4 = vector.load %arg2[%c0_3, %c0_4, %c0_5] : memref<8x8x32xf32, #tpu.memory_space<vmem>>, vector<8x8x32xf32>
    %c0_6 = arith.constant 0 : index
    %c0_7 = arith.constant 0 : index
    %c0_8 = arith.constant 0 : index
    %5 = vector.load %arg5[%c0_6, %c0_7, %c0_8] : memref<8x1x32xf32, #tpu.memory_space<vmem>>, vector<8x1x32xf32>
    "tpu.trace_start"() <{level = 10 : i32, message = "bqs,bsh->bqh"}> : () -> ()
    %cst = arith.constant dense<0.000000e+00> : vector<8x1x32xf32>
    %6 = tpu.matmul %3, %4, %cst {dimension_numbers = #tpu.dot_dimension_numbers<[2], [1], [1], [2], [0, 0, 0, 1, 1, 2], [0], [0]>, precision = #tpu.contract_precision<fp32>} : vector<8x1x8xf32>, vector<8x8x32xf32>, vector<8x1x32xf32> -> vector<8x1x32xf32>
    "tpu.trace_stop"() : () -> ()
    %7 = arith.addf %5, %6 : vector<8x1x32xf32>
    %c0_9 = arith.constant 0 : index
    %c0_10 = arith.constant 0 : index
    %c0_11 = arith.constant 0 : index
    %8 = vector.load %arg5[%c0_9, %c0_10, %c0_11] : memref<8x1x32xf32, #tpu.memory_space<vmem>>, vector<8x1x32xf32>
    tpu.vector_store %arg5[%c0_9, %c0_10, %c0_11], %7 {strides = array<i32>} : memref<8x1x32xf32, #tpu.memory_space<vmem>>, vector<8x1x32xf32>,
    %c0_12 = arith.constant 0 : index
    %c0_13 = arith.constant 0 : index
    %c0_14 = arith.constant 0 : index
    %9 = vector.load %arg6[%c0_12, %c0_13, %c0_14] : memref<8x1x1xf32, #tpu.memory_space<vmem>>, vector<8x1x1xf32>
    %cst_15 = arith.constant dense<0.000000e+00> : vector<8x1xf32>
    %10 = vector.multi_reduction <add>, %3, %cst_15 [2] : vector<8x1x8xf32> to vector<8x1xf32>
    %11 = vector.shape_cast %10 : vector<8x1xf32> to vector<8x1x1xf32>
    %12 = arith.addf %9, %11 : vector<8x1x1xf32>
    %c0_16 = arith.constant 0 : index
    %c0_17 = arith.constant 0 : index
    %c0_18 = arith.constant 0 : index
    %13 = vector.load %arg6[%c0_16, %c0_17, %c0_18] : memref<8x1x1xf32, #tpu.memory_space<vmem>>, vector<8x1x1xf32>
    tpu.vector_store %arg6[%c0_16, %c0_17, %c0_18], %12 {strides = array<i32>} : memref<8x1x1xf32, #tpu.memory_space<vmem>>, vector<8x1x1xf32>,
    %c0_i32_19 = arith.constant 0 : i32
    %14 = arith.cmpi eq, %arg1, %c0_i32_19 : i32
    %15 = arith.extui %14 : i1 to i32
    %c0_i32_20 = arith.constant 0 : i32
    %16 = arith.cmpi ne, %15, %c0_i32_20 : i32
    scf.if %16 {
      %c0_21 = arith.constant 0 : index
      %c0_22 = arith.constant 0 : index
      %c0_23 = arith.constant 0 : index
      %17 = vector.load %arg6[%c0_21, %c0_22, %c0_23] : memref<8x1x1xf32, #tpu.memory_space<vmem>>, vector<8x1x1xf32>
      %cst_24 = arith.constant 9.99999971E-10 : f32
      %18 = vector.broadcast %cst_24 : f32 to vector<8x1x1xf32>
      %19 = arith.maximumf %17, %18 : vector<8x1x1xf32>
      %c0_25 = arith.constant 0 : index
      %c0_26 = arith.constant 0 : index
      %c0_27 = arith.constant 0 : index
      %20 = vector.load %arg5[%c0_25, %c0_26, %c0_27] : memref<8x1x32xf32, #tpu.memory_space<vmem>>, vector<8x1x32xf32>
      %21 = vector.broadcast %19 : vector<8x1x1xf32> to vector<8x1x32xf32>
      %22 = arith.divf %20, %21 : vector<8x1x32xf32>
      %c0_28 = arith.constant 0 : index
      %c0_29 = arith.constant 0 : index
      %c0_30 = arith.constant 0 : index
      %23 = vector.load %arg4[%c0_28, %c0_29, %c0_30] : memref<8x1x32xf32, #tpu.memory_space<vmem>>, vector<8x1x32xf32>
      tpu.vector_store %arg4[%c0_28, %c0_29, %c0_30], %22 {strides = array<i32>} : memref<8x1x32xf32, #tpu.memory_space<vmem>>, vector<8x1x32xf32>,
    } else {
    }
    return
  }
  func.func @transform_0(%arg0: i32, %arg1: i32) -> (i32, i32, i32) {
    %c0_i32 = arith.constant 0 : i32
    %c0_i32_0 = arith.constant 0 : i32
    return %arg0, %arg1, %c0_i32 : i32, i32, i32
  }
  func.func @transform_1(%arg0: i32, %arg1: i32) -> (i32, i32, i32) {
    %c0_i32 = arith.constant 0 : i32
    %c0_i32_0 = arith.constant 0 : i32
    return %arg0, %c0_i32, %arg1 : i32, i32, i32
  }
  func.func @transform_2(%arg0: i32, %arg1: i32) -> (i32, i32, i32) {
    %c0_i32 = arith.constant 0 : i32
    %c0_i32_0 = arith.constant 0 : i32
    %c0_i32_1 = arith.constant 0 : i32
    return %arg0, %c0_i32, %c0_i32_0 : i32, i32, i32
  }
}

</mosaic_0001>

<llo_original>
// kernel: tpu_custom_call.1
$region0: #{tpu_custom_call.1}
  #allocation0 [shape = 'u32[]', space=smem, size = 0x4, offset = 0x4, fixed_abs, tag = 'smem constant byte address 0x4 - core index']
  #allocation1 [shape = 'u32[144,128]{1,0:T(1,128)}', space=vmem, size = 0x12000, scoped, tag = 'internal scratch']
  #allocation2 [shape = 'f32[8,1,32]{2,1,0:T(1,128)}', space=vmem, size = 0x1000, scoped, tag = 'scratch operand']
  #allocation3 [shape = 'f32[8,1,1]{2,1,0:T(1,128)}', space=vmem, size = 0x1000, scoped, tag = 'scratch operand']
  %s0 = inlined_call_operand.hbm [shape: f32[8,8,32], index: 0, kind: input, shape index: {}]
  %s1 = inlined_call_operand.hbm [shape: f32[8,1,8], index: 1, kind: input, shape index: {}]
  %s2 = inlined_call_operand.hbm [shape: f32[8,1,32], index: 2, kind: output, shape index: {}]
  %s3 = sld [smem:[#allocation0]]
  $region34: #{tpu_custom_call.1} parent=0
    _
  %s5 = ssub.s32 1, %s3
  %s6 = scalar_select 0, %s5, %s3
  $region1: #{tpu_custom_call.1} parent=0
    #allocation4 [shape = 'u8[32768]{0}', space=vmem, size = 0x8000, scoped, tag = 'input window, operand 0, single buffered']
    #allocation5 [shape = 's32[1]{0}', space=sflag, size = 0x4, scoped, tag = 'scoped memory for tpu_custom_call.1']
    #allocation6 [shape = 's32[1]{0}', space=sflag, size = 0x4, scoped, tag = 'scoped memory for tpu_custom_call.1']
    #allocation7 [shape = 'u8[4096]{0}', space=vmem, size = 0x1000, scoped, tag = 'input window, operand 1, single buffered']
    #allocation8 [shape = 's32[1]{0}', space=sflag, size = 0x4, scoped, tag = 'scoped memory for tpu_custom_call.1']
    #allocation9 [shape = 'u8[4096]{0}', space=vmem, size = 0x1000, scoped, tag = 'output window, operand 0, single buffered']
    %7 = vsyncpa [#allocation5], 0
    %8 = vsyncpa [#allocation8], 0
    %9 = vsyncpa [#allocation6], 0
    // Predicated region
    $region2: #{tpu_custom_call.1} parent=1 // pred_check
      _
    $region3: #{tpu_custom_call.1} parent=1 // pred_check_branch
      %11 = sbr.rel (0) target = $region5
    $region4: #{tpu_custom_call.1} parent=1 // pred_region
      %s13 = ssub.s32 1024, 1024
      %14 = vsyncadd [#allocation5], %s13
      %s15 = sshll.u32 [#allocation4], 4
      %s16 = int_to_ptr.vmem [resolvable:$true] %s15
      %21 = dma.hbm_to_vmem [thread:$0]  %s0, 1024, %s16, [#allocation5], 128, 128, 8
    $region5: #{tpu_custom_call.1} parent=1 // pred_fallthru
      _
    // Predicated region
    $region6: #{tpu_custom_call.1} parent=1 // pred_check
      _
    $region7: #{tpu_custom_call.1} parent=1 // pred_check_branch
      %23 = sbr.rel (0) target = $region9
    $region8: #{tpu_custom_call.1} parent=1 // pred_region
      %s25 = ssub.s32 128, 128
      %26 = vsyncadd [#allocation8], %s25
      %s27 = sshll.u32 [#allocation7], 4
      %s28 = int_to_ptr.vmem [resolvable:$true] %s27
      %33 = dma.hbm_to_vmem [thread:$0]  %s1, 128, %s28, [#allocation8], 16, 16, 1
    $region9: #{tpu_custom_call.1} parent=1 // pred_fallthru
      _
    // Predicated region
    $region10: #{tpu_custom_call.1} parent=1 // pred_check
      _
    $region11: #{tpu_custom_call.1} parent=1 // pred_check_branch
      %35 = sbr.rel (0) target = $region13
    $region12: #{tpu_custom_call.1} parent=1 // pred_region
      %36 = dma.done [#allocation5], 1024
    $region13: #{tpu_custom_call.1} parent=1 // pred_fallthru
      _
    // Predicated region
    $region14: #{tpu_custom_call.1} parent=1 // pred_check
      _
    $region15: #{tpu_custom_call.1} parent=1 // pred_check_branch
      %38 = sbr.rel (0) target = $region17
    $region16: #{tpu_custom_call.1} parent=1 // pred_region
      %39 = dma.done [#allocation8], 128
    $region17: #{tpu_custom_call.1} parent=1 // pred_fallthru
      _
    %p40 = scmp.eq.s32.totalorder 0, 0
    // Predicated region
    $region18: #{tpu_custom_call.1} parent=1 // pred_check
      %p41 = pneg %p40
    $region19: #{tpu_custom_call.1} parent=1 // pred_check_branch
      %43 = sbr.rel (%p41) target = $region21
    $region20: #{tpu_custom_call.1} parent=1 // pred_region
      %vm44 = vcmask 253952
      %45 = vst.msk [vmem:[#allocation2] sm:$0x1] %vm44, 0.0
      %46 = vst.msk [vmem:[#allocation2 + $0x1] sm:$0x1] %vm44, 0.0
      %47 = vst.msk [vmem:[#allocation2 + $0x2] sm:$0x1] %vm44, 0.0
      %48 = vst.msk [vmem:[#allocation2 + $0x3] sm:$0x1] %vm44, 0.0
      %49 = vst.msk [vmem:[#allocation2 + $0x4] sm:$0x1] %vm44, 0.0
      %50 = vst.msk [vmem:[#allocation2 + $0x5] sm:$0x1] %vm44, 0.0
      %51 = vst.msk [vmem:[#allocation2 + $0x6] sm:$0x1] %vm44, 0.0
      %52 = vst.msk [vmem:[#allocation2 + $0x7] sm:$0x1] %vm44, 0.0
      %vm53 = vcmask 0
      %54 = vst.msk [vmem:[#allocation3] sm:$0x1] %vm53, 0.0
      %55 = vst.msk [vmem:[#allocation3 + $0x1] sm:$0x1] %vm53, 0.0
      %56 = vst.msk [vmem:[#allocation3 + $0x2] sm:$0x1] %vm53, 0.0
      %57 = vst.msk [vmem:[#allocation3 + $0x3] sm:$0x1] %vm53, 0.0
      %58 = vst.msk [vmem:[#allocation3 + $0x4] sm:$0x1] %vm53, 0.0
      %59 = vst.msk [vmem:[#allocation3 + $0x5] sm:$0x1] %vm53, 0.0
      %60 = vst.msk [vmem:[#allocation3 + $0x6] sm:$0x1] %vm53, 0.0
      %61 = vst.msk [vmem:[#allocation3 + $0x7] sm:$0x1] %vm53, 0.0
    $region21: #{tpu_custom_call.1} parent=1 // pred_fallthru
      _
    %v62 = vld [vmem:[#allocation7] sm:$0x1]
    %v63 = vld [vmem:[#allocation7 + $0x1] sm:$0x1]
    %v64 = vld [vmem:[#allocation7 + $0x2] sm:$0x1]
    %v65 = vld [vmem:[#allocation7 + $0x3] sm:$0x1]
    %v66 = vld [vmem:[#allocation7 + $0x4] sm:$0x1]
    %v67 = vld [vmem:[#allocation7 + $0x5] sm:$0x1]
    %v68 = vld [vmem:[#allocation7 + $0x6] sm:$0x1]
    %v69 = vld [vmem:[#allocation7 + $0x7] sm:$0x1]
    %v70 = vld [vmem:[#allocation4] sm:$0xff]
    %v71 = vld [vmem:[#allocation4 + $0x8] sm:$0xff]
    %v72 = vld [vmem:[#allocation4 + $0x10] sm:$0xff]
    %v73 = vld [vmem:[#allocation4 + $0x18] sm:$0xff]
    %v74 = vld [vmem:[#allocation4 + $0x20] sm:$0xff]
    %v75 = vld [vmem:[#allocation4 + $0x28] sm:$0xff]
    %v76 = vld [vmem:[#allocation4 + $0x30] sm:$0xff]
    %v77 = vld [vmem:[#allocation4 + $0x38] sm:$0xff]
    %v78 = vld [vmem:[#allocation2] sm:$0x1]
    %v79 = vld [vmem:[#allocation2 + $0x1] sm:$0x1]
    %v80 = vld [vmem:[#allocation2 + $0x2] sm:$0x1]
    %v81 = vld [vmem:[#allocation2 + $0x3] sm:$0x1]
    %v82 = vld [vmem:[#allocation2 + $0x4] sm:$0x1]
    %v83 = vld [vmem:[#allocation2 + $0x5] sm:$0x1]
    %v84 = vld [vmem:[#allocation2 + $0x6] sm:$0x1]
    %v85 = vld [vmem:[#allocation2 + $0x7] sm:$0x1]
    %vm86 = vcmask 64512
    %v88 = vsel %vm86, %v62, 0
    %90 = vmatprep.subr.mxu0 0.0
    %v91 = vand.u32 %v70, 4294901760
    %92 = vmatpush1.msra.mxu0 %v91
    %93 = vmatprep.subr.mxu0 0.0
    %94 = vmatpush1.msra.mxu0 0.0
    %95 = vmatprep.subr.mxu0 0.0
    %96 = vmatpush1.msra.mxu0 0.0
    %97 = vmatprep.subr.mxu0 0.0
    %98 = vmatpush1.msra.mxu0 0.0
    %99 = vmatprep.subr.mxu0 0.0
    %100 = vmatpush1.msra.mxu0 0.0
    %101 = vmatprep.subr.mxu0 0.0
    %102 = vmatpush1.msra.mxu0 0.0
    %103 = vmatprep.subr.mxu0 0.0
    %104 = vmatpush1.msra.mxu0 0.0
    %105 = vmatprep.subr.mxu0 0.0
    %106 = vmatpush1.msra.mxu0 0.0
    %107 = vmatprep.subr.mxu0 0.0
    %108 = vmatpush1.msra.mxu0 0.0
    %109 = vmatprep.subr.mxu0 0.0
    %110 = vmatpush1.msra.mxu0 0.0
    %111 = vmatprep.subr.mxu0 0.0
    %112 = vmatpush1.msra.mxu0 0.0
    %113 = vmatprep.subr.mxu0 0.0
    %114 = vmatpush1.msra.mxu0 0.0
    %115 = vmatprep.subr.mxu0 0.0
    %116 = vmatpush1.msra.mxu0 0.0
    %117 = vmatprep.subr.mxu0 0.0
    %118 = vmatpush1.msra.mxu0 0.0
    %119 = vmatprep.subr.mxu0 0.0
    %120 = vmatpush1.msra.mxu0 0.0
    %121 = vmatprep.subr.mxu0 0.0
    %122 = vmatpush1.msra.mxu0 0.0
    %123 = vmatprep.subr.mxu0 0.0
    %124 = vmatpush1.msra.mxu0 0.0
    %125 = vmatprep.subr.mxu0 0.0
    %126 = vmatpush1.msra.mxu0 0.0
    %127 = vmatprep.subr.mxu0 0.0
    %128 = vmatpush1.msra.mxu0 0.0
    %129 = vmatprep.subr.mxu0 0.0
    %130 = vmatpush1.msra.mxu0 0.0
    %131 = vmatprep.subr.mxu0 0.0
    %132 = vmatpush1.msra.mxu0 0.0
    %133 = vmatprep.subr.mxu0 0.0
    %134 = vmatpush1.msra.mxu0 0.0
    %135 = vmatprep.subr.mxu0 0.0
    %136 = vmatpush1.msra.mxu0 0.0
    %137 = vmatprep.subr.mxu0 0.0
    %138 = vmatpush1.msra.mxu0 0.0
    %139 = vmatprep.subr.mxu0 0.0
    %140 = vmatpush1.msra.mxu0 0.0
    %141 = vmatprep.subr.mxu0 0.0
    %142 = vmatpush1.msra.mxu0 0.0
    %143 = vmatprep.subr.mxu0 0.0
    %144 = vmatpush1.msra.mxu0 0.0
    %145 = vmatprep.subr.mxu0 0.0
    %146 = vmatpush1.msra.mxu0 0.0
    %147 = vmatprep.subr.mxu0 0.0
    %148 = vmatpush1.msra.mxu0 0.0
    %149 = vmatprep.subr.mxu0 0.0
    %150 = vmatpush1.msra.mxu0 0.0
    %151 = vmatprep.subr.mxu0 0.0
    %152 = vmatpush1.msra.mxu0 0.0
    %153 = vmatprep.subr.mxu0 0.0
    %154 = vmatpush1.msra.mxu0 0.0
    %155 = vmatprep.mubr.f32.mxu0 0.0
    %v156 = vand.u32 %v88, 4294901760
    %v157 = vsub.f32 %v88, %v156
    %v158 = vand.u32 %v157, 4294901760
    %v159 = vsub.f32 %v157, %v158
    %v160 = vand.u32 %v159, 4294901760
    %161 = vmatmul.mubr.f32.gmra.mrb[0].mxu0 %v160
    %v162 = vpop.f32.mrb[0].mxu0
    %v163 = vadd.f32 0.0, %v162
    %v164 = vpop.f32.mrb[0].mxu0
    %165 = vdwg.mxu0
    %166 = vmatprep.subr.mxu0 0.0
    %v167 = vand.u32 %v70, 4294901760
    %v168 = vsub.f32 %v70, %v167
    %v169 = vand.u32 %v168, 4294901760
    %v170 = vsub.f32 %v168, %v169
    %v171 = vand.u32 %v170, 4294901760
    %172 = vmatpush1.msra.mxu0 %v171
    %173 = vmatprep.subr.mxu0 0.0
    %174 = vmatpush1.msra.mxu0 0.0
    %175 = vmatprep.subr.mxu0 0.0
    %176 = vmatpush1.msra.mxu0 0.0
    %177 = vmatprep.subr.mxu0 0.0
    %178 = vmatpush1.msra.mxu0 0.0
    %179 = vmatprep.subr.mxu0 0.0
    %180 = vmatpush1.msra.mxu0 0.0
    %181 = vmatprep.subr.mxu0 0.0
    %182 = vmatpush1.msra.mxu0 0.0
    %183 = vmatprep.subr.mxu0 0.0
    %184 = vmatpush1.msra.mxu0 0.0
    %185 = vmatprep.subr.mxu0 0.0
    %186 = vmatpush1.msra.mxu0 0.0
    %187 = vmatprep.subr.mxu0 0.0
    %188 = vmatpush1.msra.mxu0 0.0
    %189 = vmatprep.subr.mxu0 0.0
    %190 = vmatpush1.msra.mxu0 0.0
    %191 = vmatprep.subr.mxu0 0.0
    %192 = vmatpush1.msra.mxu0 0.0
    %193 = vmatprep.subr.mxu0 0.0
    %194 = vmatpush1.msra.mxu0 0.0
    %195 = vmatprep.subr.mxu0 0.0
    %196 = vmatpush1.msra.mxu0 0.0
    %197 = vmatprep.subr.mxu0 0.0
    %198 = vmatpush1.msra.mxu0 0.0
    %199 = vmatprep.subr.mxu0 0.0
    %200 = vmatpush1.msra.mxu0 0.0
    %201 = vmatprep.subr.mxu0 0.0
    %202 = vmatpush1.msra.mxu0 0.0
    %203 = vmatprep.subr.mxu0 0.0
    %204 = vmatpush1.msra.mxu0 0.0
    %205 = vmatprep.subr.mxu0 0.0
    %206 = vmatpush1.msra.mxu0 0.0
    %207 = vmatprep.subr.mxu0 0.0
    %208 = vmatpush1.msra.mxu0 0.0
    %209 = vmatprep.subr.mxu0 0.0
    %210 = vmatpush1.msra.mxu0 0.0
    %211 = vmatprep.subr.mxu0 0.0
    %212 = vmatpush1.msra.mxu0 0.0
    %213 = vmatprep.subr.mxu0 0.0
    %214 = vmatpush1.msra.mxu0 0.0
    %215 = vmatprep.subr.mxu0 0.0
    %216 = vmatpush1.msra.mxu0 0.0
    %217 = vmatprep.subr.mxu0 0.0
    %218 = vmatpush1.msra.mxu0 0.0
    %219 = vmatprep.subr.mxu0 0.0
    %220 = vmatpush1.msra.mxu0 0.0
    %221 = vmatprep.subr.mxu0 0.0
    %222 = vmatpush1.msra.mxu0 0.0
    %223 = vmatprep.subr.mxu0 0.0
    %224 = vmatpush1.msra.mxu0 0.0
    %225 = vmatprep.subr.mxu0 0.0
    %226 = vmatpush1.msra.mxu0 0.0
    %227 = vmatprep.subr.mxu0 0.0
    %228 = vmatpush1.msra.mxu0 0.0
    %229 = vmatprep.subr.mxu0 0.0
    %230 = vmatpush1.msra.mxu0 0.0
    %231 = vmatprep.subr.mxu0 0.0
    %232 = vmatpush1.msra.mxu0 0.0
    %233 = vmatprep.subr.mxu0 0.0
    %234 = vmatpush1.msra.mxu0 0.0
    %235 = vmatprep.mubr.f32.mxu0 0.0
    %v236 = vand.u32 %v88, 4294901760
    %237 = vmatmul.mubr.f32.gmra.mrb[0].mxu0 %v236
    %v238 = vpop.f32.mrb[0].mxu0
    %v239 = vadd.f32 %v163, %v238
    %v240 = vpop.f32.mrb[0].mxu0
    %241 = vdwg.mxu0
    %242 = vmatprep.subr.mxu0 0.0
    %v243 = vand.u32 %v70, 4294901760
    %v244 = vsub.f32 %v70, %v243
    %245 = vmatpush1.msra.mxu0 %v244
    %246 = vmatprep.subr.mxu0 0.0
    %247 = vmatpush1.msra.mxu0 0.0
    %248 = vmatprep.subr.mxu0 0.0
    %249 = vmatpush1.msra.mxu0 0.0
    %250 = vmatprep.subr.mxu0 0.0
    %251 = vmatpush1.msra.mxu0 0.0
    %252 = vmatprep.subr.mxu0 0.0
    %253 = vmatpush1.msra.mxu0 0.0
    %254 = vmatprep.subr.mxu0 0.0
    %255 = vmatpush1.msra.mxu0 0.0
    %256 = vmatprep.subr.mxu0 0.0
    %257 = vmatpush1.msra.mxu0 0.0
    %258 = vmatprep.subr.mxu0 0.0
    %259 = vmatpush1.msra.mxu0 0.0
    %260 = vmatprep.subr.mxu0 0.0
    %261 = vmatpush1.msra.mxu0 0.0
    %262 = vmatprep.subr.mxu0 0.0
    %263 = vmatpush1.msra.mxu0 0.0
    %264 = vmatprep.subr.mxu0 0.0
    %265 = vmatpush1.msra.mxu0 0.0
    %266 = vmatprep.subr.mxu0 0.0
    %267 = vmatpush1.msra.mxu0 0.0
    %268 = vmatprep.subr.mxu0 0.0
    %269 = vmatpush1.msra.mxu0 0.0
    %270 = vmatprep.subr.mxu0 0.0
    %271 = vmatpush1.msra.mxu0 0.0
    %272 = vmatprep.subr.mxu0 0.0
    %273 = vmatpush1.msra.mxu0 0.0
    %274 = vmatprep.subr.mxu0 0.0
    %275 = vmatpush1.msra.mxu0 0.0
    %276 = vmatprep.subr.mxu0 0.0
    %277 = vmatpush1.msra.mxu0 0.0
    %278 = vmatprep.subr.mxu0 0.0
    %279 = vmatpush1.msra.mxu0 0.0
    %280 = vmatprep.subr.mxu0 0.0
    %281 = vmatpush1.msra.mxu0 0.0
    %282 = vmatprep.subr.mxu0 0.0
    %283 = vmatpush1.msra.mxu0 0.0
    %284 = vmatprep.subr.mxu0 0.0
    %285 = vmatpush1.msra.mxu0 0.0
    %286 = vmatprep.subr.mxu0 0.0
    %287 = vmatpush1.msra.mxu0 0.0
    %288 = vmatprep.subr.mxu0 0.0
    %289 = vmatpush1.msra.mxu0 0.0
    %290 = vmatprep.subr.mxu0 0.0
    %291 = vmatpush1.msra.mxu0 0.0
    %292 = vmatprep.subr.mxu0 0.0
    %293 = vmatpush1.msra.mxu0 0.0
    %294 = vmatprep.subr.mxu0 0.0
    %295 = vmatpush1.msra.mxu0 0.0
    %296 = vmatprep.subr.mxu0 0.0
    %297 = vmatpush1.msra.mxu0 0.0
    %298 = vmatprep.subr.mxu0 0.0
    %299 = vmatpush1.msra.mxu0 0.0
    %300 = vmatprep.subr.mxu0 0.0
    %301 = vmatpush1.msra.mxu0 0.0
    %302 = vmatprep.subr.mxu0 0.0
    %303 = vmatpush1.msra.mxu0 0.0
    %304 = vmatprep.subr.mxu0 0.0
    %305 = vmatpush1.msra.mxu0 0.0
    %306 = vmatprep.subr.mxu0 0.0
    %307 = vmatpush1.msra.mxu0 0.0
    %308 = vmatprep.mubr.f32.mxu0 0.0
    %v309 = vand.u32 %v88, 4294901760
    %v310 = vsub.f32 %v88, %v309
    %311 = vmatmul.mubr.f32.gmra.mrb[0].mxu0 %v310
    %v312 = vpop.f32.mrb[0].mxu0
    %v313 = vadd.f32 %v239, %v312
    %v314 = vpop.f32.mrb[0].mxu0
    %315 = vdwg.mxu0
    %316 = vmatprep.subr.mxu0 0.0
    %v317 = vand.u32 %v70, 4294901760
    %318 = vmatpush1.msra.mxu0 %v317
    %319 = vmatprep.subr.mxu0 0.0
    %320 = vmatpush1.msra.mxu0 0.0
    %321 = vmatprep.subr.mxu0 0.0
    %322 = vmatpush1.msra.mxu0 0.0
    %323 = vmatprep.subr.mxu0 0.0
    %324 = vmatpush1.msra.mxu0 0.0
    %325 = vmatprep.subr.mxu0 0.0
    %326 = vmatpush1.msra.mxu0 0.0
    %327 = vmatprep.subr.mxu0 0.0
    %328 = vmatpush1.msra.mxu0 0.0
    %329 = vmatprep.subr.mxu0 0.0
    %330 = vmatpush1.msra.mxu0 0.0
    %331 = vmatprep.subr.mxu0 0.0
    %332 = vmatpush1.msra.mxu0 0.0
    %333 = vmatprep.subr.mxu0 0.0
    %334 = vmatpush1.msra.mxu0 0.0
    %335 = vmatprep.subr.mxu0 0.0
    %336 = vmatpush1.msra.mxu0 0.0
    %337 = vmatprep.subr.mxu0 0.0
    %338 = vmatpush1.msra.mxu0 0.0
    %339 = vmatprep.subr.mxu0 0.0
    %340 = vmatpush1.msra.mxu0 0.0
    %341 = vmatprep.subr.mxu0 0.0
    %342 = vmatpush1.msra.mxu0 0.0
    %343 = vmatprep.subr.mxu0 0.0
    %344 = vmatpush1.msra.mxu0 0.0
    %345 = vmatprep.subr.mxu0 0.0
    %346 = vmatpush1.msra.mxu0 0.0
    %347 = vmatprep.subr.mxu0 0.0
    %348 = vmatpush1.msra.mxu0 0.0
    %349 = vmatprep.subr.mxu0 0.0
    %350 = vmatpush1.msra.mxu0 0.0
    %351 = vmatprep.subr.mxu0 0.0
    %352 = vmatpush1.msra.mxu0 0.0
    %353 = vmatprep.subr.mxu0 0.0
    %354 = vmatpush1.msra.mxu0 0.0
    %355 = vmatprep.subr.mxu0 0.0
    %356 = vmatpush1.msra.mxu0 0.0
    %357 = vmatprep.subr.mxu0 0.0
    %358 = vmatpush1.msra.mxu0 0.0
    %359 = vmatprep.subr.mxu0 0.0
    %360 = vmatpush1.msra.mxu0 0.0
    %361 = vmatprep.subr.mxu0 0.0
    %362 = vmatpush1.msra.mxu0 0.0
    %363 = vmatprep.subr.mxu0 0.0
    %364 = vmatpush1.msra.mxu0 0.0
    %365 = vmatprep.subr.mxu0 0.0
    %366 = vmatpush1.msra.mxu0 0.0
    %367 = vmatprep.subr.mxu0 0.0
    %368 = vmatpush1.msra.mxu0 0.0
    %369 = vmatprep.subr.mxu0 0.0
    %370 = vmatpush1.msra.mxu0 0.0
    %371 = vmatprep.subr.mxu0 0.0
    %372 = vmatpush1.msra.mxu0 0.0
    %373 = vmatprep.subr.mxu0 0.0
    %374 = vmatpush1.msra.mxu0 0.0
    %375 = vmatprep.subr.mxu0 0.0
    %376 = vmatpush1.msra.mxu0 0.0
    %377 = vmatprep.subr.mxu0 0.0
    %378 = vmatpush1.msra.mxu0 0.0
    %379 = vmatprep.subr.mxu0 0.0
    %380 = vmatpush1.msra.mxu0 0.0
    %381 = vmatprep.mubr.f32.mxu0 0.0
    %v382 = vand.u32 %v88, 4294901760
    %v383 = vsub.f32 %v88, %v382
    %v384 = vand.u32 %v383, 4294901760
    %385 = vmatmul.mubr.f32.gmra.mrb[0].mxu0 %v384
    %v386 = vpop.f32.mrb[0].mxu0
    %v387 = vadd.f32 %v313, %v386
    %v388 = vpop.f32.mrb[0].mxu0
    %389 = vdwg.mxu0
    %390 = vmatprep.subr.mxu0 0.0
    %v391 = vand.u32 %v70, 4294901760
    %v392 = vsub.f32 %v70, %v391
    %v393 = vand.u32 %v392, 4294901760
    %394 = vmatpush1.msra.mxu0 %v393
    %395 = vmatprep.subr.mxu0 0.0
    %396 = vmatpush1.msra.mxu0 0.0
    %397 = vmatprep.subr.mxu0 0.0
    %398 = vmatpush1.msra.mxu0 0.0
    %399 = vmatprep.subr.mxu0 0.0
    %400 = vmatpush1.msra.mxu0 0.0
    %401 = vmatprep.subr.mxu0 0.0
    %402 = vmatpush1.msra.mxu0 0.0
    %403 = vmatprep.subr.mxu0 0.0
    %404 = vmatpush1.msra.mxu0 0.0
    %405 = vmatprep.subr.mxu0 0.0
    %406 = vmatpush1.msra.mxu0 0.0
    %407 = vmatprep.subr.mxu0 0.0
    %408 = vmatpush1.msra.mxu0 0.0
    %409 = vmatprep.subr.mxu0 0.0
    %410 = vmatpush1.msra.mxu0 0.0
    %411 = vmatprep.subr.mxu0 0.0
    %412 = vmatpush1.msra.mxu0 0.0
    %413 = vmatprep.subr.mxu0 0.0
    %414 = vmatpush1.msra.mxu0 0.0
    %415 = vmatprep.subr.mxu0 0.0
    %416 = vmatpush1.msra.mxu0 0.0
    %417 = vmatprep.subr.mxu0 0.0
    %418 = vmatpush1.msra.mxu0 0.0
    %419 = vmatprep.subr.mxu0 0.0
    %420 = vmatpush1.msra.mxu0 0.0
    %421 = vmatprep.subr.mxu0 0.0
    %422 = vmatpush1.msra.mxu0 0.0
    %423 = vmatprep.subr.mxu0 0.0
    %424 = vmatpush1.msra.mxu0 0.0
    %425 = vmatprep.subr.mxu0 0.0
    %426 = vmatpush1.msra.mxu0 0.0
    %427 = vmatprep.subr.mxu0 0.0
    %428 = vmatpush1.msra.mxu0 0.0
    %429 = vmatprep.subr.mxu0 0.0
    %430 = vmatpush1.msra.mxu0 0.0
    %431 = vmatprep.subr.mxu0 0.0
    %432 = vmatpush1.msra.mxu0 0.0
    %433 = vmatprep.subr.mxu0 0.0
    %434 = vmatpush1.msra.mxu0 0.0
    %435 = vmatprep.subr.mxu0 0.0
    %436 = vmatpush1.msra.mxu0 0.0
    %437 = vmatprep.subr.mxu0 0.0
    %438 = vmatpush1.msra.mxu0 0.0
    %439 = vmatprep.subr.mxu0 0.0
    %440 = vmatpush1.msra.mxu0 0.0
    %441 = vmatprep.subr.mxu0 0.0
    %442 = vmatpush1.msra.mxu0 0.0
    %443 = vmatprep.subr.mxu0 0.0
    %444 = vmatpush1.msra.mxu0 0.0
    %445 = vmatprep.subr.mxu0 0.0
    %446 = vmatpush1.msra.mxu0 0.0
    %447 = vmatprep.subr.mxu0 0.0
    %448 = vmatpush1.msra.mxu0 0.0
    %449 = vmatprep.subr.mxu0 0.0
    %450 = vmatpush1.msra.mxu0 0.0
    %451 = vmatprep.subr.mxu0 0.0
    %452 = vmatpush1.msra.mxu0 0.0
    %453 = vmatprep.subr.mxu0 0.0
    %454 = vmatpush1.msra.mxu0 0.0
    %455 = vmatprep.subr.mxu0 0.0
    %456 = vmatpush1.msra.mxu0 0.0
    %457 = vmatprep.mubr.f32.mxu0 0.0
    %v458 = vand.u32 %v88, 4294901760
    %459 = vmatmul.mubr.f32.gmra.mrb[0].mxu0 %v458
    %v460 = vpop.f32.mrb[0].mxu0
    %v461 = vadd.f32 %v387, %v460
    %v462 = vpop.f32.mrb[0].mxu0
    %463 = vdwg.mxu0
    %464 = vmatprep.subr.mxu0 0.0
    %v465 = vand.u32 %v70, 4294901760
    %466 = vmatpush1.msra.mxu0 %v465
    %467 = vmatprep.subr.mxu0 0.0
    %468 = vmatpush1.msra.mxu0 0.0
    %469 = vmatprep.subr.mxu0 0.0
    %470 = vmatpush1.msra.mxu0 0.0
    %471 = vmatprep.subr.mxu0 0.0
    %472 = vmatpush1.msra.mxu0 0.0
    %473 = vmatprep.subr.mxu0 0.0
    %474 = vmatpush1.msra.mxu0 0.0
    %475 = vmatprep.subr.mxu0 0.0
    %476 = vmatpush1.msra.mxu0 0.0
    %477 = vmatprep.subr.mxu0 0.0
    %478 = vmatpush1.msra.mxu0 0.0
    %479 = vmatprep.subr.mxu0 0.0
    %480 = vmatpush1.msra.mxu0 0.0
    %481 = vmatprep.subr.mxu0 0.0
    %482 = vmatpush1.msra.mxu0 0.0
    %483 = vmatprep.subr.mxu0 0.0
    %484 = vmatpush1.msra.mxu0 0.0
    %485 = vmatprep.subr.mxu0 0.0
    %486 = vmatpush1.msra.mxu0 0.0
    %487 = vmatprep.subr.mxu0 0.0
    %488 = vmatpush1.msra.mxu0 0.0
    %489 = vmatprep.subr.mxu0 0.0
    %490 = vmatpush1.msra.mxu0 0.0
    %491 = vmatprep.subr.mxu0 0.0
    %492 = vmatpush1.msra.mxu0 0.0
    %493 = vmatprep.subr.mxu0 0.0
    %494 = vmatpush1.msra.mxu0 0.0
    %495 = vmatprep.subr.mxu0 0.0
    %496 = vmatpush1.msra.mxu0 0.0
    %497 = vmatprep.subr.mxu0 0.0
    %498 = vmatpush1.msra.mxu0 0.0
    %499 = vmatprep.subr.mxu0 0.0
    %500 = vmatpush1.msra.mxu0 0.0
    %501 = vmatprep.subr.mxu0 0.0
    %502 = vmatpush1.msra.mxu0 0.0
    %503 = vmatprep.subr.mxu0 0.0
    %504 = vmatpush1.msra.mxu0 0.0
    %505 = vmatprep.subr.mxu0 0.0
    %506 = vmatpush1.msra.mxu0 0.0
    %507 = vmatprep.subr.mxu0 0.0
    %508 = vmatpush1.msra.mxu0 0.0
    %509 = vmatprep.subr.mxu0 0.0
    %510 = vmatpush1.msra.mxu0 0.0
    %511 = vmatprep.subr.mxu0 0.0
    %512 = vmatpush1.msra.mxu0 0.0
    %513 = vmatprep.subr.mxu0 0.0
    %514 = vmatpush1.msra.mxu0 0.0
    %515 = vmatprep.subr.mxu0 0.0
    %516 = vmatpush1.msra.mxu0 0.0
    %517 = vmatprep.subr.mxu0 0.0
    %518 = vmatpush1.msra.mxu0 0.0
    %519 = vmatprep.subr.mxu0 0.0
    %520 = vmatpush1.msra.mxu0 0.0
    %521 = vmatprep.subr.mxu0 0.0
    %522 = vmatpush1.msra.mxu0 0.0
    %523 = vmatprep.subr.mxu0 0.0
    %524 = vmatpush1.msra.mxu0 0.0
    %525 = vmatprep.subr.mxu0 0.0
    %526 = vmatpush1.msra.mxu0 0.0
    %527 = vmatprep.subr.mxu0 0.0
    %528 = vmatpush1.msra.mxu0 0.0
    %529 = vmatprep.mubr.f32.mxu0 0.0
    %v530 = vand.u32 %v88, 4294901760
    %531 = vmatmul.mubr.f32.gmra.mrb[0].mxu0 %v530
    %v532 = vpop.f32.mrb[0].mxu0
    %v533 = vadd.f32 %v461, %v532
    %v534 = vpop.f32.mrb[0].mxu0
    %535 = vdwg.mxu0
    %v537 = vsel %vm86, %v63, 0
    %539 = vmatprep.subr.mxu0 0.0
    %v540 = vand.u32 %v71, 4294901760
    %541 = vmatpush1.msra.mxu0 %v540
    %542 = vmatprep.subr.mxu0 0.0
    %543 = vmatpush1.msra.mxu0 0.0
    %544 = vmatprep.subr.mxu0 0.0
    %545 = vmatpush1.msra.mxu0 0.0
    %546 = vmatprep.subr.mxu0 0.0
    %547 = vmatpush1.msra.mxu0 0.0
    %548 = vmatprep.subr.mxu0 0.0
    %549 = vmatpush1.msra.mxu0 0.0
    %550 = vmatprep.subr.mxu0 0.0
    %551 = vmatpush1.msra.mxu0 0.0
    %552 = vmatprep.subr.mxu0 0.0
    %553 = vmatpush1.msra.mxu0 0.0
    %554 = vmatprep.subr.mxu0 0.0
    %555 = vmatpush1.msra.mxu0 0.0
    %556 = vmatprep.subr.mxu0 0.0
    %557 = vmatpush1.msra.mxu0 0.0
    %558 = vmatprep.subr.mxu0 0.0
    %559 = vmatpush1.msra.mxu0 0.0
    %560 = vmatprep.subr.mxu0 0.0
    %561 = vmatpush1.msra.mxu0 0.0
    %562 = vmatprep.subr.mxu0 0.0
    %563 = vmatpush1.msra.mxu0 0.0
    %564 = vmatprep.subr.mxu0 0.0
    %565 = vmatpush1.msra.mxu0 0.0
    %566 = vmatprep.subr.mxu0 0.0
    %567 = vmatpush1.msra.mxu0 0.0
    %568 = vmatprep.subr.mxu0 0.0
    %569 = vmatpush1.msra.mxu0 0.0
    %570 = vmatprep.subr.mxu0 0.0
    %571 = vmatpush1.msra.mxu0 0.0
    %572 = vmatprep.subr.mxu0 0.0
    %573 = vmatpush1.msra.mxu0 0.0
    %574 = vmatprep.subr.mxu0 0.0
    %575 = vmatpush1.msra.mxu0 0.0
    %576 = vmatprep.subr.mxu0 0.0
    %577 = vmatpush1.msra.mxu0 0.0
    %578 = vmatprep.subr.mxu0 0.0
    %579 = vmatpush1.msra.mxu0 0.0
    %580 = vmatprep.subr.mxu0 0.0
    %581 = vmatpush1.msra.mxu0 0.0
    %582 = vmatprep.subr.mxu0 0.0
    %583 = vmatpush1.msra.mxu0 0.0
    %584 = vmatprep.subr.mxu0 0.0
    %585 = vmatpush1.msra.mxu0 0.0
    %586 = vmatprep.subr.mxu0 0.0
    %587 = vmatpush1.msra.mxu0 0.0
    %588 = vmatprep.subr.mxu0 0.0
    %589 = vmatpush1.msra.mxu0 0.0
    %590 = vmatprep.subr.mxu0 0.0
    %591 = vmatpush1.msra.mxu0 0.0
    %592 = vmatprep.subr.mxu0 0.0
    %593 = vmatpush1.msra.mxu0 0.0
    %594 = vmatprep.subr.mxu0 0.0
    %595 = vmatpush1.msra.mxu0 0.0
    %596 = vmatprep.subr.mxu0 0.0
    %597 = vmatpush1.msra.mxu0 0.0
    %598 = vmatprep.subr.mxu0 0.0
    %599 = vmatpush1.msra.mxu0 0.0
    %600 = vmatprep.subr.mxu0 0.0
    %601 = vmatpush1.msra.mxu0 0.0
    %602 = vmatprep.subr.mxu0 0.0
    %603 = vmatpush1.msra.mxu0 0.0
    %604 = vmatprep.mubr.f32.mxu0 0.0
    %v605 = vand.u32 %v537, 4294901760
    %v606 = vsub.f32 %v537, %v605
    %v607 = vand.u32 %v606, 4294901760
    %v608 = vsub.f32 %v606, %v607
    %v609 = vand.u32 %v608, 4294901760
    %610 = vmatmul.mubr.f32.gmra.mrb[0].mxu0 %v609
    %v611 = vpop.f32.mrb[0].mxu0
    %v612 = vadd.f32 0.0, %v611
    %v613 = vpop.f32.mrb[0].mxu0
    %614 = vdwg.mxu0
    %615 = vmatprep.subr.mxu0 0.0
    %v616 = vand.u32 %v71, 4294901760
    %v617 = vsub.f32 %v71, %v616
    %v618 = vand.u32 %v617, 4294901760
    %v619 = vsub.f32 %v617, %v618
    %v620 = vand.u32 %v619, 4294901760
    %621 = vmatpush1.msra.mxu0 %v620
    %622 = vmatprep.subr.mxu0 0.0
    %623 = vmatpush1.msra.mxu0 0.0
    %624 = vmatprep.subr.mxu0 0.0
    %625 = vmatpush1.msra.mxu0 0.0
    %626 = vmatprep.subr.mxu0 0.0
    %627 = vmatpush1.msra.mxu0 0.0
    %628 = vmatprep.subr.mxu0 0.0
    %629 = vmatpush1.msra.mxu0 0.0
    %630 = vmatprep.subr.mxu0 0.0
    %631 = vmatpush1.msra.mxu0 0.0
    %632 = vmatprep.subr.mxu0 0.0
    %633 = vmatpush1.msra.mxu0 0.0
    %634 = vmatprep.subr.mxu0 0.0
    %635 = vmatpush1.msra.mxu0 0.0
    %636 = vmatprep.subr.mxu0 0.0
    %637 = vmatpush1.msra.mxu0 0.0
    %638 = vmatprep.subr.mxu0 0.0
    %639 = vmatpush1.msra.mxu0 0.0
    %640 = vmatprep.subr.mxu0 0.0
    %641 = vmatpush1.msra.mxu0 0.0
    %642 = vmatprep.subr.mxu0 0.0
    %643 = vmatpush1.msra.mxu0 0.0
    %644 = vmatprep.subr.mxu0 0.0
    %645 = vmatpush1.msra.mxu0 0.0
    %646 = vmatprep.subr.mxu0 0.0
    %647 = vmatpush1.msra.mxu0 0.0
    %648 = vmatprep.subr.mxu0 0.0
    %649 = vmatpush1.msra.mxu0 0.0
    %650 = vmatprep.subr.mxu0 0.0
    %651 = vmatpush1.msra.mxu0 0.0
    %652 = vmatprep.subr.mxu0 0.0
    %653 = vmatpush1.msra.mxu0 0.0
    %654 = vmatprep.subr.mxu0 0.0
    %655 = vmatpush1.msra.mxu0 0.0
    %656 = vmatprep.subr.mxu0 0.0
    %657 = vmatpush1.msra.mxu0 0.0
    %658 = vmatprep.subr.mxu0 0.0
    %659 = vmatpush1.msra.mxu0 0.0
    %660 = vmatprep.subr.mxu0 0.0
    %661 = vmatpush1.msra.mxu0 0.0
    %662 = vmatprep.subr.mxu0 0.0
    %663 = vmatpush1.msra.mxu0 0.0
    %664 = vmatprep.subr.mxu0 0.0
    %665 = vmatpush1.msra.mxu0 0.0
    %666 = vmatprep.subr.mxu0 0.0
    %667 = vmatpush1.msra.mxu0 0.0
    %668 = vmatprep.subr.mxu0 0.0
    %669 = vmatpush1.msra.mxu0 0.0
    %670 = vmatprep.subr.mxu0 0.0
    %671 = vmatpush1.msra.mxu0 0.0
    %672 = vmatprep.subr.mxu0 0.0
    %673 = vmatpush1.msra.mxu0 0.0
    %674 = vmatprep.subr.mxu0 0.0
    %675 = vmatpush1.msra.mxu0 0.0
    %676 = vmatprep.subr.mxu0 0.0
    %677 = vmatpush1.msra.mxu0 0.0
    %678 = vmatprep.subr.mxu0 0.0
    %679 = vmatpush1.msra.mxu0 0.0
    %680 = vmatprep.subr.mxu0 0.0
    %681 = vmatpush1.msra.mxu0 0.0
    %682 = vmatprep.subr.mxu0 0.0
    %683 = vmatpush1.msra.mxu0 0.0
    %684 = vmatprep.mubr.f32.mxu0 0.0
    %v685 = vand.u32 %v537, 4294901760
    %686 = vmatmul.mubr.f32.gmra.mrb[0].mxu0 %v685
    %v687 = vpop.f32.mrb[0].mxu0
    %v688 = vadd.f32 %v612, %v687
    %v689 = vpop.f32.mrb[0].mxu0
    %690 = vdwg.mxu0
    %691 = vmatprep.subr.mxu0 0.0
    %v692 = vand.u32 %v71, 4294901760
    %v693 = vsub.f32 %v71, %v692
    %694 = vmatpush1.msra.mxu0 %v693
    %695 = vmatprep.subr.mxu0 0.0
    %696 = vmatpush1.msra.mxu0 0.0
    %697 = vmatprep.subr.mxu0 0.0
    %698 = vmatpush1.msra.mxu0 0.0
    %699 = vmatprep.subr.mxu0 0.0
    %700 = vmatpush1.msra.mxu0 0.0
    %701 = vmatprep.subr.mxu0 0.0
    %702 = vmatpush1.msra.mxu0 0.0
    %703 = vmatprep.subr.mxu0 0.0
    %704 = vmatpush1.msra.mxu0 0.0
    %705 = vmatprep.subr.mxu0 0.0
    %706 = vmatpush1.msra.mxu0 0.0
    %707 = vmatprep.subr.mxu0 0.0
    %708 = vmatpush1.msra.mxu0 0.0
    %709 = vmatprep.subr.mxu0 0.0
    %710 = vmatpush1.msra.mxu0 0.0
    %711 = vmatprep.subr.mxu0 0.0
    %712 = vmatpush1.msra.mxu0 0.0
    %713 = vmatprep.subr.mxu0 0.0
    %714 = vmatpush1.msra.mxu0 0.0
    %715 = vmatprep.subr.mxu0 0.0
    %716 = vmatpush1.msra.mxu0 0.0
    %717 = vmatprep.subr.mxu0 0.0
    %718 = vmatpush1.msra.mxu0 0.0
    %719 = vmatprep.subr.mxu0 0.0
    %720 = vmatpush1.msra.mxu0 0.0
    %721 = vmatprep.subr.mxu0 0.0
    %722 = vmatpush1.msra.mxu0 0.0
    %723 = vmatprep.subr.mxu0 0.0
    %724 = vmatpush1.msra.mxu0 0.0
    %725 = vmatprep.subr.mxu0 0.0
    %726 = vmatpush1.msra.mxu0 0.0
    %727 = vmatprep.subr.mxu0 0.0
    %728 = vmatpush1.msra.mxu0 0.0
    %729 = vmatprep.subr.mxu0 0.0
    %730 = vmatpush1.msra.mxu0 0.0
    %731 = vmatprep.subr.mxu0 0.0
    %732 = vmatpush1.msra.mxu0 0.0
    %733 = vmatprep.subr.mxu0 0.0
    %734 = vmatpush1.msra.mxu0 0.0
    %735 = vmatprep.subr.mxu0 0.0
    %736 = vmatpush1.msra.mxu0 0.0
    %737 = vmatprep.subr.mxu0 0.0
    %738 = vmatpush1.msra.mxu0 0.0
    %739 = vmatprep.subr.mxu0 0.0
    %740 = vmatpush1.msra.mxu0 0.0
    %741 = vmatprep.subr.mxu0 0.0
    %742 = vmatpush1.msra.mxu0 0.0
    %743 = vmatprep.subr.mxu0 0.0
    %744 = vmatpush1.msra.mxu0 0.0
    %745 = vmatprep.subr.mxu0 0.0
    %746 = vmatpush1.msra.mxu0 0.0
    %747 = vmatprep.subr.mxu0 0.0
    %748 = vmatpush1.msra.mxu0 0.0
    %749 = vmatprep.subr.mxu0 0.0
    %750 = vmatpush1.msra.mxu0 0.0
    %751 = vmatprep.subr.mxu0 0.0
    %752 = vmatpush1.msra.mxu0 0.0
    %753 = vmatprep.subr.mxu0 0.0
    %754 = vmatpush1.msra.mxu0 0.0
    %755 = vmatprep.subr.mxu0 0.0
    %756 = vmatpush1.msra.mxu0 0.0
    %757 = vmatprep.mubr.f32.mxu0 0.0
    %v758 = vand.u32 %v537, 4294901760
    %v759 = vsub.f32 %v537, %v758
    %760 = vmatmul.mubr.f32.gmra.mrb[0].mxu0 %v759
    %v761 = vpop.f32.mrb[0].mxu0
    %v762 = vadd.f32 %v688, %v761
    %v763 = vpop.f32.mrb[0].mxu0
    %764 = vdwg.mxu0
    %765 = vmatprep.subr.mxu0 0.0
    %v766 = vand.u32 %v71, 4294901760
    %767 = vmatpush1.msra.mxu0 %v766
    %768 = vmatprep.subr.mxu0 0.0
    %769 = vmatpush1.msra.mxu0 0.0
    %770 = vmatprep.subr.mxu0 0.0
    %771 = vmatpush1.msra.mxu0 0.0
    %772 = vmatprep.subr.mxu0 0.0
    %773 = vmatpush1.msra.mxu0 0.0
    %774 = vmatprep.subr.mxu0 0.0
    %775 = vmatpush1.msra.mxu0 0.0
    %776 = vmatprep.subr.mxu0 0.0
    %777 = vmatpush1.msra.mxu0 0.0
    %778 = vmatprep.subr.mxu0 0.0
    %779 = vmatpush1.msra.mxu0 0.0
    %780 = vmatprep.subr.mxu0 0.0
    %781 = vmatpush1.msra.mxu0 0.0
    %782 = vmatprep.subr.mxu0 0.0
    %783 = vmatpush1.msra.mxu0 0.0
    %784 = vmatprep.subr.mxu0 0.0
    %785 = vmatpush1.msra.mxu0 0.0
    %786 = vmatprep.subr.mxu0 0.0
    %787 = vmatpush1.msra.mxu0 0.0
    %788 = vmatprep.subr.mxu0 0.0
    %789 = vmatpush1.msra.mxu0 0.0
    %790 = vmatprep.subr.mxu0 0.0
    %791 = vmatpush1.msra.mxu0 0.0
    %792 = vmatprep.subr.mxu0 0.0
    %793 = vmatpush1.msra.mxu0 0.0
    %794 = vmatprep.subr.mxu0 0.0
    %795 = vmatpush1.msra.mxu0 0.0
    %796 = vmatprep.subr.mxu0 0.0
    %797 = vmatpush1.msra.mxu0 0.0
    %798 = vmatprep.subr.mxu0 0.0
    %799 = vmatpush1.msra.mxu0 0.0
    %800 = vmatprep.subr.mxu0 0.0
    %801 = vmatpush1.msra.mxu0 0.0
    %802 = vmatprep.subr.mxu0 0.0
    %803 = vmatpush1.msra.mxu0 0.0
    %804 = vmatprep.subr.mxu0 0.0
    %805 = vmatpush1.msra.mxu0 0.0
    %806 = vmatprep.subr.mxu0 0.0
    %807 = vmatpush1.msra.mxu0 0.0
    %808 = vmatprep.subr.mxu0 0.0
    %809 = vmatpush1.msra.mxu0 0.0
    %810 = vmatprep.subr.mxu0 0.0
    %811 = vmatpush1.msra.mxu0 0.0
    %812 = vmatprep.subr.mxu0 0.0
    %813 = vmatpush1.msra.mxu0 0.0
    %814 = vmatprep.subr.mxu0 0.0
    %815 = vmatpush1.msra.mxu0 0.0
    %816 = vmatprep.subr.mxu0 0.0
    %817 = vmatpush1.msra.mxu0 0.0
    %818 = vmatprep.subr.mxu0 0.0
    %819 = vmatpush1.msra.mxu0 0.0
    %820 = vmatprep.subr.mxu0 0.0
    %821 = vmatpush1.msra.mxu0 0.0
    %822 = vmatprep.subr.mxu0 0.0
    %823 = vmatpush1.msra.mxu0 0.0
    %824 = vmatprep.subr.mxu0 0.0
    %825 = vmatpush1.msra.mxu0 0.0
    %826 = vmatprep.subr.mxu0 0.0
    %827 = vmatpush1.msra.mxu0 0.0
    %828 = vmatprep.subr.mxu0 0.0
    %829 = vmatpush1.msra.mxu0 0.0
    %830 = vmatprep.mubr.f32.mxu0 0.0
    %v831 = vand.u32 %v537, 4294901760
    %v832 = vsub.f32 %v537, %v831
    %v833 = vand.u32 %v832, 4294901760
    %834 = vmatmul.mubr.f32.gmra.mrb[0].mxu0 %v833
    %v835 = vpop.f32.mrb[0].mxu0
    %v836 = vadd.f32 %v762, %v835
    %v837 = vpop.f32.mrb[0].mxu0
    %838 = vdwg.mxu0
    %839 = vmatprep.subr.mxu0 0.0
    %v840 = vand.u32 %v71, 4294901760
    %v841 = vsub.f32 %v71, %v840
    %v842 = vand.u32 %v841, 4294901760
    %843 = vmatpush1.msra.mxu0 %v842
    %844 = vmatprep.subr.mxu0 0.0
    %845 = vmatpush1.msra.mxu0 0.0
    %846 = vmatprep.subr.mxu0 0.0
    %847 = vmatpush1.msra.mxu0 0.0
    %848 = vmatprep.subr.mxu0 0.0
    %849 = vmatpush1.msra.mxu0 0.0
    %850 = vmatprep.subr.mxu0 0.0
    %851 = vmatpush1.msra.mxu0 0.0
    %852 = vmatprep.subr.mxu0 0.0
    %853 = vmatpush1.msra.mxu0 0.0
    %854 = vmatprep.subr.mxu0 0.0
    %855 = vmatpush1.msra.mxu0 0.0
    %856 = vmatprep.subr.mxu0 0.0
    %857 = vmatpush1.msra.mxu0 0.0
    %858 = vmatprep.subr.mxu0 0.0
    %859 = vmatpush1.msra.mxu0 0.0
    %860 = vmatprep.subr.mxu0 0.0
    %861 = vmatpush1.msra.mxu0 0.0
    %862 = vmatprep.subr.mxu0 0.0
    %863 = vmatpush1.msra.mxu0 0.0
    %864 = vmatprep.subr.mxu0 0.0
    %865 = vmatpush1.msra.mxu0 0.0
    %866 = vmatprep.subr.mxu0 0.0
    %867 = vmatpush1.msra.mxu0 0.0
    %868 = vmatprep.subr.mxu0 0.0
    %869 = vmatpush1.msra.mxu0 0.0
    %870 = vmatprep.subr.mxu0 0.0
    %871 = vmatpush1.msra.mxu0 0.0
    %872 = vmatprep.subr.mxu0 0.0
    %873 = vmatpush1.msra.mxu0 0.0
    %874 = vmatprep.subr.mxu0 0.0
    %875 = vmatpush1.msra.mxu0 0.0
    %876 = vmatprep.subr.mxu0 0.0
    %877 = vmatpush1.msra.mxu0 0.0
    %878 = vmatprep.subr.mxu0 0.0
    %879 = vmatpush1.msra.mxu0 0.0
    %880 = vmatprep.subr.mxu0 0.0
    %881 = vmatpush1.msra.mxu0 0.0
    %882 = vmatprep.subr.mxu0 0.0
    %883 = vmatpush1.msra.mxu0 0.0
    %884 = vmatprep.subr.mxu0 0.0
    %885 = vmatpush1.msra.mxu0 0.0
    %886 = vmatprep.subr.mxu0 0.0
    %887 = vmatpush1.msra.mxu0 0.0
    %888 = vmatprep.subr.mxu0 0.0
    %889 = vmatpush1.msra.mxu0 0.0
    %890 = vmatprep.subr.mxu0 0.0
    %891 = vmatpush1.msra.mxu0 0.0
    %892 = vmatprep.subr.mxu0 0.0
    %893 = vmatpush1.msra.mxu0 0.0
    %894 = vmatprep.subr.mxu0 0.0
    %895 = vmatpush1.msra.mxu0 0.0
    %896 = vmatprep.subr.mxu0 0.0
    %897 = vmatpush1.msra.mxu0 0.0
    %898 = vmatprep.subr.mxu0 0.0
    %899 = vmatpush1.msra.mxu0 0.0
    %900 = vmatprep.subr.mxu0 0.0
    %901 = vmatpush1.msra.mxu0 0.0
    %902 = vmatprep.subr.mxu0 0.0
    %903 = vmatpush1.msra.mxu0 0.0
    %904 = vmatprep.subr.mxu0 0.0
    %905 = vmatpush1.msra.mxu0 0.0
    %906 = vmatprep.mubr.f32.mxu0 0.0
    %v907 = vand.u32 %v537, 4294901760
    %908 = vmatmul.mubr.f32.gmra.mrb[0].mxu0 %v907
    %v909 = vpop.f32.mrb[0].mxu0
    %v910 = vadd.f32 %v836, %v909
    %v911 = vpop.f32.mrb[0].mxu0
    %912 = vdwg.mxu0
    %913 = vmatprep.subr.mxu0 0.0
    %v914 = vand.u32 %v71, 4294901760
    %915 = vmatpush1.msra.mxu0 %v914
    %916 = vmatprep.subr.mxu0 0.0
    %917 = vmatpush1.msra.mxu0 0.0
    %918 = vmatprep.subr.mxu0 0.0
    %919 = vmatpush1.msra.mxu0 0.0
    %920 = vmatprep.subr.mxu0 0.0
    %921 = vmatpush1.msra.mxu0 0.0
    %922 = vmatprep.subr.mxu0 0.0
    %923 = vmatpush1.msra.mxu0 0.0
    %924 = vmatprep.subr.mxu0 0.0
    %925 = vmatpush1.msra.mxu0 0.0
    %926 = vmatprep.subr.mxu0 0.0
    %927 = vmatpush1.msra.mxu0 0.0
    %928 = vmatprep.subr.mxu0 0.0
    %929 = vmatpush1.msra.mxu0 0.0
    %930 = vmatprep.subr.mxu0 0.0
    %931 = vmatpush1.msra.mxu0 0.0
    %932 = vmatprep.subr.mxu0 0.0
    %933 = vmatpush1.msra.mxu0 0.0
    %934 = vmatprep.subr.mxu0 0.0
    %935 = vmatpush1.msra.mxu0 0.0
    %936 = vmatprep.subr.mxu0 0.0
    %937 = vmatpush1.msra.mxu0 0.0
    %938 = vmatprep.subr.mxu0 0.0
    %939 = vmatpush1.msra.mxu0 0.0
    %940 = vmatprep.subr.mxu0 0.0
    %941 = vmatpush1.msra.mxu0 0.0
    %942 = vmatprep.subr.mxu0 0.0
    %943 = vmatpush1.msra.mxu0 0.0
    %944 = vmatprep.subr.mxu0 0.0
    %945 = vmatpush1.msra.mxu0 0.0
    %946 = vmatprep.subr.mxu0 0.0
    %947 = vmatpush1.msra.mxu0 0.0
    %948 = vmatprep.subr.mxu0 0.0
    %949 = vmatpush1.msra.mxu0 0.0
    %950 = vmatprep.subr.mxu0 0.0
    %951 = vmatpush1.msra.mxu0 0.0
    %952 = vmatprep.subr.mxu0 0.0
    %953 = vmatpush1.msra.mxu0 0.0
    %954 = vmatprep.subr.mxu0 0.0
    %955 = vmatpush1.msra.mxu0 0.0
    %956 = vmatprep.subr.mxu0 0.0
    %957 = vmatpush1.msra.mxu0 0.0
    %958 = vmatprep.subr.mxu0 0.0
    %959 = vmatpush1.msra.mxu0 0.0
    %960 = vmatprep.subr.mxu0 0.0
    %961 = vmatpush1.msra.mxu0 0.0
    %962 = vmatprep.subr.mxu0 0.0
    %963 = vmatpush1.msra.mxu0 0.0
    %964 = vmatprep.subr.mxu0 0.0
    %965 = vmatpush1.msra.mxu0 0.0
    %966 = vmatprep.subr.mxu0 0.0
    %967 = vmatpush1.msra.mxu0 0.0
    %968 = vmatprep.subr.mxu0 0.0
    %969 = vmatpush1.msra.mxu0 0.0
    %970 = vmatprep.subr.mxu0 0.0
    %971 = vmatpush1.msra.mxu0 0.0
    %972 = vmatprep.subr.mxu0 0.0
    %973 = vmatpush1.msra.mxu0 0.0
    %974 = vmatprep.subr.mxu0 0.0
    %975 = vmatpush1.msra.mxu0 0.0
    %976 = vmatprep.subr.mxu0 0.0
    %977 = vmatpush1.msra.mxu0 0.0
    %978 = vmatprep.mubr.f32.mxu0 0.0
    %v979 = vand.u32 %v537, 4294901760
    %980 = vmatmul.mubr.f32.gmra.mrb[0].mxu0 %v979
    %v981 = vpop.f32.mrb[0].mxu0
    %v982 = vadd.f32 %v910, %v981
    %v983 = vpop.f32.mrb[0].mxu0
    %984 = vdwg.mxu0
    %v986 = vsel %vm86, %v64, 0
    %988 = vmatprep.subr.mxu0 0.0
    %v989 = vand.u32 %v72, 4294901760
    %990 = vmatpush1.msra.mxu0 %v989
    %991 = vmatprep.subr.mxu0 0.0
    %992 = vmatpush1.msra.mxu0 0.0
    %993 = vmatprep.subr.mxu0 0.0
    %994 = vmatpush1.msra.mxu0 0.0
    %995 = vmatprep.subr.mxu0 0.0
    %996 = vmatpush1.msra.mxu0 0.0
    %997 = vmatprep.subr.mxu0 0.0
    %998 = vmatpush1.msra.mxu0 0.0
    %999 = vmatprep.subr.mxu0 0.0
    %1000 = vmatpush1.msra.mxu0 0.0
    %1001 = vmatprep.subr.mxu0 0.0
    %1002 = vmatpush1.msra.mxu0 0.0
    %1003 = vmatprep.subr.mxu0 0.0
    %1004 = vmatpush1.msra.mxu0 0.0
    %1005 = vmatprep.subr.mxu0 0.0
    %1006 = vmatpush1.msra.mxu0 0.0
    %1007 = vmatprep.subr.mxu0 0.0
    %1008 = vmatpush1.msra.mxu0 0.0
    %1009 = vmatprep.subr.mxu0 0.0
    %1010 = vmatpush1.msra.mxu0 0.0
    %1011 = vmatprep.subr.mxu0 0.0
    %1012 = vmatpush1.msra.mxu0 0.0
    %1013 = vmatprep.subr.mxu0 0.0
    %1014 = vmatpush1.msra.mxu0 0.0
    %1015 = vmatprep.subr.mxu0 0.0
    %1016 = vmatpush1.msra.mxu0 0.0
    %1017 = vmatprep.subr.mxu0 0.0
    %1018 = vmatpush1.msra.mxu0 0.0
    %1019 = vmatprep.subr.mxu0 0.0
    %1020 = vmatpush1.msra.mxu0 0.0
    %1021 = vmatprep.subr.mxu0 0.0
    %1022 = vmatpush1.msra.mxu0 0.0
    %1023 = vmatprep.subr.mxu0 0.0
    %1024 = vmatpush1.msra.mxu0 0.0
    %1025 = vmatprep.subr.mxu0 0.0
    %1026 = vmatpush1.msra.mxu0 0.0
    %1027 = vmatprep.subr.mxu0 0.0
    %1028 = vmatpush1.msra.mxu0 0.0
    %1029 = vmatprep.subr.mxu0 0.0
    %1030 = vmatpush1.msra.mxu0 0.0
    %1031 = vmatprep.subr.mxu0 0.0
    %1032 = vmatpush1.msra.mxu0 0.0
    %1033 = vmatprep.subr.mxu0 0.0
    %1034 = vmatpush1.msra.mxu0 0.0
    %1035 = vmatprep.subr.mxu0 0.0
    %1036 = vmatpush1.msra.mxu0 0.0
    %1037 = vmatprep.subr.mxu0 0.0
    %1038 = vmatpush1.msra.mxu0 0.0
    %1039 = vmatprep.subr.mxu0 0.0
    %1040 = vmatpush1.msra.mxu0 0.0
    %1041 = vmatprep.subr.mxu0 0.0
    %1042 = vmatpush1.msra.mxu0 0.0
    %1043 = vmatprep.subr.mxu0 0.0
    %1044 = vmatpush1.msra.mxu0 0.0
    %1045 = vmatprep.subr.mxu0 0.0
    %1046 = vmatpush1.msra.mxu0 0.0
    %1047 = vmatprep.subr.mxu0 0.0
    %1048 = vmatpush1.msra.mxu0 0.0
    %1049 = vmatprep.subr.mxu0 0.0
    %1050 = vmatpush1.msra.mxu0 0.0
    %1051 = vmatprep.subr.mxu0 0.0
    %1052 = vmatpush1.msra.mxu0 0.0
    %1053 = vmatprep.mubr.f32.mxu0 0.0
    %v1054 = vand.u32 %v986, 4294901760
    %v1055 = vsub.f32 %v986, %v1054
    %v1056 = vand.u32 %v1055, 4294901760
    %v1057 = vsub.f32 %v1055, %v1056
    %v1058 = vand.u32 %v1057, 4294901760
    %1059 = vmatmul.mubr.f32.gmra.mrb[0].mxu0 %v1058
    %v1060 = vpop.f32.mrb[0].mxu0
    %v1061 = vadd.f32 0.0, %v1060
    %v1062 = vpop.f32.mrb[0].mxu0
    %1063 = vdwg.mxu0
    %1064 = vmatprep.subr.mxu0 0.0
    %v1065 = vand.u32 %v72, 4294901760
    %v1066 = vsub.f32 %v72, %v1065
    %v1067 = vand.u32 %v1066, 4294901760
    %v1068 = vsub.f32 %v1066, %v1067
    %v1069 = vand.u32 %v1068, 4294901760
    %1070 = vmatpush1.msra.mxu0 %v1069
    %1071 = vmatprep.subr.mxu0 0.0
    %1072 = vmatpush1.msra.mxu0 0.0
    %1073 = vmatprep.subr.mxu0 0.0
    %1074 = vmatpush1.msra.mxu0 0.0
    %1075 = vmatprep.subr.mxu0 0.0
    %1076 = vmatpush1.msra.mxu0 0.0
    %1077 = vmatprep.subr.mxu0 0.0
    %1078 = vmatpush1.msra.mxu0 0.0
    %1079 = vmatprep.subr.mxu0 0.0
    %1080 = vmatpush1.msra.mxu0 0.0
    %1081 = vmatprep.subr.mxu0 0.0
    %1082 = vmatpush1.msra.mxu0 0.0
    %1083 = vmatprep.subr.mxu0 0.0
    %1084 = vmatpush1.msra.mxu0 0.0
    %1085 = vmatprep.subr.mxu0 0.0
    %1086 = vmatpush1.msra.mxu0 0.0
    %1087 = vmatprep.subr.mxu0 0.0
    %1088 = vmatpush1.msra.mxu0 0.0
    %1089 = vmatprep.subr.mxu0 0.0
    %1090 = vmatpush1.msra.mxu0 0.0
    %1091 = vmatprep.subr.mxu0 0.0
    %1092 = vmatpush1.msra.mxu0 0.0
    %1093 = vmatprep.subr.mxu0 0.0
    %1094 = vmatpush1.msra.mxu0 0.0
    %1095 = vmatprep.subr.mxu0 0.0
    %1096 = vmatpush1.msra.mxu0 0.0
    %1097 = vmatprep.subr.mxu0 0.0
    %1098 = vmatpush1.msra.mxu0 0.0
    %1099 = vmatprep.subr.mxu0 0.0
    %1100 = vmatpush1.msra.mxu0 0.0
    %1101 = vmatprep.subr.mxu0 0.0
    %1102 = vmatpush1.msra.mxu0 0.0
    %1103 = vmatprep.subr.mxu0 0.0
    %1104 = vmatpush1.msra.mxu0 0.0
    %1105 = vmatprep.subr.mxu0 0.0
    %1106 = vmatpush1.msra.mxu0 0.0
    %1107 = vmatprep.subr.mxu0 0.0
    %1108 = vmatpush1.msra.mxu0 0.0
    %1109 = vmatprep.subr.mxu0 0.0
    %1110 = vmatpush1.msra.mxu0 0.0
    %1111 = vmatprep.subr.mxu0 0.0
    %1112 = vmatpush1.msra.mxu0 0.0
    %1113 = vmatprep.subr.mxu0 0.0
    %1114 = vmatpush1.msra.mxu0 0.0
    %1115 = vmatprep.subr.mxu0 0.0
    %1116 = vmatpush1.msra.mxu0 0.0
    %1117 = vmatprep.subr.mxu0 0.0
    %1118 = vmatpush1.msra.mxu0 0.0
    %1119 = vmatprep.subr.mxu0 0.0
    %1120 = vmatpush1.msra.mxu0 0.0
    %1121 = vmatprep.subr.mxu0 0.0
    %1122 = vmatpush1.msra.mxu0 0.0
    %1123 = vmatprep.subr.mxu0 0.0
    %1124 = vmatpush1.msra.mxu0 0.0
    %1125 = vmatprep.subr.mxu0 0.0
    %1126 = vmatpush1.msra.mxu0 0.0
    %1127 = vmatprep.subr.mxu0 0.0
    %1128 = vmatpush1.msra.mxu0 0.0
    %1129 = vmatprep.subr.mxu0 0.0
    %1130 = vmatpush1.msra.mxu0 0.0
    %1131 = vmatprep.subr.mxu0 0.0
    %1132 = vmatpush1.msra.mxu0 0.0
    %1133 = vmatprep.mubr.f32.mxu0 0.0
    %v1134 = vand.u32 %v986, 4294901760
    %1135 = vmatmul.mubr.f32.gmra.mrb[0].mxu0 %v1134
    %v1136 = vpop.f32.mrb[0].mxu0
    %v1137 = vadd.f32 %v1061, %v1136
    %v1138 = vpop.f32.mrb[0].mxu0
    %1139 = vdwg.mxu0
    %1140 = vmatprep.subr.mxu0 0.0
    %v1141 = vand.u32 %v72, 4294901760
    %v1142 = vsub.f32 %v72, %v1141
    %1143 = vmatpush1.msra.mxu0 %v1142
    %1144 = vmatprep.subr.mxu0 0.0
    %1145 = vmatpush1.msra.mxu0 0.0
    %1146 = vmatprep.subr.mxu0 0.0
    %1147 = vmatpush1.msra.mxu0 0.0
    %1148 = vmatprep.subr.mxu0 0.0
    %1149 = vmatpush1.msra.mxu0 0.0
    %1150 = vmatprep.subr.mxu0 0.0
    %1151 = vmatpush1.msra.mxu0 0.0
    %1152 = vmatprep.subr.mxu0 0.0
    %1153 = vmatpush1.msra.mxu0 0.0
    %1154 = vmatprep.subr.mxu0 0.0
    %1155 = vmatpush1.msra.mxu0 0.0
    %1156 = vmatprep.subr.mxu0 0.0
    %1157 = vmatpush1.msra.mxu0 0.0
    %1158 = vmatprep.subr.mxu0 0.0
    %1159 = vmatpush1.msra.mxu0 0.0
    %1160 = vmatprep.subr.mxu0 0.0
    %1161 = vmatpush1.msra.mxu0 0.0
    %1162 = vmatprep.subr.mxu0 0.0
    %1163 = vmatpush1.msra.mxu0 0.0
    %1164 = vmatprep.subr.mxu0 0.0
    %1165 = vmatpush1.msra.mxu0 0.0
    %1166 = vmatprep.subr.mxu0 0.0
    %1167 = vmatpush1.msra.mxu0 0.0
    %1168 = vmatprep.subr.mxu0 0.0
    %1169 = vmatpush1.msra.mxu0 0.0
    %1170 = vmatprep.subr.mxu0 0.0
    %1171 = vmatpush1.msra.mxu0 0.0
    %1172 = vmatprep.subr.mxu0 0.0
    %1173 = vmatpush1.msra.mxu0 0.0
    %1174 = vmatprep.subr.mxu0 0.0
    %1175 = vmatpush1.msra.mxu0 0.0
    %1176 = vmatprep.subr.mxu0 0.0
    %1177 = vmatpush1.msra.mxu0 0.0
    %1178 = vmatprep.subr.mxu0 0.0
    %1179 = vmatpush1.msra.mxu0 0.0
    %1180 = vmatprep.subr.mxu0 0.0
    %1181 = vmatpush1.msra.mxu0 0.0
    %1182 = vmatprep.subr.mxu0 0.0
    %1183 = vmatpush1.msra.mxu0 0.0
    %1184 = vmatprep.subr.mxu0 0.0
    %1185 = vmatpush1.msra.mxu0 0.0
    %1186 = vmatprep.subr.mxu0 0.0
    %1187 = vmatpush1.msra.mxu0 0.0
    %1188 = vmatprep.subr.mxu0 0.0
    %1189 = vmatpush1.msra.mxu0 0.0
    %1190 = vmatprep.subr.mxu0 0.0
    %1191 = vmatpush1.msra.mxu0 0.0
    %1192 = vmatprep.subr.mxu0 0.0
    %1193 = vmatpush1.msra.mxu0 0.0
    %1194 = vmatprep.subr.mxu0 0.0
    %1195 = vmatpush1.msra.mxu0 0.0
    %1196 = vmatprep.subr.mxu0 0.0
    %1197 = vmatpush1.msra.mxu0 0.0
    %1198 = vmatprep.subr.mxu0 0.0
    %1199 = vmatpush1.msra.mxu0 0.0
    %1200 = vmatprep.subr.mxu0 0.0
    %1201 = vmatpush1.msra.mxu0 0.0
    %1202 = vmatprep.subr.mxu0 0.0
    %1203 = vmatpush1.msra.mxu0 0.0
    %1204 = vmatprep.subr.mxu0 0.0
    %1205 = vmatpush1.msra.mxu0 0.0
    %1206 = vmatprep.mubr.f32.mxu0 0.0
    %v1207 = vand.u32 %v986, 4294901760
    %v1208 = vsub.f32 %v986, %v1207
    %1209 = vmatmul.mubr.f32.gmra.mrb[0].mxu0 %v1208
    %v1210 = vpop.f32.mrb[0].mxu0
    %v1211 = vadd.f32 %v1137, %v1210
    %v1212 = vpop.f32.mrb[0].mxu0
    %1213 = vdwg.mxu0
    %1214 = vmatprep.subr.mxu0 0.0
    %v1215 = vand.u32 %v72, 4294901760
    %1216 = vmatpush1.msra.mxu0 %v1215
    %1217 = vmatprep.subr.mxu0 0.0
    %1218 = vmatpush1.msra.mxu0 0.0
    %1219 = vmatprep.subr.mxu0 0.0
    %1220 = vmatpush1.msra.mxu0 0.0
    %1221 = vmatprep.subr.mxu0 0.0
    %1222 = vmatpush1.msra.mxu0 0.0
    %1223 = vmatprep.subr.mxu0 0.0
    %1224 = vmatpush1.msra.mxu0 0.0
    %1225 = vmatprep.subr.mxu0 0.0
    %1226 = vmatpush1.msra.mxu0 0.0
    %1227 = vmatprep.subr.mxu0 0.0
    %1228 = vmatpush1.msra.mxu0 0.0
    %1229 = vmatprep.subr.mxu0 0.0
    %1230 = vmatpush1.msra.mxu0 0.0
    %1231 = vmatprep.subr.mxu0 0.0
    %1232 = vmatpush1.msra.mxu0 0.0
    %1233 = vmatprep.subr.mxu0 0.0
    %1234 = vmatpush1.msra.mxu0 0.0
    %1235 = vmatprep.subr.mxu0 0.0
    %1236 = vmatpush1.msra.mxu0 0.0
    %1237 = vmatprep.subr.mxu0 0.0
    %1238 = vmatpush1.msra.mxu0 0.0
    %1239 = vmatprep.subr.mxu0 0.0
    %1240 = vmatpush1.msra.mxu0 0.0
    %1241 = vmatprep.subr.mxu0 0.0
    %1242 = vmatpush1.msra.mxu0 0.0
    %1243 = vmatprep.subr.mxu0 0.0
    %1244 = vmatpush1.msra.mxu0 0.0
    %1245 = vmatprep.subr.mxu0 0.0
    %1246 = vmatpush1.msra.mxu0 0.0
    %1247 = vmatprep.subr.mxu0 0.0
    %1248 = vmatpush1.msra.mxu0 0.0
    %1249 = vmatprep.subr.mxu0 0.0
    %1250 = vmatpush1.msra.mxu0 0.0
    %1251 = vmatprep.subr.mxu0 0.0
    %1252 = vmatpush1.msra.mxu0 0.0
    %1253 = vmatprep.subr.mxu0 0.0
    %1254 = vmatpush1.msra.mxu0 0.0
    %1255 = vmatprep.subr.mxu0 0.0
    %1256 = vmatpush1.msra.mxu0 0.0
    %1257 = vmatprep.subr.mxu0 0.0
    %1258 = vmatpush1.msra.mxu0 0.0
    %1259 = vmatprep.subr.mxu0 0.0
    %1260 = vmatpush1.msra.mxu0 0.0
    %1261 = vmatprep.subr.mxu0 0.0
    %1262 = vmatpush1.msra.mxu0 0.0
    %1263 = vmatprep.subr.mxu0 0.0
    %1264 = vmatpush1.msra.mxu0 0.0
    %1265 = vmatprep.subr.mxu0 0.0
    %1266 = vmatpush1.msra.mxu0 0.0
    %1267 = vmatprep.subr.mxu0 0.0
    %1268 = vmatpush1.msra.mxu0 0.0
    %1269 = vmatprep.subr.mxu0 0.0
    %1270 = vmatpush1.msra.mxu0 0.0
    %1271 = vmatprep.subr.mxu0 0.0
    %1272 = vmatpush1.msra.mxu0 0.0
    %1273 = vmatprep.subr.mxu0 0.0
    %1274 = vmatpush1.msra.mxu0 0.0
    %1275 = vmatprep.subr.mxu0 0.0
    %1276 = vmatpush1.msra.mxu0 0.0
    %1277 = vmatprep.subr.mxu0 0.0
    %1278 = vmatpush1.msra.mxu0 0.0
    %1279 = vmatprep.mubr.f32.mxu0 0.0
    %v1280 = vand.u32 %v986, 4294901760
    %v1281 = vsub.f32 %v986, %v1280
    %v1282 = vand.u32 %v1281, 4294901760
    %1283 = vmatmul.mubr.f32.gmra.mrb[0].mxu0 %v1282
    %v1284 = vpop.f32.mrb[0].mxu0
    %v1285 = vadd.f32 %v1211, %v1284
    %v1286 = vpop.f32.mrb[0].mxu0
    %1287 = vdwg.mxu0
    %1288 = vmatprep.subr.mxu0 0.0
    %v1289 = vand.u32 %v72, 4294901760
    %v1290 = vsub.f32 %v72, %v1289
    %v1291 = vand.u32 %v1290, 4294901760
    %1292 = vmatpush1.msra.mxu0 %v1291
    %1293 = vmatprep.subr.mxu0 0.0
    %1294 = vmatpush1.msra.mxu0 0.0
    %1295 = vmatprep.subr.mxu0 0.0
    %1296 = vmatpush1.msra.mxu0 0.0
    %1297 = vmatprep.subr.mxu0 0.0
    %1298 = vmatpush1.msra.mxu0 0.0
    %1299 = vmatprep.subr.mxu0 0.0
    %1300 = vmatpush1.msra.mxu0 0.0
    %1301 = vmatprep.subr.mxu0 0.0
    %1302 = vmatpush1.msra.mxu0 0.0
    %1303 = vmatprep.subr.mxu0 0.0
    %1304 = vmatpush1.msra.mxu0 0.0
    %1305 = vmatprep.subr.mxu0 0.0
    %1306 = vmatpush1.msra.mxu0 0.0
    %1307 = vmatprep.subr.mxu0 0.0
    %1308 = vmatpush1.msra.mxu0 0.0
    %1309 = vmatprep.subr.mxu0 0.0
    %1310 = vmatpush1.msra.mxu0 0.0
    %1311 = vmatprep.subr.mxu0 0.0
    %1312 = vmatpush1.msra.mxu0 0.0
    %1313 = vmatprep.subr.mxu0 0.0
    %1314 = vmatpush1.msra.mxu0 0.0
    %1315 = vmatprep.subr.mxu0 0.0
    %1316 = vmatpush1.msra.mxu0 0.0
    %1317 = vmatprep.subr.mxu0 0.0
    %1318 = vmatpush1.msra.mxu0 0.0
    %1319 = vmatprep.subr.mxu0 0.0
    %1320 = vmatpush1.msra.mxu0 0.0
    %1321 = vmatprep.subr.mxu0 0.0
    %1322 = vmatpush1.msra.mxu0 0.0
    %1323 = vmatprep.subr.mxu0 0.0
    %1324 = vmatpush1.msra.mxu0 0.0
    %1325 = vmatprep.subr.mxu0 0.0
    %1326 = vmatpush1.msra.mxu0 0.0
    %1327 = vmatprep.subr.mxu0 0.0
    %1328 = vmatpush1.msra.mxu0 0.0
    %1329 = vmatprep.subr.mxu0 0.0
    %1330 = vmatpush1.msra.mxu0 0.0
    %1331 = vmatprep.subr.mxu0 0.0
    %1332 = vmatpush1.msra.mxu0 0.0
    %1333 = vmatprep.subr.mxu0 0.0
    %1334 = vmatpush1.msra.mxu0 0.0
    %1335 = vmatprep.subr.mxu0 0.0
    %1336 = vmatpush1.msra.mxu0 0.0
    %1337 = vmatprep.subr.mxu0 0.0
    %1338 = vmatpush1.msra.mxu0 0.0
    %1339 = vmatprep.subr.mxu0 0.0
    %1340 = vmatpush1.msra.mxu0 0.0
    %1341 = vmatprep.subr.mxu0 0.0
    %1342 = vmatpush1.msra.mxu0 0.0
    %1343 = vmatprep.subr.mxu0 0.0
    %1344 = vmatpush1.msra.mxu0 0.0
    %1345 = vmatprep.subr.mxu0 0.0
    %1346 = vmatpush1.msra.mxu0 0.0
    %1347 = vmatprep.subr.mxu0 0.0
    %1348 = vmatpush1.msra.mxu0 0.0
    %1349 = vmatprep.subr.mxu0 0.0
    %1350 = vmatpush1.msra.mxu0 0.0
    %1351 = vmatprep.subr.mxu0 0.0
    %1352 = vmatpush1.msra.mxu0 0.0
    %1353 = vmatprep.subr.mxu0 0.0
    %1354 = vmatpush1.msra.mxu0 0.0
    %1355 = vmatprep.mubr.f32.mxu0 0.0
    %v1356 = vand.u32 %v986, 4294901760
    %1357 = vmatmul.mubr.f32.gmra.mrb[0].mxu0 %v1356
    %v1358 = vpop.f32.mrb[0].mxu0
    %v1359 = vadd.f32 %v1285, %v1358
    %v1360 = vpop.f32.mrb[0].mxu0
    %1361 = vdwg.mxu0
    %1362 = vmatprep.subr.mxu0 0.0
    %v1363 = vand.u32 %v72, 4294901760
    %1364 = vmatpush1.msra.mxu0 %v1363
    %1365 = vmatprep.subr.mxu0 0.0
    %1366 = vmatpush1.msra.mxu0 0.0
    %1367 = vmatprep.subr.mxu0 0.0
    %1368 = vmatpush1.msra.mxu0 0.0
    %1369 = vmatprep.subr.mxu0 0.0
    %1370 = vmatpush1.msra.mxu0 0.0
    %1371 = vmatprep.subr.mxu0 0.0
    %1372 = vmatpush1.msra.mxu0 0.0
    %1373 = vmatprep.subr.mxu0 0.0
    %1374 = vmatpush1.msra.mxu0 0.0
    %1375 = vmatprep.subr.mxu0 0.0
    %1376 = vmatpush1.msra.mxu0 0.0
    %1377 = vmatprep.subr.mxu0 0.0
    %1378 = vmatpush1.msra.mxu0 0.0
    %1379 = vmatprep.subr.mxu0 0.0
    %1380 = vmatpush1.msra.mxu0 0.0
    %1381 = vmatprep.subr.mxu0 0.0
    %1382 = vmatpush1.msra.mxu0 0.0
    %1383 = vmatprep.subr.mxu0 0.0
    %1384 = vmatpush1.msra.mxu0 0.0
    %1385 = vmatprep.subr.mxu0 0.0
    %1386 = vmatpush1.msra.mxu0 0.0
    %1387 = vmatprep.subr.mxu0 0.0
    %1388 = vmatpush1.msra.mxu0 0.0
    %1389 = vmatprep.subr.mxu0 0.0
    %1390 = vmatpush1.msra.mxu0 0.0
    %1391 = vmatprep.subr.mxu0 0.0
    %1392 = vmatpush1.msra.mxu0 0.0
    %1393 = vmatprep.subr.mxu0 0.0
    %1394 = vmatpush1.msra.mxu0 0.0
    %1395 = vmatprep.subr.mxu0 0.0
    %1396 = vmatpush1.msra.mxu0 0.0
    %1397 = vmatprep.subr.mxu0 0.0
    %1398 = vmatpush1.msra.mxu0 0.0
    %1399 = vmatprep.subr.mxu0 0.0
    %1400 = vmatpush1.msra.mxu0 0.0
    %1401 = vmatprep.subr.mxu0 0.0
    %1402 = vmatpush1.msra.mxu0 0.0
    %1403 = vmatprep.subr.mxu0 0.0
    %1404 = vmatpush1.msra.mxu0 0.0
    %1405 = vmatprep.subr.mxu0 0.0
    %1406 = vmatpush1.msra.mxu0 0.0
    %1407 = vmatprep.subr.mxu0 0.0
    %1408 = vmatpush1.msra.mxu0 0.0
    %1409 = vmatprep.subr.mxu0 0.0
    %1410 = vmatpush1.msra.mxu0 0.0
    %1411 = vmatprep.subr.mxu0 0.0
    %1412 = vmatpush1.msra.mxu0 0.0
    %1413 = vmatprep.subr.mxu0 0.0
    %1414 = vmatpush1.msra.mxu0 0.0
    %1415 = vmatprep.subr.mxu0 0.0
    %1416 = vmatpush1.msra.mxu0 0.0
    %1417 = vmatprep.subr.mxu0 0.0
    %1418 = vmatpush1.msra.mxu0 0.0
    %1419 = vmatprep.subr.mxu0 0.0
    %1420 = vmatpush1.msra.mxu0 0.0
    %1421 = vmatprep.subr.mxu0 0.0
    %1422 = vmatpush1.msra.mxu0 0.0
    %1423 = vmatprep.subr.mxu0 0.0
    %1424 = vmatpush1.msra.mxu0 0.0
    %1425 = vmatprep.subr.mxu0 0.0
    %1426 = vmatpush1.msra.mxu0 0.0
    %1427 = vmatprep.mubr.f32.mxu0 0.0
    %v1428 = vand.u32 %v986, 4294901760
    %1429 = vmatmul.mubr.f32.gmra.mrb[0].mxu0 %v1428
    %v1430 = vpop.f32.mrb[0].mxu0
    %v1431 = vadd.f32 %v1359, %v1430
    %v1432 = vpop.f32.mrb[0].mxu0
    %1433 = vdwg.mxu0
    %v1435 = vsel %vm86, %v65, 0
    %1437 = vmatprep.subr.mxu0 0.0
    %v1438 = vand.u32 %v73, 4294901760
    %1439 = vmatpush1.msra.mxu0 %v1438
    %1440 = vmatprep.subr.mxu0 0.0
    %1441 = vmatpush1.msra.mxu0 0.0
    %1442 = vmatprep.subr.mxu0 0.0
    %1443 = vmatpush1.msra.mxu0 0.0
    %1444 = vmatprep.subr.mxu0 0.0
    %1445 = vmatpush1.msra.mxu0 0.0
    %1446 = vmatprep.subr.mxu0 0.0
    %1447 = vmatpush1.msra.mxu0 0.0
    %1448 = vmatprep.subr.mxu0 0.0
    %1449 = vmatpush1.msra.mxu0 0.0
    %1450 = vmatprep.subr.mxu0 0.0
    %1451 = vmatpush1.msra.mxu0 0.0
    %1452 = vmatprep.subr.mxu0 0.0
    %1453 = vmatpush1.msra.mxu0 0.0
    %1454 = vmatprep.subr.mxu0 0.0
    %1455 = vmatpush1.msra.mxu0 0.0
    %1456 = vmatprep.subr.mxu0 0.0
    %1457 = vmatpush1.msra.mxu0 0.0
    %1458 = vmatprep.subr.mxu0 0.0
    %1459 = vmatpush1.msra.mxu0 0.0
    %1460 = vmatprep.subr.mxu0 0.0
    %1461 = vmatpush1.msra.mxu0 0.0
    %1462 = vmatprep.subr.mxu0 0.0
    %1463 = vmatpush1.msra.mxu0 0.0
    %1464 = vmatprep.subr.mxu0 0.0
    %1465 = vmatpush1.msra.mxu0 0.0
    %1466 = vmatprep.subr.mxu0 0.0
    %1467 = vmatpush1.msra.mxu0 0.0
    %1468 = vmatprep.subr.mxu0 0.0
    %1469 = vmatpush1.msra.mxu0 0.0
    %1470 = vmatprep.subr.mxu0 0.0
    %1471 = vmatpush1.msra.mxu0 0.0
    %1472 = vmatprep.subr.mxu0 0.0
    %1473 = vmatpush1.msra.mxu0 0.0
    %1474 = vmatprep.subr.mxu0 0.0
    %1475 = vmatpush1.msra.mxu0 0.0
    %1476 = vmatprep.subr.mxu0 0.0
    %1477 = vmatpush1.msra.mxu0 0.0
    %1478 = vmatprep.subr.mxu0 0.0
    %1479 = vmatpush1.msra.mxu0 0.0
    %1480 = vmatprep.subr.mxu0 0.0
    %1481 = vmatpush1.msra.mxu0 0.0
    %1482 = vmatprep.subr.mxu0 0.0
    %1483 = vmatpush1.msra.mxu0 0.0
    %1484 = vmatprep.subr.mxu0 0.0
    %1485 = vmatpush1.msra.mxu0 0.0
    %1486 = vmatprep.subr.mxu0 0.0
    %1487 = vmatpush1.msra.mxu0 0.0
    %1488 = vmatprep.subr.mxu0 0.0
    %1489 = vmatpush1.msra.mxu0 0.0
    %1490 = vmatprep.subr.mxu0 0.0
    %1491 = vmatpush1.msra.mxu0 0.0
    %1492 = vmatprep.subr.mxu0 0.0
    %1493 = vmatpush1.msra.mxu0 0.0
    %1494 = vmatprep.subr.mxu0 0.0
    %1495 = vmatpush1.msra.mxu0 0.0
    %1496 = vmatprep.subr.mxu0 0.0
    %1497 = vmatpush1.msra.mxu0 0.0
    %1498 = vmatprep.subr.mxu0 0.0
    %1499 = vmatpush1.msra.mxu0 0.0
    %1500 = vmatprep.subr.mxu0 0.0
    %1501 = vmatpush1.msra.mxu0 0.0
    %1502 = vmatprep.mubr.f32.mxu0 0.0
    %v1503 = vand.u32 %v1435, 4294901760
    %v1504 = vsub.f32 %v1435, %v1503
    %v1505 = vand.u32 %v1504, 4294901760
    %v1506 = vsub.f32 %v1504, %v1505
    %v1507 = vand.u32 %v1506, 4294901760
    %1508 = vmatmul.mubr.f32.gmra.mrb[0].mxu0 %v1507
    %v1509 = vpop.f32.mrb[0].mxu0
    %v1510 = vadd.f32 0.0, %v1509
    %v1511 = vpop.f32.mrb[0].mxu0
    %1512 = vdwg.mxu0
    %1513 = vmatprep.subr.mxu0 0.0
    %v1514 = vand.u32 %v73, 4294901760
    %v1515 = vsub.f32 %v73, %v1514
    %v1516 = vand.u32 %v1515, 4294901760
    %v1517 = vsub.f32 %v1515, %v1516
    %v1518 = vand.u32 %v1517, 4294901760
    %1519 = vmatpush1.msra.mxu0 %v1518
    %1520 = vmatprep.subr.mxu0 0.0
    %1521 = vmatpush1.msra.mxu0 0.0
    %1522 = vmatprep.subr.mxu0 0.0
    %1523 = vmatpush1.msra.mxu0 0.0
    %1524 = vmatprep.subr.mxu0 0.0
    %1525 = vmatpush1.msra.mxu0 0.0
    %1526 = vmatprep.subr.mxu0 0.0
    %1527 = vmatpush1.msra.mxu0 0.0
    %1528 = vmatprep.subr.mxu0 0.0
    %1529 = vmatpush1.msra.mxu0 0.0
    %1530 = vmatprep.subr.mxu0 0.0
    %1531 = vmatpush1.msra.mxu0 0.0
    %1532 = vmatprep.subr.mxu0 0.0
    %1533 = vmatpush1.msra.mxu0 0.0
    %1534 = vmatprep.subr.mxu0 0.0
    %1535 = vmatpush1.msra.mxu0 0.0
    %1536 = vmatprep.subr.mxu0 0.0
    %1537 = vmatpush1.msra.mxu0 0.0
    %1538 = vmatprep.subr.mxu0 0.0
    %1539 = vmatpush1.msra.mxu0 0.0
    %1540 = vmatprep.subr.mxu0 0.0
    %1541 = vmatpush1.msra.mxu0 0.0
    %1542 = vmatprep.subr.mxu0 0.0
    %1543 = vmatpush1.msra.mxu0 0.0
    %1544 = vmatprep.subr.mxu0 0.0
    %1545 = vmatpush1.msra.mxu0 0.0
    %1546 = vmatprep.subr.mxu0 0.0
    %1547 = vmatpush1.msra.mxu0 0.0
    %1548 = vmatprep.subr.mxu0 0.0
    %1549 = vmatpush1.msra.mxu0 0.0
    %1550 = vmatprep.subr.mxu0 0.0
    %1551 = vmatpush1.msra.mxu0 0.0
    %1552 = vmatprep.subr.mxu0 0.0
    %1553 = vmatpush1.msra.mxu0 0.0
    %1554 = vmatprep.subr.mxu0 0.0
    %1555 = vmatpush1.msra.mxu0 0.0
    %1556 = vmatprep.subr.mxu0 0.0
    %1557 = vmatpush1.msra.mxu0 0.0
    %1558 = vmatprep.subr.mxu0 0.0
    %1559 = vmatpush1.msra.mxu0 0.0
    %1560 = vmatprep.subr.mxu0 0.0
    %1561 = vmatpush1.msra.mxu0 0.0
    %1562 = vmatprep.subr.mxu0 0.0
    %1563 = vmatpush1.msra.mxu0 0.0
    %1564 = vmatprep.subr.mxu0 0.0
    %1565 = vmatpush1.msra.mxu0 0.0
    %1566 = vmatprep.subr.mxu0 0.0
    %1567 = vmatpush1.msra.mxu0 0.0
    %1568 = vmatprep.subr.mxu0 0.0
    %1569 = vmatpush1.msra.mxu0 0.0
    %1570 = vmatprep.subr.mxu0 0.0
    %1571 = vmatpush1.msra.mxu0 0.0
    %1572 = vmatprep.subr.mxu0 0.0
    %1573 = vmatpush1.msra.mxu0 0.0
    %1574 = vmatprep.subr.mxu0 0.0
    %1575 = vmatpush1.msra.mxu0 0.0
    %1576 = vmatprep.subr.mxu0 0.0
    %1577 = vmatpush1.msra.mxu0 0.0
    %1578 = vmatprep.subr.mxu0 0.0
    %1579 = vmatpush1.msra.mxu0 0.0
    %1580 = vmatprep.subr.mxu0 0.0
    %1581 = vmatpush1.msra.mxu0 0.0
    %1582 = vmatprep.mubr.f32.mxu0 0.0
    %v1583 = vand.u32 %v1435, 4294901760
    %1584 = vmatmul.mubr.f32.gmra.mrb[0].mxu0 %v1583
    %v1585 = vpop.f32.mrb[0].mxu0
    %v1586 = vadd.f32 %v1510, %v1585
    %v1587 = vpop.f32.mrb[0].mxu0
    %1588 = vdwg.mxu0
    %1589 = vmatprep.subr.mxu0 0.0
    %v1590 = vand.u32 %v73, 4294901760
    %v1591 = vsub.f32 %v73, %v1590
    %1592 = vmatpush1.msra.mxu0 %v1591
    %1593 = vmatprep.subr.mxu0 0.0
    %1594 = vmatpush1.msra.mxu0 0.0
    %1595 = vmatprep.subr.mxu0 0.0
    %1596 = vmatpush1.msra.mxu0 0.0
    %1597 = vmatprep.subr.mxu0 0.0
    %1598 = vmatpush1.msra.mxu0 0.0
    %1599 = vmatprep.subr.mxu0 0.0
    %1600 = vmatpush1.msra.mxu0 0.0
    %1601 = vmatprep.subr.mxu0 0.0
    %1602 = vmatpush1.msra.mxu0 0.0
    %1603 = vmatprep.subr.mxu0 0.0
    %1604 = vmatpush1.msra.mxu0 0.0
    %1605 = vmatprep.subr.mxu0 0.0
    %1606 = vmatpush1.msra.mxu0 0.0
    %1607 = vmatprep.subr.mxu0 0.0
    %1608 = vmatpush1.msra.mxu0 0.0
    %1609 = vmatprep.subr.mxu0 0.0
    %1610 = vmatpush1.msra.mxu0 0.0
    %1611 = vmatprep.subr.mxu0 0.0
    %1612 = vmatpush1.msra.mxu0 0.0
    %1613 = vmatprep.subr.mxu0 0.0
    %1614 = vmatpush1.msra.mxu0 0.0
    %1615 = vmatprep.subr.mxu0 0.0
    %1616 = vmatpush1.msra.mxu0 0.0
    %1617 = vmatprep.subr.mxu0 0.0
    %1618 = vmatpush1.msra.mxu0 0.0
    %1619 = vmatprep.subr.mxu0 0.0
    %1620 = vmatpush1.msra.mxu0 0.0
    %1621 = vmatprep.subr.mxu0 0.0
    %1622 = vmatpush1.msra.mxu0 0.0
    %1623 = vmatprep.subr.mxu0 0.0
    %1624 = vmatpush1.msra.mxu0 0.0
    %1625 = vmatprep.subr.mxu0 0.0
    %1626 = vmatpush1.msra.mxu0 0.0
    %1627 = vmatprep.subr.mxu0 0.0
    %1628 = vmatpush1.msra.mxu0 0.0
    %1629 = vmatprep.subr.mxu0 0.0
    %1630 = vmatpush1.msra.mxu0 0.0
    %1631 = vmatprep.subr.mxu0 0.0
    %1632 = vmatpush1.msra.mxu0 0.0
    %1633 = vmatprep.subr.mxu0 0.0
    %1634 = vmatpush1.msra.mxu0 0.0
    %1635 = vmatprep.subr.mxu0 0.0
    %1636 = vmatpush1.msra.mxu0 0.0
    %1637 = vmatprep.subr.mxu0 0.0
    %1638 = vmatpush1.msra.mxu0 0.0
    %1639 = vmatprep.subr.mxu0 0.0
    %1640 = vmatpush1.msra.mxu0 0.0
    %1641 = vmatprep.subr.mxu0 0.0
    %1642 = vmatpush1.msra.mxu0 0.0
    %1643 = vmatprep.subr.mxu0 0.0
    %1644 = vmatpush1.msra.mxu0 0.0
    %1645 = vmatprep.subr.mxu0 0.0
    %1646 = vmatpush1.msra.mxu0 0.0
    %1647 = vmatprep.subr.mxu0 0.0
    %1648 = vmatpush1.msra.mxu0 0.0
    %1649 = vmatprep.subr.mxu0 0.0
    %1650 = vmatpush1.msra.mxu0 0.0
    %1651 = vmatprep.subr.mxu0 0.0
    %1652 = vmatpush1.msra.mxu0 0.0
    %1653 = vmatprep.subr.mxu0 0.0
    %1654 = vmatpush1.msra.mxu0 0.0
    %1655 = vmatprep.mubr.f32.mxu0 0.0
    %v1656 = vand.u32 %v1435, 4294901760
    %v1657 = vsub.f32 %v1435, %v1656
    %1658 = vmatmul.mubr.f32.gmra.mrb[0].mxu0 %v1657
    %v1659 = vpop.f32.mrb[0].mxu0
    %v1660 = vadd.f32 %v1586, %v1659
    %v1661 = vpop.f32.mrb[0].mxu0
    %1662 = vdwg.mxu0
    %1663 = vmatprep.subr.mxu0 0.0
    %v1664 = vand.u32 %v73, 4294901760
    %1665 = vmatpush1.msra.mxu0 %v1664
    %1666 = vmatprep.subr.mxu0 0.0
    %1667 = vmatpush1.msra.mxu0 0.0
    %1668 = vmatprep.subr.mxu0 0.0
    %1669 = vmatpush1.msra.mxu0 0.0
    %1670 = vmatprep.subr.mxu0 0.0
    %1671 = vmatpush1.msra.mxu0 0.0
    %1672 = vmatprep.subr.mxu0 0.0
    %1673 = vmatpush1.msra.mxu0 0.0
    %1674 = vmatprep.subr.mxu0 0.0
    %1675 = vmatpush1.msra.mxu0 0.0
    %1676 = vmatprep.subr.mxu0 0.0
    %1677 = vmatpush1.msra.mxu0 0.0
    %1678 = vmatprep.subr.mxu0 0.0
    %1679 = vmatpush1.msra.mxu0 0.0
    %1680 = vmatprep.subr.mxu0 0.0
    %1681 = vmatpush1.msra.mxu0 0.0
    %1682 = vmatprep.subr.mxu0 0.0
    %1683 = vmatpush1.msra.mxu0 0.0
    %1684 = vmatprep.subr.mxu0 0.0
    %1685 = vmatpush1.msra.mxu0 0.0
    %1686 = vmatprep.subr.mxu0 0.0
    %1687 = vmatpush1.msra.mxu0 0.0
    %1688 = vmatprep.subr.mxu0 0.0
    %1689 = vmatpush1.msra.mxu0 0.0
    %1690 = vmatprep.subr.mxu0 0.0
    %1691 = vmatpush1.msra.mxu0 0.0
    %1692 = vmatprep.subr.mxu0 0.0
    %1693 = vmatpush1.msra.mxu0 0.0
    %1694 = vmatprep.subr.mxu0 0.0
    %1695 = vmatpush1.msra.mxu0 0.0
    %1696 = vmatprep.subr.mxu0 0.0
    %1697 = vmatpush1.msra.mxu0 0.0
    %1698 = vmatprep.subr.mxu0 0.0
    %1699 = vmatpush1.msra.mxu0 0.0
    %1700 = vmatprep.subr.mxu0 0.0
    %1701 = vmatpush1.msra.mxu0 0.0
    %1702 = vmatprep.subr.mxu0 0.0
    %1703 = vmatpush1.msra.mxu0 0.0
    %1704 = vmatprep.subr.mxu0 0.0
    %1705 = vmatpush1.msra.mxu0 0.0
    %1706 = vmatprep.subr.mxu0 0.0
    %1707 = vmatpush1.msra.mxu0 0.0
    %1708 = vmatprep.subr.mxu0 0.0
    %1709 = vmatpush1.msra.mxu0 0.0
    %1710 = vmatprep.subr.mxu0 0.0
    %1711 = vmatpush1.msra.mxu0 0.0
    %1712 = vmatprep.subr.mxu0 0.0
    %1713 = vmatpush1.msra.mxu0 0.0
    %1714 = vmatprep.subr.mxu0 0.0
    %1715 = vmatpush1.msra.mxu0 0.0
    %1716 = vmatprep.subr.mxu0 0.0
    %1717 = vmatpush1.msra.mxu0 0.0
    %1718 = vmatprep.subr.mxu0 0.0
    %1719 = vmatpush1.msra.mxu0 0.0
    %1720 = vmatprep.subr.mxu0 0.0
    %1721 = vmatpush1.msra.mxu0 0.0
    %1722 = vmatprep.subr.mxu0 0.0
    %1723 = vmatpush1.msra.mxu0 0.0
    %1724 = vmatprep.subr.mxu0 0.0
    %1725 = vmatpush1.msra.mxu0 0.0
    %1726 = vmatprep.subr.mxu0 0.0
    %1727 = vmatpush1.msra.mxu0 0.0
    %1728 = vmatprep.mubr.f32.mxu0 0.0
    %v1729 = vand.u32 %v1435, 4294901760
    %v1730 = vsub.f32 %v1435, %v1729
    %v1731 = vand.u32 %v1730, 4294901760
    %1732 = vmatmul.mubr.f32.gmra.mrb[0].mxu0 %v1731
    %v1733 = vpop.f32.mrb[0].mxu0
    %v1734 = vadd.f32 %v1660, %v1733
    %v1735 = vpop.f32.mrb[0].mxu0
    %1736 = vdwg.mxu0
    %1737 = vmatprep.subr.mxu0 0.0
    %v1738 = vand.u32 %v73, 4294901760
    %v1739 = vsub.f32 %v73, %v1738
    %v1740 = vand.u32 %v1739, 4294901760
    %1741 = vmatpush1.msra.mxu0 %v1740
    %1742 = vmatprep.subr.mxu0 0.0
    %1743 = vmatpush1.msra.mxu0 0.0
    %1744 = vmatprep.subr.mxu0 0.0
    %1745 = vmatpush1.msra.mxu0 0.0
    %1746 = vmatprep.subr.mxu0 0.0
    %1747 = vmatpush1.msra.mxu0 0.0
    %1748 = vmatprep.subr.mxu0 0.0
    %1749 = vmatpush1.msra.mxu0 0.0
    %1750 = vmatprep.subr.mxu0 0.0
    %1751 = vmatpush1.msra.mxu0 0.0
    %1752 = vmatprep.subr.mxu0 0.0
    %1753 = vmatpush1.msra.mxu0 0.0
    %1754 = vmatprep.subr.mxu0 0.0
    %1755 = vmatpush1.msra.mxu0 0.0
    %1756 = vmatprep.subr.mxu0 0.0
    %1757 = vmatpush1.msra.mxu0 0.0
    %1758 = vmatprep.subr.mxu0 0.0
    %1759 = vmatpush1.msra.mxu0 0.0
    %1760 = vmatprep.subr.mxu0 0.0
    %1761 = vmatpush1.msra.mxu0 0.0
    %1762 = vmatprep.subr.mxu0 0.0
    %1763 = vmatpush1.msra.mxu0 0.0
    %1764 = vmatprep.subr.mxu0 0.0
    %1765 = vmatpush1.msra.mxu0 0.0
    %1766 = vmatprep.subr.mxu0 0.0
    %1767 = vmatpush1.msra.mxu0 0.0
    %1768 = vmatprep.subr.mxu0 0.0
    %1769 = vmatpush1.msra.mxu0 0.0
    %1770 = vmatprep.subr.mxu0 0.0
    %1771 = vmatpush1.msra.mxu0 0.0
    %1772 = vmatprep.subr.mxu0 0.0
    %1773 = vmatpush1.msra.mxu0 0.0
    %1774 = vmatprep.subr.mxu0 0.0
    %1775 = vmatpush1.msra.mxu0 0.0
    %1776 = vmatprep.subr.mxu0 0.0
    %1777 = vmatpush1.msra.mxu0 0.0
    %1778 = vmatprep.subr.mxu0 0.0
    %1779 = vmatpush1.msra.mxu0 0.0
    %1780 = vmatprep.subr.mxu0 0.0
    %1781 = vmatpush1.msra.mxu0 0.0
    %1782 = vmatprep.subr.mxu0 0.0
    %1783 = vmatpush1.msra.mxu0 0.0
    %1784 = vmatprep.subr.mxu0 0.0
    %1785 = vmatpush1.msra.mxu0 0.0
    %1786 = vmatprep.subr.mxu0 0.0
    %1787 = vmatpush1.msra.mxu0 0.0
    %1788 = vmatprep.subr.mxu0 0.0
    %1789 = vmatpush1.msra.mxu0 0.0
    %1790 = vmatprep.subr.mxu0 0.0
    %1791 = vmatpush1.msra.mxu0 0.0
    %1792 = vmatprep.subr.mxu0 0.0
    %1793 = vmatpush1.msra.mxu0 0.0
    %1794 = vmatprep.subr.mxu0 0.0
    %1795 = vmatpush1.msra.mxu0 0.0
    %1796 = vmatprep.subr.mxu0 0.0
    %1797 = vmatpush1.msra.mxu0 0.0
    %1798 = vmatprep.subr.mxu0 0.0
    %1799 = vmatpush1.msra.mxu0 0.0
    %1800 = vmatprep.subr.mxu0 0.0
    %1801 = vmatpush1.msra.mxu0 0.0
    %1802 = vmatprep.subr.mxu0 0.0
    %1803 = vmatpush1.msra.mxu0 0.0
    %1804 = vmatprep.mubr.f32.mxu0 0.0
    %v1805 = vand.u32 %v1435, 4294901760
    %1806 = vmatmul.mubr.f32.gmra.mrb[0].mxu0 %v1805
    %v1807 = vpop.f32.mrb[0].mxu0
    %v1808 = vadd.f32 %v1734, %v1807
    %v1809 = vpop.f32.mrb[0].mxu0
    %1810 = vdwg.mxu0
    %1811 = vmatprep.subr.mxu0 0.0
    %v1812 = vand.u32 %v73, 4294901760
    %1813 = vmatpush1.msra.mxu0 %v1812
    %1814 = vmatprep.subr.mxu0 0.0
    %1815 = vmatpush1.msra.mxu0 0.0
    %1816 = vmatprep.subr.mxu0 0.0
    %1817 = vmatpush1.msra.mxu0 0.0
    %1818 = vmatprep.subr.mxu0 0.0
    %1819 = vmatpush1.msra.mxu0 0.0
    %1820 = vmatprep.subr.mxu0 0.0
    %1821 = vmatpush1.msra.mxu0 0.0
    %1822 = vmatprep.subr.mxu0 0.0
    %1823 = vmatpush1.msra.mxu0 0.0
    %1824 = vmatprep.subr.mxu0 0.0
    %1825 = vmatpush1.msra.mxu0 0.0
    %1826 = vmatprep.subr.mxu0 0.0
    %1827 = vmatpush1.msra.mxu0 0.0
    %1828 = vmatprep.subr.mxu0 0.0
    %1829 = vmatpush1.msra.mxu0 0.0
    %1830 = vmatprep.subr.mxu0 0.0
    %1831 = vmatpush1.msra.mxu0 0.0
    %1832 = vmatprep.subr.mxu0 0.0
    %1833 = vmatpush1.msra.mxu0 0.0
    %1834 = vmatprep.subr.mxu0 0.0
    %1835 = vmatpush1.msra.mxu0 0.0
    %1836 = vmatprep.subr.mxu0 0.0
    %1837 = vmatpush1.msra.mxu0 0.0
    %1838 = vmatprep.subr.mxu0 0.0
    %1839 = vmatpush1.msra.mxu0 0.0
    %1840 = vmatprep.subr.mxu0 0.0
    %1841 = vmatpush1.msra.mxu0 0.0
    %1842 = vmatprep.subr.mxu0 0.0
    %1843 = vmatpush1.msra.mxu0 0.0
    %1844 = vmatprep.subr.mxu0 0.0
    %1845 = vmatpush1.msra.mxu0 0.0
    %1846 = vmatprep.subr.mxu0 0.0
    %1847 = vmatpush1.msra.mxu0 0.0
    %1848 = vmatprep.subr.mxu0 0.0
    %1849 = vmatpush1.msra.mxu0 0.0
    %1850 = vmatprep.subr.mxu0 0.0
    %1851 = vmatpush1.msra.mxu0 0.0
    %1852 = vmatprep.subr.mxu0 0.0
    %1853 = vmatpush1.msra.mxu0 0.0
    %1854 = vmatprep.subr.mxu0 0.0
    %1855 = vmatpush1.msra.mxu0 0.0
    %1856 = vmatprep.subr.mxu0 0.0
    %1857 = vmatpush1.msra.mxu0 0.0
    %1858 = vmatprep.subr.mxu0 0.0
    %1859 = vmatpush1.msra.mxu0 0.0
    %1860 = vmatprep.subr.mxu0 0.0
    %1861 = vmatpush1.msra.mxu0 0.0
    %1862 = vmatprep.subr.mxu0 0.0
    %1863 = vmatpush1.msra.mxu0 0.0
    %1864 = vmatprep.subr.mxu0 0.0
    %1865 = vmatpush1.msra.mxu0 0.0
    %1866 = vmatprep.subr.mxu0 0.0
    %1867 = vmatpush1.msra.mxu0 0.0
    %1868 = vmatprep.subr.mxu0 0.0
    %1869 = vmatpush1.msra.mxu0 0.0
    %1870 = vmatprep.subr.mxu0 0.0
    %1871 = vmatpush1.msra.mxu0 0.0
    %1872 = vmatprep.subr.mxu0 0.0
    %1873 = vmatpush1.msra.mxu0 0.0
    %1874 = vmatprep.subr.mxu0 0.0
    %1875 = vmatpush1.msra.mxu0 0.0
    %1876 = vmatprep.mubr.f32.mxu0 0.0
    %v1877 = vand.u32 %v1435, 4294901760
    %1878 = vmatmul.mubr.f32.gmra.mrb[0].mxu0 %v1877
    %v1879 = vpop.f32.mrb[0].mxu0
    %v1880 = vadd.f32 %v1808, %v1879
    %v1881 = vpop.f32.mrb[0].mxu0
    %1882 = vdwg.mxu0
    %v1884 = vsel %vm86, %v66, 0
    %1886 = vmatprep.subr.mxu0 0.0
    %v1887 = vand.u32 %v74, 4294901760
    %1888 = vmatpush1.msra.mxu0 %v1887
    %1889 = vmatprep.subr.mxu0 0.0
    %1890 = vmatpush1.msra.mxu0 0.0
    %1891 = vmatprep.subr.mxu0 0.0
    %1892 = vmatpush1.msra.mxu0 0.0
    %1893 = vmatprep.subr.mxu0 0.0
    %1894 = vmatpush1.msra.mxu0 0.0
    %1895 = vmatprep.subr.mxu0 0.0
    %1896 = vmatpush1.msra.mxu0 0.0
    %1897 = vmatprep.subr.mxu0 0.0
    %1898 = vmatpush1.msra.mxu0 0.0
    %1899 = vmatprep.subr.mxu0 0.0
    %1900 = vmatpush1.msra.mxu0 0.0
    %1901 = vmatprep.subr.mxu0 0.0
    %1902 = vmatpush1.msra.mxu0 0.0
    %1903 = vmatprep.subr.mxu0 0.0
    %1904 = vmatpush1.msra.mxu0 0.0
    %1905 = vmatprep.subr.mxu0 0.0
    %1906 = vmatpush1.msra.mxu0 0.0
    %1907 = vmatprep.subr.mxu0 0.0
    %1908 = vmatpush1.msra.mxu0 0.0
    %1909 = vmatprep.subr.mxu0 0.0
    %1910 = vmatpush1.msra.mxu0 0.0
    %1911 = vmatprep.subr.mxu0 0.0
    %1912 = vmatpush1.msra.mxu0 0.0
    %1913 = vmatprep.subr.mxu0 0.0
    %1914 = vmatpush1.msra.mxu0 0.0
    %1915 = vmatprep.subr.mxu0 0.0
    %1916 = vmatpush1.msra.mxu0 0.0
    %1917 = vmatprep.subr.mxu0 0.0
    %1918 = vmatpush1.msra.mxu0 0.0
    %1919 = vmatprep.subr.mxu0 0.0
    %1920 = vmatpush1.msra.mxu0 0.0
    %1921 = vmatprep.subr.mxu0 0.0
    %1922 = vmatpush1.msra.mxu0 0.0
    %1923 = vmatprep.subr.mxu0 0.0
    %1924 = vmatpush1.msra.mxu0 0.0
    %1925 = vmatprep.subr.mxu0 0.0
    %1926 = vmatpush1.msra.mxu0 0.0
    %1927 = vmatprep.subr.mxu0 0.0
    %1928 = vmatpush1.msra.mxu0 0.0
    %1929 = vmatprep.subr.mxu0 0.0
    %1930 = vmatpush1.msra.mxu0 0.0
    %1931 = vmatprep.subr.mxu0 0.0
    %1932 = vmatpush1.msra.mxu0 0.0
    %1933 = vmatprep.subr.mxu0 0.0
    %1934 = vmatpush1.msra.mxu0 0.0
    %1935 = vmatprep.subr.mxu0 0.0
    %1936 = vmatpush1.msra.mxu0 0.0
    %1937 = vmatprep.subr.mxu0 0.0
    %1938 = vmatpush1.msra.mxu0 0.0
    %1939 = vmatprep.subr.mxu0 0.0
    %1940 = vmatpush1.msra.mxu0 0.0
    %1941 = vmatprep.subr.mxu0 0.0
    %1942 = vmatpush1.msra.mxu0 0.0
    %1943 = vmatprep.subr.mxu0 0.0
    %1944 = vmatpush1.msra.mxu0 0.0
    %1945 = vmatprep.subr.mxu0 0.0
    %1946 = vmatpush1.msra.mxu0 0.0
    %1947 = vmatprep.subr.mxu0 0.0
    %1948 = vmatpush1.msra.mxu0 0.0
    %1949 = vmatprep.subr.mxu0 0.0
    %1950 = vmatpush1.msra.mxu0 0.0
    %1951 = vmatprep.mubr.f32.mxu0 0.0
    %v1952 = vand.u32 %v1884, 4294901760
    %v1953 = vsub.f32 %v1884, %v1952
    %v1954 = vand.u32 %v1953, 4294901760
    %v1955 = vsub.f32 %v1953, %v1954
    %v1956 = vand.u32 %v1955, 4294901760
    %1957 = vmatmul.mubr.f32.gmra.mrb[0].mxu0 %v1956
    %v1958 = vpop.f32.mrb[0].mxu0
    %v1959 = vadd.f32 0.0, %v1958
    %v1960 = vpop.f32.mrb[0].mxu0
    %1961 = vdwg.mxu0
    %1962 = vmatprep.subr.mxu0 0.0
    %v1963 = vand.u32 %v74, 4294901760
    %v1964 = vsub.f32 %v74, %v1963
    %v1965 = vand.u32 %v1964, 4294901760
    %v1966 = vsub.f32 %v1964, %v1965
    %v1967 = vand.u32 %v1966, 4294901760
    %1968 = vmatpush1.msra.mxu0 %v1967
    %1969 = vmatprep.subr.mxu0 0.0
    %1970 = vmatpush1.msra.mxu0 0.0
    %1971 = vmatprep.subr.mxu0 0.0
    %1972 = vmatpush1.msra.mxu0 0.0
    %1973 = vmatprep.subr.mxu0 0.0
    %1974 = vmatpush1.msra.mxu0 0.0
    %1975 = vmatprep.subr.mxu0 0.0
    %1976 = vmatpush1.msra.mxu0 0.0
    %1977 = vmatprep.subr.mxu0 0.0
    %1978 = vmatpush1.msra.mxu0 0.0
    %1979 = vmatprep.subr.mxu0 0.0
    %1980 = vmatpush1.msra.mxu0 0.0
    %1981 = vmatprep.subr.mxu0 0.0
    %1982 = vmatpush1.msra.mxu0 0.0
    %1983 = vmatprep.subr.mxu0 0.0
    %1984 = vmatpush1.msra.mxu0 0.0
    %1985 = vmatprep.subr.mxu0 0.0
    %1986 = vmatpush1.msra.mxu0 0.0
    %1987 = vmatprep.subr.mxu0 0.0
    %1988 = vmatpush1.msra.mxu0 0.0
    %1989 = vmatprep.subr.mxu0 0.0
    %1990 = vmatpush1.msra.mxu0 0.0
    %1991 = vmatprep.subr.mxu0 0.0
    %1992 = vmatpush1.msra.mxu0 0.0
    %1993 = vmatprep.subr.mxu0 0.0
    %1994 = vmatpush1.msra.mxu0 0.0
    %1995 = vmatprep.subr.mxu0 0.0
    %1996 = vmatpush1.msra.mxu0 0.0
    %1997 = vmatprep.subr.mxu0 0.0
    %1998 = vmatpush1.msra.mxu0 0.0
    %1999 = vmatprep.subr.mxu0 0.0
    %2000 = vmatpush1.msra.mxu0 0.0
    %2001 = vmatprep.subr.mxu0 0.0
    %2002 = vmatpush1.msra.mxu0 0.0
    %2003 = vmatprep.subr.mxu0 0.0
    %2004 = vmatpush1.msra.mxu0 0.0
    %2005 = vmatprep.subr.mxu0 0.0
    %2006 = vmatpush1.msra.mxu0 0.0
    %2007 = vmatprep.subr.mxu0 0.0
    %2008 = vmatpush1.msra.mxu0 0.0
    %2009 = vmatprep.subr.mxu0 0.0
    %2010 = vmatpush1.msra.mxu0 0.0
    %2011 = vmatprep.subr.mxu0 0.0
    %2012 = vmatpush1.msra.mxu0 0.0
    %2013 = vmatprep.subr.mxu0 0.0
    %2014 = vmatpush1.msra.mxu0 0.0
    %2015 = vmatprep.subr.mxu0 0.0
    %2016 = vmatpush1.msra.mxu0 0.0
    %2017 = vmatprep.subr.mxu0 0.0
    %2018 = vmatpush1.msra.mxu0 0.0
    %2019 = vmatprep.subr.mxu0 0.0
    %2020 = vmatpush1.msra.mxu0 0.0
    %2021 = vmatprep.subr.mxu0 0.0
    %2022 = vmatpush1.msra.mxu0 0.0
    %2023 = vmatprep.subr.mxu0 0.0
    %2024 = vmatpush1.msra.mxu0 0.0
    %2025 = vmatprep.subr.mxu0 0.0
    %2026 = vmatpush1.msra.mxu0 0.0
    %2027 = vmatprep.subr.mxu0 0.0
    %2028 = vmatpush1.msra.mxu0 0.0
    %2029 = vmatprep.subr.mxu0 0.0
    %2030 = vmatpush1.msra.mxu0 0.0
    %2031 = vmatprep.mubr.f32.mxu0 0.0
    %v2032 = vand.u32 %v1884, 4294901760
    %2033 = vmatmul.mubr.f32.gmra.mrb[0].mxu0 %v2032
    %v2034 = vpop.f32.mrb[0].mxu0
    %v2035 = vadd.f32 %v1959, %v2034
    %v2036 = vpop.f32.mrb[0].mxu0
    %2037 = vdwg.mxu0
    %2038 = vmatprep.subr.mxu0 0.0
    %v2039 = vand.u32 %v74, 4294901760
    %v2040 = vsub.f32 %v74, %v2039
    %2041 = vmatpush1.msra.mxu0 %v2040
    %2042 = vmatprep.subr.mxu0 0.0
    %2043 = vmatpush1.msra.mxu0 0.0
    %2044 = vmatprep.subr.mxu0 0.0
    %2045 = vmatpush1.msra.mxu0 0.0
    %2046 = vmatprep.subr.mxu0 0.0
    %2047 = vmatpush1.msra.mxu0 0.0
    %2048 = vmatprep.subr.mxu0 0.0
    %2049 = vmatpush1.msra.mxu0 0.0
    %2050 = vmatprep.subr.mxu0 0.0
    %2051 = vmatpush1.msra.mxu0 0.0
    %2052 = vmatprep.subr.mxu0 0.0
    %2053 = vmatpush1.msra.mxu0 0.0
    %2054 = vmatprep.subr.mxu0 0.0
    %2055 = vmatpush1.msra.mxu0 0.0
    %2056 = vmatprep.subr.mxu0 0.0
    %2057 = vmatpush1.msra.mxu0 0.0
    %2058 = vmatprep.subr.mxu0 0.0
    %2059 = vmatpush1.msra.mxu0 0.0
    %2060 = vmatprep.subr.mxu0 0.0
    %2061 = vmatpush1.msra.mxu0 0.0
    %2062 = vmatprep.subr.mxu0 0.0
    %2063 = vmatpush1.msra.mxu0 0.0
    %2064 = vmatprep.subr.mxu0 0.0
    %2065 = vmatpush1.msra.mxu0 0.0
    %2066 = vmatprep.subr.mxu0 0.0
    %2067 = vmatpush1.msra.mxu0 0.0
    %2068 = vmatprep.subr.mxu0 0.0
    %2069 = vmatpush1.msra.mxu0 0.0
    %2070 = vmatprep.subr.mxu0 0.0
    %2071 = vmatpush1.msra.mxu0 0.0
    %2072 = vmatprep.subr.mxu0 0.0
    %2073 = vmatpush1.msra.mxu0 0.0
    %2074 = vmatprep.subr.mxu0 0.0
    %2075 = vmatpush1.msra.mxu0 0.0
    %2076 = vmatprep.subr.mxu0 0.0
    %2077 = vmatpush1.msra.mxu0 0.0
    %2078 = vmatprep.subr.mxu0 0.0
    %2079 = vmatpush1.msra.mxu0 0.0
    %2080 = vmatprep.subr.mxu0 0.0
    %2081 = vmatpush1.msra.mxu0 0.0
    %2082 = vmatprep.subr.mxu0 0.0
    %2083 = vmatpush1.msra.mxu0 0.0
    %2084 = vmatprep.subr.mxu0 0.0
    %2085 = vmatpush1.msra.mxu0 0.0
    %2086 = vmatprep.subr.mxu0 0.0
    %2087 = vmatpush1.msra.mxu0 0.0
    %2088 = vmatprep.subr.mxu0 0.0
    %2089 = vmatpush1.msra.mxu0 0.0
    %2090 = vmatprep.subr.mxu0 0.0
    %2091 = vmatpush1.msra.mxu0 0.0
    %2092 = vmatprep.subr.mxu0 0.0
    %2093 = vmatpush1.msra.mxu0 0.0
    %2094 = vmatprep.subr.mxu0 0.0
    %2095 = vmatpush1.msra.mxu0 0.0
    %2096 = vmatprep.subr.mxu0 0.0
    %2097 = vmatpush1.msra.mxu0 0.0
    %2098 = vmatprep.subr.mxu0 0.0
    %2099 = vmatpush1.msra.mxu0 0.0
    %2100 = vmatprep.subr.mxu0 0.0
    %2101 = vmatpush1.msra.mxu0 0.0
    %2102 = vmatprep.subr.mxu0 0.0
    %2103 = vmatpush1.msra.mxu0 0.0
    %2104 = vmatprep.mubr.f32.mxu0 0.0
    %v2105 = vand.u32 %v1884, 4294901760
    %v2106 = vsub.f32 %v1884, %v2105
    %2107 = vmatmul.mubr.f32.gmra.mrb[0].mxu0 %v2106
    %v2108 = vpop.f32.mrb[0].mxu0
    %v2109 = vadd.f32 %v2035, %v2108
    %v2110 = vpop.f32.mrb[0].mxu0
    %2111 = vdwg.mxu0
    %2112 = vmatprep.subr.mxu0 0.0
    %v2113 = vand.u32 %v74, 4294901760
    %2114 = vmatpush1.msra.mxu0 %v2113
    %2115 = vmatprep.subr.mxu0 0.0
    %2116 = vmatpush1.msra.mxu0 0.0
    %2117 = vmatprep.subr.mxu0 0.0
    %2118 = vmatpush1.msra.mxu0 0.0
    %2119 = vmatprep.subr.mxu0 0.0
    %2120 = vmatpush1.msra.mxu0 0.0
    %2121 = vmatprep.subr.mxu0 0.0
    %2122 = vmatpush1.msra.mxu0 0.0
    %2123 = vmatprep.subr.mxu0 0.0
    %2124 = vmatpush1.msra.mxu0 0.0
    %2125 = vmatprep.subr.mxu0 0.0
    %2126 = vmatpush1.msra.mxu0 0.0
    %2127 = vmatprep.subr.mxu0 0.0
    %2128 = vmatpush1.msra.mxu0 0.0
    %2129 = vmatprep.subr.mxu0 0.0
    %2130 = vmatpush1.msra.mxu0 0.0
    %2131 = vmatprep.subr.mxu0 0.0
    %2132 = vmatpush1.msra.mxu0 0.0
    %2133 = vmatprep.subr.mxu0 0.0
    %2134 = vmatpush1.msra.mxu0 0.0
    %2135 = vmatprep.subr.mxu0 0.0
    %2136 = vmatpush1.msra.mxu0 0.0
    %2137 = vmatprep.subr.mxu0 0.0
    %2138 = vmatpush1.msra.mxu0 0.0
    %2139 = vmatprep.subr.mxu0 0.0
    %2140 = vmatpush1.msra.mxu0 0.0
    %2141 = vmatprep.subr.mxu0 0.0
    %2142 = vmatpush1.msra.mxu0 0.0
    %2143 = vmatprep.subr.mxu0 0.0
    %2144 = vmatpush1.msra.mxu0 0.0
    %2145 = vmatprep.subr.mxu0 0.0
    %2146 = vmatpush1.msra.mxu0 0.0
    %2147 = vmatprep.subr.mxu0 0.0
    %2148 = vmatpush1.msra.mxu0 0.0
    %2149 = vmatprep.subr.mxu0 0.0
    %2150 = vmatpush1.msra.mxu0 0.0
    %2151 = vmatprep.subr.mxu0 0.0
    %2152 = vmatpush1.msra.mxu0 0.0
    %2153 = vmatprep.subr.mxu0 0.0
    %2154 = vmatpush1.msra.mxu0 0.0
    %2155 = vmatprep.subr.mxu0 0.0
    %2156 = vmatpush1.msra.mxu0 0.0
    %2157 = vmatprep.subr.mxu0 0.0
    %2158 = vmatpush1.msra.mxu0 0.0
    %2159 = vmatprep.subr.mxu0 0.0
    %2160 = vmatpush1.msra.mxu0 0.0
    %2161 = vmatprep.subr.mxu0 0.0
    %2162 = vmatpush1.msra.mxu0 0.0
    %2163 = vmatprep.subr.mxu0 0.0
    %2164 = vmatpush1.msra.mxu0 0.0
    %2165 = vmatprep.subr.mxu0 0.0
    %2166 = vmatpush1.msra.mxu0 0.0
    %2167 = vmatprep.subr.mxu0 0.0
    %2168 = vmatpush1.msra.mxu0 0.0
    %2169 = vmatprep.subr.mxu0 0.0
    %2170 = vmatpush1.msra.mxu0 0.0
    %2171 = vmatprep.subr.mxu0 0.0
    %2172 = vmatpush1.msra.mxu0 0.0
    %2173 = vmatprep.subr.mxu0 0.0
    %2174 = vmatpush1.msra.mxu0 0.0
    %2175 = vmatprep.subr.mxu0 0.0
    %2176 = vmatpush1.msra.mxu0 0.0
    %2177 = vmatprep.mubr.f32.mxu0 0.0
    %v2178 = vand.u32 %v1884, 4294901760
    %v2179 = vsub.f32 %v1884, %v2178
    %v2180 = vand.u32 %v2179, 4294901760
    %2181 = vmatmul.mubr.f32.gmra.mrb[0].mxu0 %v2180
    %v2182 = vpop.f32.mrb[0].mxu0
    %v2183 = vadd.f32 %v2109, %v2182
    %v2184 = vpop.f32.mrb[0].mxu0
    %2185 = vdwg.mxu0
    %2186 = vmatprep.subr.mxu0 0.0
    %v2187 = vand.u32 %v74, 4294901760
    %v2188 = vsub.f32 %v74, %v2187
    %v2189 = vand.u32 %v2188, 4294901760
    %2190 = vmatpush1.msra.mxu0 %v2189
    %2191 = vmatprep.subr.mxu0 0.0
    %2192 = vmatpush1.msra.mxu0 0.0
    %2193 = vmatprep.subr.mxu0 0.0
    %2194 = vmatpush1.msra.mxu0 0.0
    %2195 = vmatprep.subr.mxu0 0.0
    %2196 = vmatpush1.msra.mxu0 0.0
    %2197 = vmatprep.subr.mxu0 0.0
    %2198 = vmatpush1.msra.mxu0 0.0
    %2199 = vmatprep.subr.mxu0 0.0
    %2200 = vmatpush1.msra.mxu0 0.0
    %2201 = vmatprep.subr.mxu0 0.0
    %2202 = vmatpush1.msra.mxu0 0.0
    %2203 = vmatprep.subr.mxu0 0.0
    %2204 = vmatpush1.msra.mxu0 0.0
    %2205 = vmatprep.subr.mxu0 0.0
    %2206 = vmatpush1.msra.mxu0 0.0
    %2207 = vmatprep.subr.mxu0 0.0
    %2208 = vmatpush1.msra.mxu0 0.0
    %2209 = vmatprep.subr.mxu0 0.0
    %2210 = vmatpush1.msra.mxu0 0.0
    %2211 = vmatprep.subr.mxu0 0.0
    %2212 = vmatpush1.msra.mxu0 0.0
    %2213 = vmatprep.subr.mxu0 0.0
    %2214 = vmatpush1.msra.mxu0 0.0
    %2215 = vmatprep.subr.mxu0 0.0
    %2216 = vmatpush1.msra.mxu0 0.0
    %2217 = vmatprep.subr.mxu0 0.0
    %2218 = vmatpush1.msra.mxu0 0.0
    %2219 = vmatprep.subr.mxu0 0.0
    %2220 = vmatpush1.msra.mxu0 0.0
    %2221 = vmatprep.subr.mxu0 0.0
    %2222 = vmatpush1.msra.mxu0 0.0
    %2223 = vmatprep.subr.mxu0 0.0
    %2224 = vmatpush1.msra.mxu0 0.0
    %2225 = vmatprep.subr.mxu0 0.0
    %2226 = vmatpush1.msra.mxu0 0.0
    %2227 = vmatprep.subr.mxu0 0.0
    %2228 = vmatpush1.msra.mxu0 0.0
    %2229 = vmatprep.subr.mxu0 0.0
    %2230 = vmatpush1.msra.mxu0 0.0
    %2231 = vmatprep.subr.mxu0 0.0
    %2232 = vmatpush1.msra.mxu0 0.0
    %2233 = vmatprep.subr.mxu0 0.0
    %2234 = vmatpush1.msra.mxu0 0.0
    %2235 = vmatprep.subr.mxu0 0.0
    %2236 = vmatpush1.msra.mxu0 0.0
    %2237 = vmatprep.subr.mxu0 0.0
    %2238 = vmatpush1.msra.mxu0 0.0
    %2239 = vmatprep.subr.mxu0 0.0
    %2240 = vmatpush1.msra.mxu0 0.0
    %2241 = vmatprep.subr.mxu0 0.0
    %2242 = vmatpush1.msra.mxu0 0.0
    %2243 = vmatprep.subr.mxu0 0.0
    %2244 = vmatpush1.msra.mxu0 0.0
    %2245 = vmatprep.subr.mxu0 0.0
    %2246 = vmatpush1.msra.mxu0 0.0
    %2247 = vmatprep.subr.mxu0 0.0
    %2248 = vmatpush1.msra.mxu0 0.0
    %2249 = vmatprep.subr.mxu0 0.0
    %2250 = vmatpush1.msra.mxu0 0.0
    %2251 = vmatprep.subr.mxu0 0.0
    %2252 = vmatpush1.msra.mxu0 0.0
    %2253 = vmatprep.mubr.f32.mxu0 0.0
    %v2254 = vand.u32 %v1884, 4294901760
    %2255 = vmatmul.mubr.f32.gmra.mrb[0].mxu0 %v2254
    %v2256 = vpop.f32.mrb[0].mxu0
    %v2257 = vadd.f32 %v2183, %v2256
    %v2258 = vpop.f32.mrb[0].mxu0
    %2259 = vdwg.mxu0
    %2260 = vmatprep.subr.mxu0 0.0
    %v2261 = vand.u32 %v74, 4294901760
    %2262 = vmatpush1.msra.mxu0 %v2261
    %2263 = vmatprep.subr.mxu0 0.0
    %2264 = vmatpush1.msra.mxu0 0.0
    %2265 = vmatprep.subr.mxu0 0.0
    %2266 = vmatpush1.msra.mxu0 0.0
    %2267 = vmatprep.subr.mxu0 0.0
    %2268 = vmatpush1.msra.mxu0 0.0
    %2269 = vmatprep.subr.mxu0 0.0
    %2270 = vmatpush1.msra.mxu0 0.0
    %2271 = vmatprep.subr.mxu0 0.0
    %2272 = vmatpush1.msra.mxu0 0.0
    %2273 = vmatprep.subr.mxu0 0.0
    %2274 = vmatpush1.msra.mxu0 0.0
    %2275 = vmatprep.subr.mxu0 0.0
    %2276 = vmatpush1.msra.mxu0 0.0
    %2277 = vmatprep.subr.mxu0 0.0
    %2278 = vmatpush1.msra.mxu0 0.0
    %2279 = vmatprep.subr.mxu0 0.0
    %2280 = vmatpush1.msra.mxu0 0.0
    %2281 = vmatprep.subr.mxu0 0.0
    %2282 = vmatpush1.msra.mxu0 0.0
    %2283 = vmatprep.subr.mxu0 0.0
    %2284 = vmatpush1.msra.mxu0 0.0
    %2285 = vmatprep.subr.mxu0 0.0
    %2286 = vmatpush1.msra.mxu0 0.0
    %2287 = vmatprep.subr.mxu0 0.0
    %2288 = vmatpush1.msra.mxu0 0.0
    %2289 = vmatprep.subr.mxu0 0.0
    %2290 = vmatpush1.msra.mxu0 0.0
    %2291 = vmatprep.subr.mxu0 0.0
    %2292 = vmatpush1.msra.mxu0 0.0
    %2293 = vmatprep.subr.mxu0 0.0
    %2294 = vmatpush1.msra.mxu0 0.0
    %2295 = vmatprep.subr.mxu0 0.0
    %2296 = vmatpush1.msra.mxu0 0.0
    %2297 = vmatprep.subr.mxu0 0.0
    %2298 = vmatpush1.msra.mxu0 0.0
    %2299 = vmatprep.subr.mxu0 0.0
    %2300 = vmatpush1.msra.mxu0 0.0
    %2301 = vmatprep.subr.mxu0 0.0
    %2302 = vmatpush1.msra.mxu0 0.0
    %2303 = vmatprep.subr.mxu0 0.0
    %2304 = vmatpush1.msra.mxu0 0.0
    %2305 = vmatprep.subr.mxu0 0.0
    %2306 = vmatpush1.msra.mxu0 0.0
    %2307 = vmatprep.subr.mxu0 0.0
    %2308 = vmatpush1.msra.mxu0 0.0
    %2309 = vmatprep.subr.mxu0 0.0
    %2310 = vmatpush1.msra.mxu0 0.0
    %2311 = vmatprep.subr.mxu0 0.0
    %2312 = vmatpush1.msra.mxu0 0.0
    %2313 = vmatprep.subr.mxu0 0.0
    %2314 = vmatpush1.msra.mxu0 0.0
    %2315 = vmatprep.subr.mxu0 0.0
    %2316 = vmatpush1.msra.mxu0 0.0
    %2317 = vmatprep.subr.mxu0 0.0
    %2318 = vmatpush1.msra.mxu0 0.0
    %2319 = vmatprep.subr.mxu0 0.0
    %2320 = vmatpush1.msra.mxu0 0.0
    %2321 = vmatprep.subr.mxu0 0.0
    %2322 = vmatpush1.msra.mxu0 0.0
    %2323 = vmatprep.subr.mxu0 0.0
    %2324 = vmatpush1.msra.mxu0 0.0
    %2325 = vmatprep.mubr.f32.mxu0 0.0
    %v2326 = vand.u32 %v1884, 4294901760
    %2327 = vmatmul.mubr.f32.gmra.mrb[0].mxu0 %v2326
    %v2328 = vpop.f32.mrb[0].mxu0
    %v2329 = vadd.f32 %v2257, %v2328
    %v2330 = vpop.f32.mrb[0].mxu0
    %2331 = vdwg.mxu0
    %v2333 = vsel %vm86, %v67, 0
    %2335 = vmatprep.subr.mxu0 0.0
    %v2336 = vand.u32 %v75, 4294901760
    %2337 = vmatpush1.msra.mxu0 %v2336
    %2338 = vmatprep.subr.mxu0 0.0
    %2339 = vmatpush1.msra.mxu0 0.0
    %2340 = vmatprep.subr.mxu0 0.0
    %2341 = vmatpush1.msra.mxu0 0.0
    %2342 = vmatprep.subr.mxu0 0.0
    %2343 = vmatpush1.msra.mxu0 0.0
    %2344 = vmatprep.subr.mxu0 0.0
    %2345 = vmatpush1.msra.mxu0 0.0
    %2346 = vmatprep.subr.mxu0 0.0
    %2347 = vmatpush1.msra.mxu0 0.0
    %2348 = vmatprep.subr.mxu0 0.0
    %2349 = vmatpush1.msra.mxu0 0.0
    %2350 = vmatprep.subr.mxu0 0.0
    %2351 = vmatpush1.msra.mxu0 0.0
    %2352 = vmatprep.subr.mxu0 0.0
    %2353 = vmatpush1.msra.mxu0 0.0
    %2354 = vmatprep.subr.mxu0 0.0
    %2355 = vmatpush1.msra.mxu0 0.0
    %2356 = vmatprep.subr.mxu0 0.0
    %2357 = vmatpush1.msra.mxu0 0.0
    %2358 = vmatprep.subr.mxu0 0.0
    %2359 = vmatpush1.msra.mxu0 0.0
    %2360 = vmatprep.subr.mxu0 0.0
    %2361 = vmatpush1.msra.mxu0 0.0
    %2362 = vmatprep.subr.mxu0 0.0
    %2363 = vmatpush1.msra.mxu0 0.0
    %2364 = vmatprep.subr.mxu0 0.0
    %2365 = vmatpush1.msra.mxu0 0.0
    %2366 = vmatprep.subr.mxu0 0.0
    %2367 = vmatpush1.msra.mxu0 0.0
    %2368 = vmatprep.subr.mxu0 0.0
    %2369 = vmatpush1.msra.mxu0 0.0
    %2370 = vmatprep.subr.mxu0 0.0
    %2371 = vmatpush1.msra.mxu0 0.0
    %2372 = vmatprep.subr.mxu0 0.0
    %2373 = vmatpush1.msra.mxu0 0.0
    %2374 = vmatprep.subr.mxu0 0.0
    %2375 = vmatpush1.msra.mxu0 0.0
    %2376 = vmatprep.subr.mxu0 0.0
    %2377 = vmatpush1.msra.mxu0 0.0
    %2378 = vmatprep.subr.mxu0 0.0
    %2379 = vmatpush1.msra.mxu0 0.0
    %2380 = vmatprep.subr.mxu0 0.0
    %2381 = vmatpush1.msra.mxu0 0.0
    %2382 = vmatprep.subr.mxu0 0.0
    %2383 = vmatpush1.msra.mxu0 0.0
    %2384 = vmatprep.subr.mxu0 0.0
    %2385 = vmatpush1.msra.mxu0 0.0
    %2386 = vmatprep.subr.mxu0 0.0
    %2387 = vmatpush1.msra.mxu0 0.0
    %2388 = vmatprep.subr.mxu0 0.0
    %2389 = vmatpush1.msra.mxu0 0.0
    %2390 = vmatprep.subr.mxu0 0.0
    %2391 = vmatpush1.msra.mxu0 0.0
    %2392 = vmatprep.subr.mxu0 0.0
    %2393 = vmatpush1.msra.mxu0 0.0
    %2394 = vmatprep.subr.mxu0 0.0
    %2395 = vmatpush1.msra.mxu0 0.0
    %2396 = vmatprep.subr.mxu0 0.0
    %2397 = vmatpush1.msra.mxu0 0.0
    %2398 = vmatprep.subr.mxu0 0.0
    %2399 = vmatpush1.msra.mxu0 0.0
    %2400 = vmatprep.mubr.f32.mxu0 0.0
    %v2401 = vand.u32 %v2333, 4294901760
    %v2402 = vsub.f32 %v2333, %v2401
    %v2403 = vand.u32 %v2402, 4294901760
    %v2404 = vsub.f32 %v2402, %v2403
    %v2405 = vand.u32 %v2404, 4294901760
    %2406 = vmatmul.mubr.f32.gmra.mrb[0].mxu0 %v2405
    %v2407 = vpop.f32.mrb[0].mxu0
    %v2408 = vadd.f32 0.0, %v2407
    %v2409 = vpop.f32.mrb[0].mxu0
    %2410 = vdwg.mxu0
    %2411 = vmatprep.subr.mxu0 0.0
    %v2412 = vand.u32 %v75, 4294901760
    %v2413 = vsub.f32 %v75, %v2412
    %v2414 = vand.u32 %v2413, 4294901760
    %v2415 = vsub.f32 %v2413, %v2414
    %v2416 = vand.u32 %v2415, 4294901760
    %2417 = vmatpush1.msra.mxu0 %v2416
    %2418 = vmatprep.subr.mxu0 0.0
    %2419 = vmatpush1.msra.mxu0 0.0
    %2420 = vmatprep.subr.mxu0 0.0
    %2421 = vmatpush1.msra.mxu0 0.0
    %2422 = vmatprep.subr.mxu0 0.0
    %2423 = vmatpush1.msra.mxu0 0.0
    %2424 = vmatprep.subr.mxu0 0.0
    %2425 = vmatpush1.msra.mxu0 0.0
    %2426 = vmatprep.subr.mxu0 0.0
    %2427 = vmatpush1.msra.mxu0 0.0
    %2428 = vmatprep.subr.mxu0 0.0
    %2429 = vmatpush1.msra.mxu0 0.0
    %2430 = vmatprep.subr.mxu0 0.0
    %2431 = vmatpush1.msra.mxu0 0.0
    %2432 = vmatprep.subr.mxu0 0.0
    %2433 = vmatpush1.msra.mxu0 0.0
    %2434 = vmatprep.subr.mxu0 0.0
    %2435 = vmatpush1.msra.mxu0 0.0
    %2436 = vmatprep.subr.mxu0 0.0
    %2437 = vmatpush1.msra.mxu0 0.0
    %2438 = vmatprep.subr.mxu0 0.0
    %2439 = vmatpush1.msra.mxu0 0.0
    %2440 = vmatprep.subr.mxu0 0.0
    %2441 = vmatpush1.msra.mxu0 0.0
    %2442 = vmatprep.subr.mxu0 0.0
    %2443 = vmatpush1.msra.mxu0 0.0
    %2444 = vmatprep.subr.mxu0 0.0
    %2445 = vmatpush1.msra.mxu0 0.0
    %2446 = vmatprep.subr.mxu0 0.0
    %2447 = vmatpush1.msra.mxu0 0.0
    %2448 = vmatprep.subr.mxu0 0.0
    %2449 = vmatpush1.msra.mxu0 0.0
    %2450 = vmatprep.subr.mxu0 0.0
    %2451 = vmatpush1.msra.mxu0 0.0
    %2452 = vmatprep.subr.mxu0 0.0
    %2453 = vmatpush1.msra.mxu0 0.0
    %2454 = vmatprep.subr.mxu0 0.0
    %2455 = vmatpush1.msra.mxu0 0.0
    %2456 = vmatprep.subr.mxu0 0.0
    %2457 = vmatpush1.msra.mxu0 0.0
    %2458 = vmatprep.subr.mxu0 0.0
    %2459 = vmatpush1.msra.mxu0 0.0
    %2460 = vmatprep.subr.mxu0 0.0
    %2461 = vmatpush1.msra.mxu0 0.0
    %2462 = vmatprep.subr.mxu0 0.0
    %2463 = vmatpush1.msra.mxu0 0.0
    %2464 = vmatprep.subr.mxu0 0.0
    %2465 = vmatpush1.msra.mxu0 0.0
    %2466 = vmatprep.subr.mxu0 0.0
    %2467 = vmatpush1.msra.mxu0 0.0
    %2468 = vmatprep.subr.mxu0 0.0
    %2469 = vmatpush1.msra.mxu0 0.0
    %2470 = vmatprep.subr.mxu0 0.0
    %2471 = vmatpush1.msra.mxu0 0.0
    %2472 = vmatprep.subr.mxu0 0.0
    %2473 = vmatpush1.msra.mxu0 0.0
    %2474 = vmatprep.subr.mxu0 0.0
    %2475 = vmatpush1.msra.mxu0 0.0
    %2476 = vmatprep.subr.mxu0 0.0
    %2477 = vmatpush1.msra.mxu0 0.0
    %2478 = vmatprep.subr.mxu0 0.0
    %2479 = vmatpush1.msra.mxu0 0.0
    %2480 = vmatprep.mubr.f32.mxu0 0.0
    %v2481 = vand.u32 %v2333, 4294901760
    %2482 = vmatmul.mubr.f32.gmra.mrb[0].mxu0 %v2481
    %v2483 = vpop.f32.mrb[0].mxu0
    %v2484 = vadd.f32 %v2408, %v2483
    %v2485 = vpop.f32.mrb[0].mxu0
    %2486 = vdwg.mxu0
    %2487 = vmatprep.subr.mxu0 0.0
    %v2488 = vand.u32 %v75, 4294901760
    %v2489 = vsub.f32 %v75, %v2488
    %2490 = vmatpush1.msra.mxu0 %v2489
    %2491 = vmatprep.subr.mxu0 0.0
    %2492 = vmatpush1.msra.mxu0 0.0
    %2493 = vmatprep.subr.mxu0 0.0
    %2494 = vmatpush1.msra.mxu0 0.0
    %2495 = vmatprep.subr.mxu0 0.0
    %2496 = vmatpush1.msra.mxu0 0.0
    %2497 = vmatprep.subr.mxu0 0.0
    %2498 = vmatpush1.msra.mxu0 0.0
    %2499 = vmatprep.subr.mxu0 0.0
    %2500 = vmatpush1.msra.mxu0 0.0
    %2501 = vmatprep.subr.mxu0 0.0
    %2502 = vmatpush1.msra.mxu0 0.0
    %2503 = vmatprep.subr.mxu0 0.0
    %2504 = vmatpush1.msra.mxu0 0.0
    %2505 = vmatprep.subr.mxu0 0.0
    %2506 = vmatpush1.msra.mxu0 0.0
    %2507 = vmatprep.subr.mxu0 0.0
    %2508 = vmatpush1.msra.mxu0 0.0
    %2509 = vmatprep.subr.mxu0 0.0
    %2510 = vmatpush1.msra.mxu0 0.0
    %2511 = vmatprep.subr.mxu0 0.0
    %2512 = vmatpush1.msra.mxu0 0.0
    %2513 = vmatprep.subr.mxu0 0.0
    %2514 = vmatpush1.msra.mxu0 0.0
    %2515 = vmatprep.subr.mxu0 0.0
    %2516 = vmatpush1.msra.mxu0 0.0
    %2517 = vmatprep.subr.mxu0 0.0
    %2518 = vmatpush1.msra.mxu0 0.0
    %2519 = vmatprep.subr.mxu0 0.0
    %2520 = vmatpush1.msra.mxu0 0.0
    %2521 = vmatprep.subr.mxu0 0.0
    %2522 = vmatpush1.msra.mxu0 0.0
    %2523 = vmatprep.subr.mxu0 0.0
    %2524 = vmatpush1.msra.mxu0 0.0
    %2525 = vmatprep.subr.mxu0 0.0
    %2526 = vmatpush1.msra.mxu0 0.0
    %2527 = vmatprep.subr.mxu0 0.0
    %2528 = vmatpush1.msra.mxu0 0.0
    %2529 = vmatprep.subr.mxu0 0.0
    %2530 = vmatpush1.msra.mxu0 0.0
    %2531 = vmatprep.subr.mxu0 0.0
    %2532 = vmatpush1.msra.mxu0 0.0
    %2533 = vmatprep.subr.mxu0 0.0
    %2534 = vmatpush1.msra.mxu0 0.0
    %2535 = vmatprep.subr.mxu0 0.0
    %2536 = vmatpush1.msra.mxu0 0.0
    %2537 = vmatprep.subr.mxu0 0.0
    %2538 = vmatpush1.msra.mxu0 0.0
    %2539 = vmatprep.subr.mxu0 0.0
    %2540 = vmatpush1.msra.mxu0 0.0
    %2541 = vmatprep.subr.mxu0 0.0
    %2542 = vmatpush1.msra.mxu0 0.0
    %2543 = vmatprep.subr.mxu0 0.0
    %2544 = vmatpush1.msra.mxu0 0.0
    %2545 = vmatprep.subr.mxu0 0.0
    %2546 = vmatpush1.msra.mxu0 0.0
    %2547 = vmatprep.subr.mxu0 0.0
    %2548 = vmatpush1.msra.mxu0 0.0
    %2549 = vmatprep.subr.mxu0 0.0
    %2550 = vmatpush1.msra.mxu0 0.0
    %2551 = vmatprep.subr.mxu0 0.0
    %2552 = vmatpush1.msra.mxu0 0.0
    %2553 = vmatprep.mubr.f32.mxu0 0.0
    %v2554 = vand.u32 %v2333, 4294901760
    %v2555 = vsub.f32 %v2333, %v2554
    %2556 = vmatmul.mubr.f32.gmra.mrb[0].mxu0 %v2555
    %v2557 = vpop.f32.mrb[0].mxu0
    %v2558 = vadd.f32 %v2484, %v2557
    %v2559 = vpop.f32.mrb[0].mxu0
    %2560 = vdwg.mxu0
    %2561 = vmatprep.subr.mxu0 0.0
    %v2562 = vand.u32 %v75, 4294901760
    %2563 = vmatpush1.msra.mxu0 %v2562
    %2564 = vmatprep.subr.mxu0 0.0
    %2565 = vmatpush1.msra.mxu0 0.0
    %2566 = vmatprep.subr.mxu0 0.0
    %2567 = vmatpush1.msra.mxu0 0.0
    %2568 = vmatprep.subr.mxu0 0.0
    %2569 = vmatpush1.msra.mxu0 0.0
    %2570 = vmatprep.subr.mxu0 0.0
    %2571 = vmatpush1.msra.mxu0 0.0
    %2572 = vmatprep.subr.mxu0 0.0
    %2573 = vmatpush1.msra.mxu0 0.0
    %2574 = vmatprep.subr.mxu0 0.0
    %2575 = vmatpush1.msra.mxu0 0.0
    %2576 = vmatprep.subr.mxu0 0.0
    %2577 = vmatpush1.msra.mxu0 0.0
    %2578 = vmatprep.subr.mxu0 0.0
    %2579 = vmatpush1.msra.mxu0 0.0
    %2580 = vmatprep.subr.mxu0 0.0
    %2581 = vmatpush1.msra.mxu0 0.0
    %2582 = vmatprep.subr.mxu0 0.0
    %2583 = vmatpush1.msra.mxu0 0.0
    %2584 = vmatprep.subr.mxu0 0.0
    %2585 = vmatpush1.msra.mxu0 0.0
    %2586 = vmatprep.subr.mxu0 0.0
    %2587 = vmatpush1.msra.mxu0 0.0
    %2588 = vmatprep.subr.mxu0 0.0
    %2589 = vmatpush1.msra.mxu0 0.0
    %2590 = vmatprep.subr.mxu0 0.0
    %2591 = vmatpush1.msra.mxu0 0.0
    %2592 = vmatprep.subr.mxu0 0.0
    %2593 = vmatpush1.msra.mxu0 0.0
    %2594 = vmatprep.subr.mxu0 0.0
    %2595 = vmatpush1.msra.mxu0 0.0
    %2596 = vmatprep.subr.mxu0 0.0
    %2597 = vmatpush1.msra.mxu0 0.0
    %2598 = vmatprep.subr.mxu0 0.0
    %2599 = vmatpush1.msra.mxu0 0.0
    %2600 = vmatprep.subr.mxu0 0.0
    %2601 = vmatpush1.msra.mxu0 0.0
    %2602 = vmatprep.subr.mxu0 0.0
    %2603 = vmatpush1.msra.mxu0 0.0
    %2604 = vmatprep.subr.mxu0 0.0
    %2605 = vmatpush1.msra.mxu0 0.0
    %2606 = vmatprep.subr.mxu0 0.0
    %2607 = vmatpush1.msra.mxu0 0.0
    %2608 = vmatprep.subr.mxu0 0.0
    %2609 = vmatpush1.msra.mxu0 0.0
    %2610 = vmatprep.subr.mxu0 0.0
    %2611 = vmatpush1.msra.mxu0 0.0
    %2612 = vmatprep.subr.mxu0 0.0
    %2613 = vmatpush1.msra.mxu0 0.0
    %2614 = vmatprep.subr.mxu0 0.0
    %2615 = vmatpush1.msra.mxu0 0.0
    %2616 = vmatprep.subr.mxu0 0.0
    %2617 = vmatpush1.msra.mxu0 0.0
    %2618 = vmatprep.subr.mxu0 0.0
    %2619 = vmatpush1.msra.mxu0 0.0
    %2620 = vmatprep.subr.mxu0 0.0
    %2621 = vmatpush1.msra.mxu0 0.0
    %2622 = vmatprep.subr.mxu0 0.0
    %2623 = vmatpush1.msra.mxu0 0.0
    %2624 = vmatprep.subr.mxu0 0.0
    %2625 = vmatpush1.msra.mxu0 0.0
    %2626 = vmatprep.mubr.f32.mxu0 0.0
    %v2627 = vand.u32 %v2333, 4294901760
    %v2628 = vsub.f32 %v2333, %v2627
    %v2629 = vand.u32 %v2628, 4294901760
    %2630 = vmatmul.mubr.f32.gmra.mrb[0].mxu0 %v2629
    %v2631 = vpop.f32.mrb[0].mxu0
    %v2632 = vadd.f32 %v2558, %v2631
    %v2633 = vpop.f32.mrb[0].mxu0
    %2634 = vdwg.mxu0
    %2635 = vmatprep.subr.mxu0 0.0
    %v2636 = vand.u32 %v75, 4294901760
    %v2637 = vsub.f32 %v75, %v2636
    %v2638 = vand.u32 %v2637, 4294901760
    %2639 = vmatpush1.msra.mxu0 %v2638
    %2640 = vmatprep.subr.mxu0 0.0
    %2641 = vmatpush1.msra.mxu0 0.0
    %2642 = vmatprep.subr.mxu0 0.0
    %2643 = vmatpush1.msra.mxu0 0.0
    %2644 = vmatprep.subr.mxu0 0.0
    %2645 = vmatpush1.msra.mxu0 0.0
    %2646 = vmatprep.subr.mxu0 0.0
    %2647 = vmatpush1.msra.mxu0 0.0
    %2648 = vmatprep.subr.mxu0 0.0
    %2649 = vmatpush1.msra.mxu0 0.0
    %2650 = vmatprep.subr.mxu0 0.0
    %2651 = vmatpush1.msra.mxu0 0.0
    %2652 = vmatprep.subr.mxu0 0.0
    %2653 = vmatpush1.msra.mxu0 0.0
    %2654 = vmatprep.subr.mxu0 0.0
    %2655 = vmatpush1.msra.mxu0 0.0
    %2656 = vmatprep.subr.mxu0 0.0
    %2657 = vmatpush1.msra.mxu0 0.0
    %2658 = vmatprep.subr.mxu0 0.0
    %2659 = vmatpush1.msra.mxu0 0.0
    %2660 = vmatprep.subr.mxu0 0.0
    %2661 = vmatpush1.msra.mxu0 0.0
    %2662 = vmatprep.subr.mxu0 0.0
    %2663 = vmatpush1.msra.mxu0 0.0
    %2664 = vmatprep.subr.mxu0 0.0
    %2665 = vmatpush1.msra.mxu0 0.0
    %2666 = vmatprep.subr.mxu0 0.0
    %2667 = vmatpush1.msra.mxu0 0.0
    %2668 = vmatprep.subr.mxu0 0.0
    %2669 = vmatpush1.msra.mxu0 0.0
    %2670 = vmatprep.subr.mxu0 0.0
    %2671 = vmatpush1.msra.mxu0 0.0
    %2672 = vmatprep.subr.mxu0 0.0
    %2673 = vmatpush1.msra.mxu0 0.0
    %2674 = vmatprep.subr.mxu0 0.0
    %2675 = vmatpush1.msra.mxu0 0.0
    %2676 = vmatprep.subr.mxu0 0.0
    %2677 = vmatpush1.msra.mxu0 0.0
    %2678 = vmatprep.subr.mxu0 0.0
    %2679 = vmatpush1.msra.mxu0 0.0
    %2680 = vmatprep.subr.mxu0 0.0
    %2681 = vmatpush1.msra.mxu0 0.0
    %2682 = vmatprep.subr.mxu0 0.0
    %2683 = vmatpush1.msra.mxu0 0.0
    %2684 = vmatprep.subr.mxu0 0.0
    %2685 = vmatpush1.msra.mxu0 0.0
    %2686 = vmatprep.subr.mxu0 0.0
    %2687 = vmatpush1.msra.mxu0 0.0
    %2688 = vmatprep.subr.mxu0 0.0
    %2689 = vmatpush1.msra.mxu0 0.0
    %2690 = vmatprep.subr.mxu0 0.0
    %2691 = vmatpush1.msra.mxu0 0.0
    %2692 = vmatprep.subr.mxu0 0.0
    %2693 = vmatpush1.msra.mxu0 0.0
    %2694 = vmatprep.subr.mxu0 0.0
    %2695 = vmatpush1.msra.mxu0 0.0
    %2696 = vmatprep.subr.mxu0 0.0
    %2697 = vmatpush1.msra.mxu0 0.0
    %2698 = vmatprep.subr.mxu0 0.0
    %2699 = vmatpush1.msra.mxu0 0.0
    %2700 = vmatprep.subr.mxu0 0.0
    %2701 = vmatpush1.msra.mxu0 0.0
    %2702 = vmatprep.mubr.f32.mxu0 0.0
    %v2703 = vand.u32 %v2333, 4294901760
    %2704 = vmatmul.mubr.f32.gmra.mrb[0].mxu0 %v2703
    %v2705 = vpop.f32.mrb[0].mxu0
    %v2706 = vadd.f32 %v2632, %v2705
    %v2707 = vpop.f32.mrb[0].mxu0
    %2708 = vdwg.mxu0
    %2709 = vmatprep.subr.mxu0 0.0
    %v2710 = vand.u32 %v75, 4294901760
    %2711 = vmatpush1.msra.mxu0 %v2710
    %2712 = vmatprep.subr.mxu0 0.0
    %2713 = vmatpush1.msra.mxu0 0.0
    %2714 = vmatprep.subr.mxu0 0.0
    %2715 = vmatpush1.msra.mxu0 0.0
    %2716 = vmatprep.subr.mxu0 0.0
    %2717 = vmatpush1.msra.mxu0 0.0
    %2718 = vmatprep.subr.mxu0 0.0
    %2719 = vmatpush1.msra.mxu0 0.0
    %2720 = vmatprep.subr.mxu0 0.0
    %2721 = vmatpush1.msra.mxu0 0.0
    %2722 = vmatprep.subr.mxu0 0.0
    %2723 = vmatpush1.msra.mxu0 0.0
    %2724 = vmatprep.subr.mxu0 0.0
    %2725 = vmatpush1.msra.mxu0 0.0
    %2726 = vmatprep.subr.mxu0 0.0
    %2727 = vmatpush1.msra.mxu0 0.0
    %2728 = vmatprep.subr.mxu0 0.0
    %2729 = vmatpush1.msra.mxu0 0.0
    %2730 = vmatprep.subr.mxu0 0.0
    %2731 = vmatpush1.msra.mxu0 0.0
    %2732 = vmatprep.subr.mxu0 0.0
    %2733 = vmatpush1.msra.mxu0 0.0
    %2734 = vmatprep.subr.mxu0 0.0
    %2735 = vmatpush1.msra.mxu0 0.0
    %2736 = vmatprep.subr.mxu0 0.0
    %2737 = vmatpush1.msra.mxu0 0.0
    %2738 = vmatprep.subr.mxu0 0.0
    %2739 = vmatpush1.msra.mxu0 0.0
    %2740 = vmatprep.subr.mxu0 0.0
    %2741 = vmatpush1.msra.mxu0 0.0
    %2742 = vmatprep.subr.mxu0 0.0
    %2743 = vmatpush1.msra.mxu0 0.0
    %2744 = vmatprep.subr.mxu0 0.0
    %2745 = vmatpush1.msra.mxu0 0.0
    %2746 = vmatprep.subr.mxu0 0.0
    %2747 = vmatpush1.msra.mxu0 0.0
    %2748 = vmatprep.subr.mxu0 0.0
    %2749 = vmatpush1.msra.mxu0 0.0
    %2750 = vmatprep.subr.mxu0 0.0
    %2751 = vmatpush1.msra.mxu0 0.0
    %2752 = vmatprep.subr.mxu0 0.0
    %2753 = vmatpush1.msra.mxu0 0.0
    %2754 = vmatprep.subr.mxu0 0.0
    %2755 = vmatpush1.msra.mxu0 0.0
    %2756 = vmatprep.subr.mxu0 0.0
    %2757 = vmatpush1.msra.mxu0 0.0
    %2758 = vmatprep.subr.mxu0 0.0
    %2759 = vmatpush1.msra.mxu0 0.0
    %2760 = vmatprep.subr.mxu0 0.0
    %2761 = vmatpush1.msra.mxu0 0.0
    %2762 = vmatprep.subr.mxu0 0.0
    %2763 = vmatpush1.msra.mxu0 0.0
    %2764 = vmatprep.subr.mxu0 0.0
    %2765 = vmatpush1.msra.mxu0 0.0
    %2766 = vmatprep.subr.mxu0 0.0
    %2767 = vmatpush1.msra.mxu0 0.0
    %2768 = vmatprep.subr.mxu0 0.0
    %2769 = vmatpush1.msra.mxu0 0.0
    %2770 = vmatprep.subr.mxu0 0.0
    %2771 = vmatpush1.msra.mxu0 0.0
    %2772 = vmatprep.subr.mxu0 0.0
    %2773 = vmatpush1.msra.mxu0 0.0
    %2774 = vmatprep.mubr.f32.mxu0 0.0
    %v2775 = vand.u32 %v2333, 4294901760
    %2776 = vmatmul.mubr.f32.gmra.mrb[0].mxu0 %v2775
    %v2777 = vpop.f32.mrb[0].mxu0
    %v2778 = vadd.f32 %v2706, %v2777
    %v2779 = vpop.f32.mrb[0].mxu0
    %2780 = vdwg.mxu0
    %v2782 = vsel %vm86, %v68, 0
    %2784 = vmatprep.subr.mxu0 0.0
    %v2785 = vand.u32 %v76, 4294901760
    %2786 = vmatpush1.msra.mxu0 %v2785
    %2787 = vmatprep.subr.mxu0 0.0
    %2788 = vmatpush1.msra.mxu0 0.0
    %2789 = vmatprep.subr.mxu0 0.0
    %2790 = vmatpush1.msra.mxu0 0.0
    %2791 = vmatprep.subr.mxu0 0.0
    %2792 = vmatpush1.msra.mxu0 0.0
    %2793 = vmatprep.subr.mxu0 0.0
    %2794 = vmatpush1.msra.mxu0 0.0
    %2795 = vmatprep.subr.mxu0 0.0
    %2796 = vmatpush1.msra.mxu0 0.0
    %2797 = vmatprep.subr.mxu0 0.0
    %2798 = vmatpush1.msra.mxu0 0.0
    %2799 = vmatprep.subr.mxu0 0.0
    %2800 = vmatpush1.msra.mxu0 0.0
    %2801 = vmatprep.subr.mxu0 0.0
    %2802 = vmatpush1.msra.mxu0 0.0
    %2803 = vmatprep.subr.mxu0 0.0
    %2804 = vmatpush1.msra.mxu0 0.0
    %2805 = vmatprep.subr.mxu0 0.0
    %2806 = vmatpush1.msra.mxu0 0.0
    %2807 = vmatprep.subr.mxu0 0.0
    %2808 = vmatpush1.msra.mxu0 0.0
    %2809 = vmatprep.subr.mxu0 0.0
    %2810 = vmatpush1.msra.mxu0 0.0
    %2811 = vmatprep.subr.mxu0 0.0
    %2812 = vmatpush1.msra.mxu0 0.0
    %2813 = vmatprep.subr.mxu0 0.0
    %2814 = vmatpush1.msra.mxu0 0.0
    %2815 = vmatprep.subr.mxu0 0.0
    %2816 = vmatpush1.msra.mxu0 0.0
    %2817 = vmatprep.subr.mxu0 0.0
    %2818 = vmatpush1.msra.mxu0 0.0
    %2819 = vmatprep.subr.mxu0 0.0
    %2820 = vmatpush1.msra.mxu0 0.0
    %2821 = vmatprep.subr.mxu0 0.0
    %2822 = vmatpush1.msra.mxu0 0.0
    %2823 = vmatprep.subr.mxu0 0.0
    %2824 = vmatpush1.msra.mxu0 0.0
    %2825 = vmatprep.subr.mxu0 0.0
    %2826 = vmatpush1.msra.mxu0 0.0
    %2827 = vmatprep.subr.mxu0 0.0
    %2828 = vmatpush1.msra.mxu0 0.0
    %2829 = vmatprep.subr.mxu0 0.0
    %2830 = vmatpush1.msra.mxu0 0.0
    %2831 = vmatprep.subr.mxu0 0.0
    %2832 = vmatpush1.msra.mxu0 0.0
    %2833 = vmatprep.subr.mxu0 0.0
    %2834 = vmatpush1.msra.mxu0 0.0
    %2835 = vmatprep.subr.mxu0 0.0
    %2836 = vmatpush1.msra.mxu0 0.0
    %2837 = vmatprep.subr.mxu0 0.0
    %2838 = vmatpush1.msra.mxu0 0.0
    %2839 = vmatprep.subr.mxu0 0.0
    %2840 = vmatpush1.msra.mxu0 0.0
    %2841 = vmatprep.subr.mxu0 0.0
    %2842 = vmatpush1.msra.mxu0 0.0
    %2843 = vmatprep.subr.mxu0 0.0
    %2844 = vmatpush1.msra.mxu0 0.0
    %2845 = vmatprep.subr.mxu0 0.0
    %2846 = vmatpush1.msra.mxu0 0.0
    %2847 = vmatprep.subr.mxu0 0.0
    %2848 = vmatpush1.msra.mxu0 0.0
    %2849 = vmatprep.mubr.f32.mxu0 0.0
    %v2850 = vand.u32 %v2782, 4294901760
    %v2851 = vsub.f32 %v2782, %v2850
    %v2852 = vand.u32 %v2851, 4294901760
    %v2853 = vsub.f32 %v2851, %v2852
    %v2854 = vand.u32 %v2853, 4294901760
    %2855 = vmatmul.mubr.f32.gmra.mrb[0].mxu0 %v2854
    %v2856 = vpop.f32.mrb[0].mxu0
    %v2857 = vadd.f32 0.0, %v2856
    %v2858 = vpop.f32.mrb[0].mxu0
    %2859 = vdwg.mxu0
    %2860 = vmatprep.subr.mxu0 0.0
    %v2861 = vand.u32 %v76, 4294901760
    %v2862 = vsub.f32 %v76, %v2861
    %v2863 = vand.u32 %v2862, 4294901760
    %v2864 = vsub.f32 %v2862, %v2863
    %v2865 = vand.u32 %v2864, 4294901760
    %2866 = vmatpush1.msra.mxu0 %v2865
    %2867 = vmatprep.subr.mxu0 0.0
    %2868 = vmatpush1.msra.mxu0 0.0
    %2869 = vmatprep.subr.mxu0 0.0
    %2870 = vmatpush1.msra.mxu0 0.0
    %2871 = vmatprep.subr.mxu0 0.0
    %2872 = vmatpush1.msra.mxu0 0.0
    %2873 = vmatprep.subr.mxu0 0.0
    %2874 = vmatpush1.msra.mxu0 0.0
    %2875 = vmatprep.subr.mxu0 0.0
    %2876 = vmatpush1.msra.mxu0 0.0
    %2877 = vmatprep.subr.mxu0 0.0
    %2878 = vmatpush1.msra.mxu0 0.0
    %2879 = vmatprep.subr.mxu0 0.0
    %2880 = vmatpush1.msra.mxu0 0.0
    %2881 = vmatprep.subr.mxu0 0.0
    %2882 = vmatpush1.msra.mxu0 0.0
    %2883 = vmatprep.subr.mxu0 0.0
    %2884 = vmatpush1.msra.mxu0 0.0
    %2885 = vmatprep.subr.mxu0 0.0
    %2886 = vmatpush1.msra.mxu0 0.0
    %2887 = vmatprep.subr.mxu0 0.0
    %2888 = vmatpush1.msra.mxu0 0.0
    %2889 = vmatprep.subr.mxu0 0.0
    %2890 = vmatpush1.msra.mxu0 0.0
    %2891 = vmatprep.subr.mxu0 0.0
    %2892 = vmatpush1.msra.mxu0 0.0
    %2893 = vmatprep.subr.mxu0 0.0
    %2894 = vmatpush1.msra.mxu0 0.0
    %2895 = vmatprep.subr.mxu0 0.0
    %2896 = vmatpush1.msra.mxu0 0.0
    %2897 = vmatprep.subr.mxu0 0.0
    %2898 = vmatpush1.msra.mxu0 0.0
    %2899 = vmatprep.subr.mxu0 0.0
    %2900 = vmatpush1.msra.mxu0 0.0
    %2901 = vmatprep.subr.mxu0 0.0
    %2902 = vmatpush1.msra.mxu0 0.0
    %2903 = vmatprep.subr.mxu0 0.0
    %2904 = vmatpush1.msra.mxu0 0.0
    %2905 = vmatprep.subr.mxu0 0.0
    %2906 = vmatpush1.msra.mxu0 0.0
    %2907 = vmatprep.subr.mxu0 0.0
    %2908 = vmatpush1.msra.mxu0 0.0
    %2909 = vmatprep.subr.mxu0 0.0
    %2910 = vmatpush1.msra.mxu0 0.0
    %2911 = vmatprep.subr.mxu0 0.0
    %2912 = vmatpush1.msra.mxu0 0.0
    %2913 = vmatprep.subr.mxu0 0.0
    %2914 = vmatpush1.msra.mxu0 0.0
    %2915 = vmatprep.subr.mxu0 0.0
    %2916 = vmatpush1.msra.mxu0 0.0
    %2917 = vmatprep.subr.mxu0 0.0
    %2918 = vmatpush1.msra.mxu0 0.0
    %2919 = vmatprep.subr.mxu0 0.0
    %2920 = vmatpush1.msra.mxu0 0.0
    %2921 = vmatprep.subr.mxu0 0.0
    %2922 = vmatpush1.msra.mxu0 0.0
    %2923 = vmatprep.subr.mxu0 0.0
    %2924 = vmatpush1.msra.mxu0 0.0
    %2925 = vmatprep.subr.mxu0 0.0
    %2926 = vmatpush1.msra.mxu0 0.0
    %2927 = vmatprep.subr.mxu0 0.0
    %2928 = vmatpush1.msra.mxu0 0.0
    %2929 = vmatprep.mubr.f32.mxu0 0.0
    %v2930 = vand.u32 %v2782, 4294901760
    %2931 = vmatmul.mubr.f32.gmra.mrb[0].mxu0 %v2930
    %v2932 = vpop.f32.mrb[0].mxu0
    %v2933 = vadd.f32 %v2857, %v2932
    %v2934 = vpop.f32.mrb[0].mxu0
    %2935 = vdwg.mxu0
    %2936 = vmatprep.subr.mxu0 0.0
    %v2937 = vand.u32 %v76, 4294901760
    %v2938 = vsub.f32 %v76, %v2937
    %2939 = vmatpush1.msra.mxu0 %v2938
    %2940 = vmatprep.subr.mxu0 0.0
    %2941 = vmatpush1.msra.mxu0 0.0
    %2942 = vmatprep.subr.mxu0 0.0
    %2943 = vmatpush1.msra.mxu0 0.0
    %2944 = vmatprep.subr.mxu0 0.0
    %2945 = vmatpush1.msra.mxu0 0.0
    %2946 = vmatprep.subr.mxu0 0.0
    %2947 = vmatpush1.msra.mxu0 0.0
    %2948 = vmatprep.subr.mxu0 0.0
    %2949 = vmatpush1.msra.mxu0 0.0
    %2950 = vmatprep.subr.mxu0 0.0
    %2951 = vmatpush1.msra.mxu0 0.0
    %2952 = vmatprep.subr.mxu0 0.0
    %2953 = vmatpush1.msra.mxu0 0.0
    %2954 = vmatprep.subr.mxu0 0.0
    %2955 = vmatpush1.msra.mxu0 0.0
    %2956 = vmatprep.subr.mxu0 0.0
    %2957 = vmatpush1.msra.mxu0 0.0
    %2958 = vmatprep.subr.mxu0 0.0
    %2959 = vmatpush1.msra.mxu0 0.0
    %2960 = vmatprep.subr.mxu0 0.0
    %2961 = vmatpush1.msra.mxu0 0.0
    %2962 = vmatprep.subr.mxu0 0.0
    %2963 = vmatpush1.msra.mxu0 0.0
    %2964 = vmatprep.subr.mxu0 0.0
    %2965 = vmatpush1.msra.mxu0 0.0
    %2966 = vmatprep.subr.mxu0 0.0
    %2967 = vmatpush1.msra.mxu0 0.0
    %2968 = vmatprep.subr.mxu0 0.0
    %2969 = vmatpush1.msra.mxu0 0.0
    %2970 = vmatprep.subr.mxu0 0.0
    %2971 = vmatpush1.msra.mxu0 0.0
    %2972 = vmatprep.subr.mxu0 0.0
    %2973 = vmatpush1.msra.mxu0 0.0
    %2974 = vmatprep.subr.mxu0 0.0
    %2975 = vmatpush1.msra.mxu0 0.0
    %2976 = vmatprep.subr.mxu0 0.0
    %2977 = vmatpush1.msra.mxu0 0.0
    %2978 = vmatprep.subr.mxu0 0.0
    %2979 = vmatpush1.msra.mxu0 0.0
    %2980 = vmatprep.subr.mxu0 0.0
    %2981 = vmatpush1.msra.mxu0 0.0
    %2982 = vmatprep.subr.mxu0 0.0
    %2983 = vmatpush1.msra.mxu0 0.0
    %2984 = vmatprep.subr.mxu0 0.0
    %2985 = vmatpush1.msra.mxu0 0.0
    %2986 = vmatprep.subr.mxu0 0.0
    %2987 = vmatpush1.msra.mxu0 0.0
    %2988 = vmatprep.subr.mxu0 0.0
    %2989 = vmatpush1.msra.mxu0 0.0
    %2990 = vmatprep.subr.mxu0 0.0
    %2991 = vmatpush1.msra.mxu0 0.0
    %2992 = vmatprep.subr.mxu0 0.0
    %2993 = vmatpush1.msra.mxu0 0.0
    %2994 = vmatprep.subr.mxu0 0.0
    %2995 = vmatpush1.msra.mxu0 0.0
    %2996 = vmatprep.subr.mxu0 0.0
    %2997 = vmatpush1.msra.mxu0 0.0
    %2998 = vmatprep.subr.mxu0 0.0
    %2999 = vmatpush1.msra.mxu0 0.0
    %3000 = vmatprep.subr.mxu0 0.0
    %3001 = vmatpush1.msra.mxu0 0.0
    %3002 = vmatprep.mubr.f32.mxu0 0.0
    %v3003 = vand.u32 %v2782, 4294901760
    %v3004 = vsub.f32 %v2782, %v3003
    %3005 = vmatmul.mubr.f32.gmra.mrb[0].mxu0 %v3004
    %v3006 = vpop.f32.mrb[0].mxu0
    %v3007 = vadd.f32 %v2933, %v3006
    %v3008 = vpop.f32.mrb[0].mxu0
    %3009 = vdwg.mxu0
    %3010 = vmatprep.subr.mxu0 0.0
    %v3011 = vand.u32 %v76, 4294901760
    %3012 = vmatpush1.msra.mxu0 %v3011
    %3013 = vmatprep.subr.mxu0 0.0
    %3014 = vmatpush1.msra.mxu0 0.0
    %3015 = vmatprep.subr.mxu0 0.0
    %3016 = vmatpush1.msra.mxu0 0.0
    %3017 = vmatprep.subr.mxu0 0.0
    %3018 = vmatpush1.msra.mxu0 0.0
    %3019 = vmatprep.subr.mxu0 0.0
    %3020 = vmatpush1.msra.mxu0 0.0
    %3021 = vmatprep.subr.mxu0 0.0
    %3022 = vmatpush1.msra.mxu0 0.0
    %3023 = vmatprep.subr.mxu0 0.0
    %3024 = vmatpush1.msra.mxu0 0.0
    %3025 = vmatprep.subr.mxu0 0.0
    %3026 = vmatpush1.msra.mxu0 0.0
    %3027 = vmatprep.subr.mxu0 0.0
    %3028 = vmatpush1.msra.mxu0 0.0
    %3029 = vmatprep.subr.mxu0 0.0
    %3030 = vmatpush1.msra.mxu0 0.0
    %3031 = vmatprep.subr.mxu0 0.0
    %3032 = vmatpush1.msra.mxu0 0.0
    %3033 = vmatprep.subr.mxu0 0.0
    %3034 = vmatpush1.msra.mxu0 0.0
    %3035 = vmatprep.subr.mxu0 0.0
    %3036 = vmatpush1.msra.mxu0 0.0
    %3037 = vmatprep.subr.mxu0 0.0
    %3038 = vmatpush1.msra.mxu0 0.0
    %3039 = vmatprep.subr.mxu0 0.0
    %3040 = vmatpush1.msra.mxu0 0.0
    %3041 = vmatprep.subr.mxu0 0.0
    %3042 = vmatpush1.msra.mxu0 0.0
    %3043 = vmatprep.subr.mxu0 0.0
    %3044 = vmatpush1.msra.mxu0 0.0
    %3045 = vmatprep.subr.mxu0 0.0
    %3046 = vmatpush1.msra.mxu0 0.0
    %3047 = vmatprep.subr.mxu0 0.0
    %3048 = vmatpush1.msra.mxu0 0.0
    %3049 = vmatprep.subr.mxu0 0.0
    %3050 = vmatpush1.msra.mxu0 0.0
    %3051 = vmatprep.subr.mxu0 0.0
    %3052 = vmatpush1.msra.mxu0 0.0
    %3053 = vmatprep.subr.mxu0 0.0
    %3054 = vmatpush1.msra.mxu0 0.0
    %3055 = vmatprep.subr.mxu0 0.0
    %3056 = vmatpush1.msra.mxu0 0.0
    %3057 = vmatprep.subr.mxu0 0.0
    %3058 = vmatpush1.msra.mxu0 0.0
    %3059 = vmatprep.subr.mxu0 0.0
    %3060 = vmatpush1.msra.mxu0 0.0
    %3061 = vmatprep.subr.mxu0 0.0
    %3062 = vmatpush1.msra.mxu0 0.0
    %3063 = vmatprep.subr.mxu0 0.0
    %3064 = vmatpush1.msra.mxu0 0.0
    %3065 = vmatprep.subr.mxu0 0.0
    %3066 = vmatpush1.msra.mxu0 0.0
    %3067 = vmatprep.subr.mxu0 0.0
    %3068 = vmatpush1.msra.mxu0 0.0
    %3069 = vmatprep.subr.mxu0 0.0
    %3070 = vmatpush1.msra.mxu0 0.0
    %3071 = vmatprep.subr.mxu0 0.0
    %3072 = vmatpush1.msra.mxu0 0.0
    %3073 = vmatprep.subr.mxu0 0.0
    %3074 = vmatpush1.msra.mxu0 0.0
    %3075 = vmatprep.mubr.f32.mxu0 0.0
    %v3076 = vand.u32 %v2782, 4294901760
    %v3077 = vsub.f32 %v2782, %v3076
    %v3078 = vand.u32 %v3077, 4294901760
    %3079 = vmatmul.mubr.f32.gmra.mrb[0].mxu0 %v3078
    %v3080 = vpop.f32.mrb[0].mxu0
    %v3081 = vadd.f32 %v3007, %v3080
    %v3082 = vpop.f32.mrb[0].mxu0
    %3083 = vdwg.mxu0
    %3084 = vmatprep.subr.mxu0 0.0
    %v3085 = vand.u32 %v76, 4294901760
    %v3086 = vsub.f32 %v76, %v3085
    %v3087 = vand.u32 %v3086, 4294901760
    %3088 = vmatpush1.msra.mxu0 %v3087
    %3089 = vmatprep.subr.mxu0 0.0
    %3090 = vmatpush1.msra.mxu0 0.0
    %3091 = vmatprep.subr.mxu0 0.0
    %3092 = vmatpush1.msra.mxu0 0.0
    %3093 = vmatprep.subr.mxu0 0.0
    %3094 = vmatpush1.msra.mxu0 0.0
    %3095 = vmatprep.subr.mxu0 0.0
    %3096 = vmatpush1.msra.mxu0 0.0
    %3097 = vmatprep.subr.mxu0 0.0
    %3098 = vmatpush1.msra.mxu0 0.0
    %3099 = vmatprep.subr.mxu0 0.0
    %3100 = vmatpush1.msra.mxu0 0.0
    %3101 = vmatprep.subr.mxu0 0.0
    %3102 = vmatpush1.msra.mxu0 0.0
    %3103 = vmatprep.subr.mxu0 0.0
    %3104 = vmatpush1.msra.mxu0 0.0
    %3105 = vmatprep.subr.mxu0 0.0
    %3106 = vmatpush1.msra.mxu0 0.0
    %3107 = vmatprep.subr.mxu0 0.0
    %3108 = vmatpush1.msra.mxu0 0.0
    %3109 = vmatprep.subr.mxu0 0.0
    %3110 = vmatpush1.msra.mxu0 0.0
    %3111 = vmatprep.subr.mxu0 0.0
    %3112 = vmatpush1.msra.mxu0 0.0
    %3113 = vmatprep.subr.mxu0 0.0
    %3114 = vmatpush1.msra.mxu0 0.0
    %3115 = vmatprep.subr.mxu0 0.0
    %3116 = vmatpush1.msra.mxu0 0.0
    %3117 = vmatprep.subr.mxu0 0.0
    %3118 = vmatpush1.msra.mxu0 0.0
    %3119 = vmatprep.subr.mxu0 0.0
    %3120 = vmatpush1.msra.mxu0 0.0
    %3121 = vmatprep.subr.mxu0 0.0
    %3122 = vmatpush1.msra.mxu0 0.0
    %3123 = vmatprep.subr.mxu0 0.0
    %3124 = vmatpush1.msra.mxu0 0.0
    %3125 = vmatprep.subr.mxu0 0.0
    %3126 = vmatpush1.msra.mxu0 0.0
    %3127 = vmatprep.subr.mxu0 0.0
    %3128 = vmatpush1.msra.mxu0 0.0
    %3129 = vmatprep.subr.mxu0 0.0
    %3130 = vmatpush1.msra.mxu0 0.0
    %3131 = vmatprep.subr.mxu0 0.0
    %3132 = vmatpush1.msra.mxu0 0.0
    %3133 = vmatprep.subr.mxu0 0.0
    %3134 = vmatpush1.msra.mxu0 0.0
    %3135 = vmatprep.subr.mxu0 0.0
    %3136 = vmatpush1.msra.mxu0 0.0
    %3137 = vmatprep.subr.mxu0 0.0
    %3138 = vmatpush1.msra.mxu0 0.0
    %3139 = vmatprep.subr.mxu0 0.0
    %3140 = vmatpush1.msra.mxu0 0.0
    %3141 = vmatprep.subr.mxu0 0.0
    %3142 = vmatpush1.msra.mxu0 0.0
    %3143 = vmatprep.subr.mxu0 0.0
    %3144 = vmatpush1.msra.mxu0 0.0
    %3145 = vmatprep.subr.mxu0 0.0
    %3146 = vmatpush1.msra.mxu0 0.0
    %3147 = vmatprep.subr.mxu0 0.0
    %3148 = vmatpush1.msra.mxu0 0.0
    %3149 = vmatprep.subr.mxu0 0.0
    %3150 = vmatpush1.msra.mxu0 0.0
    %3151 = vmatprep.mubr.f32.mxu0 0.0
    %v3152 = vand.u32 %v2782, 4294901760
    %3153 = vmatmul.mubr.f32.gmra.mrb[0].mxu0 %v3152
    %v3154 = vpop.f32.mrb[0].mxu0
    %v3155 = vadd.f32 %v3081, %v3154
    %v3156 = vpop.f32.mrb[0].mxu0
    %3157 = vdwg.mxu0
    %3158 = vmatprep.subr.mxu0 0.0
    %v3159 = vand.u32 %v76, 4294901760
    %3160 = vmatpush1.msra.mxu0 %v3159
    %3161 = vmatprep.subr.mxu0 0.0
    %3162 = vmatpush1.msra.mxu0 0.0
    %3163 = vmatprep.subr.mxu0 0.0
    %3164 = vmatpush1.msra.mxu0 0.0
    %3165 = vmatprep.subr.mxu0 0.0
    %3166 = vmatpush1.msra.mxu0 0.0
    %3167 = vmatprep.subr.mxu0 0.0
    %3168 = vmatpush1.msra.mxu0 0.0
    %3169 = vmatprep.subr.mxu0 0.0
    %3170 = vmatpush1.msra.mxu0 0.0
    %3171 = vmatprep.subr.mxu0 0.0
    %3172 = vmatpush1.msra.mxu0 0.0
    %3173 = vmatprep.subr.mxu0 0.0
    %3174 = vmatpush1.msra.mxu0 0.0
    %3175 = vmatprep.subr.mxu0 0.0
    %3176 = vmatpush1.msra.mxu0 0.0
    %3177 = vmatprep.subr.mxu0 0.0
    %3178 = vmatpush1.msra.mxu0 0.0
    %3179 = vmatprep.subr.mxu0 0.0
    %3180 = vmatpush1.msra.mxu0 0.0
    %3181 = vmatprep.subr.mxu0 0.0
    %3182 = vmatpush1.msra.mxu0 0.0
    %3183 = vmatprep.subr.mxu0 0.0
    %3184 = vmatpush1.msra.mxu0 0.0
    %3185 = vmatprep.subr.mxu0 0.0
    %3186 = vmatpush1.msra.mxu0 0.0
    %3187 = vmatprep.subr.mxu0 0.0
    %3188 = vmatpush1.msra.mxu0 0.0
    %3189 = vmatprep.subr.mxu0 0.0
    %3190 = vmatpush1.msra.mxu0 0.0
    %3191 = vmatprep.subr.mxu0 0.0
    %3192 = vmatpush1.msra.mxu0 0.0
    %3193 = vmatprep.subr.mxu0 0.0
    %3194 = vmatpush1.msra.mxu0 0.0
    %3195 = vmatprep.subr.mxu0 0.0
    %3196 = vmatpush1.msra.mxu0 0.0
    %3197 = vmatprep.subr.mxu0 0.0
    %3198 = vmatpush1.msra.mxu0 0.0
    %3199 = vmatprep.subr.mxu0 0.0
    %3200 = vmatpush1.msra.mxu0 0.0
    %3201 = vmatprep.subr.mxu0 0.0
    %3202 = vmatpush1.msra.mxu0 0.0
    %3203 = vmatprep.subr.mxu0 0.0
    %3204 = vmatpush1.msra.mxu0 0.0
    %3205 = vmatprep.subr.mxu0 0.0
    %3206 = vmatpush1.msra.mxu0 0.0
    %3207 = vmatprep.subr.mxu0 0.0
    %3208 = vmatpush1.msra.mxu0 0.0
    %3209 = vmatprep.subr.mxu0 0.0
    %3210 = vmatpush1.msra.mxu0 0.0
    %3211 = vmatprep.subr.mxu0 0.0
    %3212 = vmatpush1.msra.mxu0 0.0
    %3213 = vmatprep.subr.mxu0 0.0
    %3214 = vmatpush1.msra.mxu0 0.0
    %3215 = vmatprep.subr.mxu0 0.0
    %3216 = vmatpush1.msra.mxu0 0.0
    %3217 = vmatprep.subr.mxu0 0.0
    %3218 = vmatpush1.msra.mxu0 0.0
    %3219 = vmatprep.subr.mxu0 0.0
    %3220 = vmatpush1.msra.mxu0 0.0
    %3221 = vmatprep.subr.mxu0 0.0
    %3222 = vmatpush1.msra.mxu0 0.0
    %3223 = vmatprep.mubr.f32.mxu0 0.0
    %v3224 = vand.u32 %v2782, 4294901760
    %3225 = vmatmul.mubr.f32.gmra.mrb[0].mxu0 %v3224
    %v3226 = vpop.f32.mrb[0].mxu0
    %v3227 = vadd.f32 %v3155, %v3226
    %v3228 = vpop.f32.mrb[0].mxu0
    %3229 = vdwg.mxu0
    %v3231 = vsel %vm86, %v69, 0
    %3233 = vmatprep.subr.mxu0 0.0
    %v3234 = vand.u32 %v77, 4294901760
    %3235 = vmatpush1.msra.mxu0 %v3234
    %3236 = vmatprep.subr.mxu0 0.0
    %3237 = vmatpush1.msra.mxu0 0.0
    %3238 = vmatprep.subr.mxu0 0.0
    %3239 = vmatpush1.msra.mxu0 0.0
    %3240 = vmatprep.subr.mxu0 0.0
    %3241 = vmatpush1.msra.mxu0 0.0
    %3242 = vmatprep.subr.mxu0 0.0
    %3243 = vmatpush1.msra.mxu0 0.0
    %3244 = vmatprep.subr.mxu0 0.0
    %3245 = vmatpush1.msra.mxu0 0.0
    %3246 = vmatprep.subr.mxu0 0.0
    %3247 = vmatpush1.msra.mxu0 0.0
    %3248 = vmatprep.subr.mxu0 0.0
    %3249 = vmatpush1.msra.mxu0 0.0
    %3250 = vmatprep.subr.mxu0 0.0
    %3251 = vmatpush1.msra.mxu0 0.0
    %3252 = vmatprep.subr.mxu0 0.0
    %3253 = vmatpush1.msra.mxu0 0.0
    %3254 = vmatprep.subr.mxu0 0.0
    %3255 = vmatpush1.msra.mxu0 0.0
    %3256 = vmatprep.subr.mxu0 0.0
    %3257 = vmatpush1.msra.mxu0 0.0
    %3258 = vmatprep.subr.mxu0 0.0
    %3259 = vmatpush1.msra.mxu0 0.0
    %3260 = vmatprep.subr.mxu0 0.0
    %3261 = vmatpush1.msra.mxu0 0.0
    %3262 = vmatprep.subr.mxu0 0.0
    %3263 = vmatpush1.msra.mxu0 0.0
    %3264 = vmatprep.subr.mxu0 0.0
    %3265 = vmatpush1.msra.mxu0 0.0
    %3266 = vmatprep.subr.mxu0 0.0
    %3267 = vmatpush1.msra.mxu0 0.0
    %3268 = vmatprep.subr.mxu0 0.0
    %3269 = vmatpush1.msra.mxu0 0.0
    %3270 = vmatprep.subr.mxu0 0.0
    %3271 = vmatpush1.msra.mxu0 0.0
    %3272 = vmatprep.subr.mxu0 0.0
    %3273 = vmatpush1.msra.mxu0 0.0
    %3274 = vmatprep.subr.mxu0 0.0
    %3275 = vmatpush1.msra.mxu0 0.0
    %3276 = vmatprep.subr.mxu0 0.0
    %3277 = vmatpush1.msra.mxu0 0.0
    %3278 = vmatprep.subr.mxu0 0.0
    %3279 = vmatpush1.msra.mxu0 0.0
    %3280 = vmatprep.subr.mxu0 0.0
    %3281 = vmatpush1.msra.mxu0 0.0
    %3282 = vmatprep.subr.mxu0 0.0
    %3283 = vmatpush1.msra.mxu0 0.0
    %3284 = vmatprep.subr.mxu0 0.0
    %3285 = vmatpush1.msra.mxu0 0.0
    %3286 = vmatprep.subr.mxu0 0.0
    %3287 = vmatpush1.msra.mxu0 0.0
    %3288 = vmatprep.subr.mxu0 0.0
    %3289 = vmatpush1.msra.mxu0 0.0
    %3290 = vmatprep.subr.mxu0 0.0
    %3291 = vmatpush1.msra.mxu0 0.0
    %3292 = vmatprep.subr.mxu0 0.0
    %3293 = vmatpush1.msra.mxu0 0.0
    %3294 = vmatprep.subr.mxu0 0.0
    %3295 = vmatpush1.msra.mxu0 0.0
    %3296 = vmatprep.subr.mxu0 0.0
    %3297 = vmatpush1.msra.mxu0 0.0
    %3298 = vmatprep.mubr.f32.mxu0 0.0
    %v3299 = vand.u32 %v3231, 4294901760
    %v3300 = vsub.f32 %v3231, %v3299
    %v3301 = vand.u32 %v3300, 4294901760
    %v3302 = vsub.f32 %v3300, %v3301
    %v3303 = vand.u32 %v3302, 4294901760
    %3304 = vmatmul.mubr.f32.gmra.mrb[0].mxu0 %v3303
    %v3305 = vpop.f32.mrb[0].mxu0
    %v3306 = vadd.f32 0.0, %v3305
    %v3307 = vpop.f32.mrb[0].mxu0
    %3308 = vdwg.mxu0
    %3309 = vmatprep.subr.mxu0 0.0
    %v3310 = vand.u32 %v77, 4294901760
    %v3311 = vsub.f32 %v77, %v3310
    %v3312 = vand.u32 %v3311, 4294901760
    %v3313 = vsub.f32 %v3311, %v3312
    %v3314 = vand.u32 %v3313, 4294901760
    %3315 = vmatpush1.msra.mxu0 %v3314
    %3316 = vmatprep.subr.mxu0 0.0
    %3317 = vmatpush1.msra.mxu0 0.0
    %3318 = vmatprep.subr.mxu0 0.0
    %3319 = vmatpush1.msra.mxu0 0.0
    %3320 = vmatprep.subr.mxu0 0.0
    %3321 = vmatpush1.msra.mxu0 0.0
    %3322 = vmatprep.subr.mxu0 0.0
    %3323 = vmatpush1.msra.mxu0 0.0
    %3324 = vmatprep.subr.mxu0 0.0
    %3325 = vmatpush1.msra.mxu0 0.0
    %3326 = vmatprep.subr.mxu0 0.0
    %3327 = vmatpush1.msra.mxu0 0.0
    %3328 = vmatprep.subr.mxu0 0.0
    %3329 = vmatpush1.msra.mxu0 0.0
    %3330 = vmatprep.subr.mxu0 0.0
    %3331 = vmatpush1.msra.mxu0 0.0
    %3332 = vmatprep.subr.mxu0 0.0
    %3333 = vmatpush1.msra.mxu0 0.0
    %3334 = vmatprep.subr.mxu0 0.0
    %3335 = vmatpush1.msra.mxu0 0.0
    %3336 = vmatprep.subr.mxu0 0.0
    %3337 = vmatpush1.msra.mxu0 0.0
    %3338 = vmatprep.subr.mxu0 0.0
    %3339 = vmatpush1.msra.mxu0 0.0
    %3340 = vmatprep.subr.mxu0 0.0
    %3341 = vmatpush1.msra.mxu0 0.0
    %3342 = vmatprep.subr.mxu0 0.0
    %3343 = vmatpush1.msra.mxu0 0.0
    %3344 = vmatprep.subr.mxu0 0.0
    %3345 = vmatpush1.msra.mxu0 0.0
    %3346 = vmatprep.subr.mxu0 0.0
    %3347 = vmatpush1.msra.mxu0 0.0
    %3348 = vmatprep.subr.mxu0 0.0
    %3349 = vmatpush1.msra.mxu0 0.0
    %3350 = vmatprep.subr.mxu0 0.0
    %3351 = vmatpush1.msra.mxu0 0.0
    %3352 = vmatprep.subr.mxu0 0.0
    %3353 = vmatpush1.msra.mxu0 0.0
    %3354 = vmatprep.subr.mxu0 0.0
    %3355 = vmatpush1.msra.mxu0 0.0
    %3356 = vmatprep.subr.mxu0 0.0
    %3357 = vmatpush1.msra.mxu0 0.0
    %3358 = vmatprep.subr.mxu0 0.0
    %3359 = vmatpush1.msra.mxu0 0.0
    %3360 = vmatprep.subr.mxu0 0.0
    %3361 = vmatpush1.msra.mxu0 0.0
    %3362 = vmatprep.subr.mxu0 0.0
    %3363 = vmatpush1.msra.mxu0 0.0
    %3364 = vmatprep.subr.mxu0 0.0
    %3365 = vmatpush1.msra.mxu0 0.0
    %3366 = vmatprep.subr.mxu0 0.0
    %3367 = vmatpush1.msra.mxu0 0.0
    %3368 = vmatprep.subr.mxu0 0.0
    %3369 = vmatpush1.msra.mxu0 0.0
    %3370 = vmatprep.subr.mxu0 0.0
    %3371 = vmatpush1.msra.mxu0 0.0
    %3372 = vmatprep.subr.mxu0 0.0
    %3373 = vmatpush1.msra.mxu0 0.0
    %3374 = vmatprep.subr.mxu0 0.0
    %3375 = vmatpush1.msra.mxu0 0.0
    %3376 = vmatprep.subr.mxu0 0.0
    %3377 = vmatpush1.msra.mxu0 0.0
    %3378 = vmatprep.mubr.f32.mxu0 0.0
    %v3379 = vand.u32 %v3231, 4294901760
    %3380 = vmatmul.mubr.f32.gmra.mrb[0].mxu0 %v3379
    %v3381 = vpop.f32.mrb[0].mxu0
    %v3382 = vadd.f32 %v3306, %v3381
    %v3383 = vpop.f32.mrb[0].mxu0
    %3384 = vdwg.mxu0
    %3385 = vmatprep.subr.mxu0 0.0
    %v3386 = vand.u32 %v77, 4294901760
    %v3387 = vsub.f32 %v77, %v3386
    %3388 = vmatpush1.msra.mxu0 %v3387
    %3389 = vmatprep.subr.mxu0 0.0
    %3390 = vmatpush1.msra.mxu0 0.0
    %3391 = vmatprep.subr.mxu0 0.0
    %3392 = vmatpush1.msra.mxu0 0.0
    %3393 = vmatprep.subr.mxu0 0.0
    %3394 = vmatpush1.msra.mxu0 0.0
    %3395 = vmatprep.subr.mxu0 0.0
    %3396 = vmatpush1.msra.mxu0 0.0
    %3397 = vmatprep.subr.mxu0 0.0
    %3398 = vmatpush1.msra.mxu0 0.0
    %3399 = vmatprep.subr.mxu0 0.0
    %3400 = vmatpush1.msra.mxu0 0.0
    %3401 = vmatprep.subr.mxu0 0.0
    %3402 = vmatpush1.msra.mxu0 0.0
    %3403 = vmatprep.subr.mxu0 0.0
    %3404 = vmatpush1.msra.mxu0 0.0
    %3405 = vmatprep.subr.mxu0 0.0
    %3406 = vmatpush1.msra.mxu0 0.0
    %3407 = vmatprep.subr.mxu0 0.0
    %3408 = vmatpush1.msra.mxu0 0.0
    %3409 = vmatprep.subr.mxu0 0.0
    %3410 = vmatpush1.msra.mxu0 0.0
    %3411 = vmatprep.subr.mxu0 0.0
    %3412 = vmatpush1.msra.mxu0 0.0
    %3413 = vmatprep.subr.mxu0 0.0
    %3414 = vmatpush1.msra.mxu0 0.0
    %3415 = vmatprep.subr.mxu0 0.0
    %3416 = vmatpush1.msra.mxu0 0.0
    %3417 = vmatprep.subr.mxu0 0.0
    %3418 = vmatpush1.msra.mxu0 0.0
    %3419 = vmatprep.subr.mxu0 0.0
    %3420 = vmatpush1.msra.mxu0 0.0
    %3421 = vmatprep.subr.mxu0 0.0
    %3422 = vmatpush1.msra.mxu0 0.0
    %3423 = vmatprep.subr.mxu0 0.0
    %3424 = vmatpush1.msra.mxu0 0.0
    %3425 = vmatprep.subr.mxu0 0.0
    %3426 = vmatpush1.msra.mxu0 0.0
    %3427 = vmatprep.subr.mxu0 0.0
    %3428 = vmatpush1.msra.mxu0 0.0
    %3429 = vmatprep.subr.mxu0 0.0
    %3430 = vmatpush1.msra.mxu0 0.0
    %3431 = vmatprep.subr.mxu0 0.0
    %3432 = vmatpush1.msra.mxu0 0.0
    %3433 = vmatprep.subr.mxu0 0.0
    %3434 = vmatpush1.msra.mxu0 0.0
    %3435 = vmatprep.subr.mxu0 0.0
    %3436 = vmatpush1.msra.mxu0 0.0
    %3437 = vmatprep.subr.mxu0 0.0
    %3438 = vmatpush1.msra.mxu0 0.0
    %3439 = vmatprep.subr.mxu0 0.0
    %3440 = vmatpush1.msra.mxu0 0.0
    %3441 = vmatprep.subr.mxu0 0.0
    %3442 = vmatpush1.msra.mxu0 0.0
    %3443 = vmatprep.subr.mxu0 0.0
    %3444 = vmatpush1.msra.mxu0 0.0
    %3445 = vmatprep.subr.mxu0 0.0
    %3446 = vmatpush1.msra.mxu0 0.0
    %3447 = vmatprep.subr.mxu0 0.0
    %3448 = vmatpush1.msra.mxu0 0.0
    %3449 = vmatprep.subr.mxu0 0.0
    %3450 = vmatpush1.msra.mxu0 0.0
    %3451 = vmatprep.mubr.f32.mxu0 0.0
    %v3452 = vand.u32 %v3231, 4294901760
    %v3453 = vsub.f32 %v3231, %v3452
    %3454 = vmatmul.mubr.f32.gmra.mrb[0].mxu0 %v3453
    %v3455 = vpop.f32.mrb[0].mxu0
    %v3456 = vadd.f32 %v3382, %v3455
    %v3457 = vpop.f32.mrb[0].mxu0
    %3458 = vdwg.mxu0
    %3459 = vmatprep.subr.mxu0 0.0
    %v3460 = vand.u32 %v77, 4294901760
    %3461 = vmatpush1.msra.mxu0 %v3460
    %3462 = vmatprep.subr.mxu0 0.0
    %3463 = vmatpush1.msra.mxu0 0.0
    %3464 = vmatprep.subr.mxu0 0.0
    %3465 = vmatpush1.msra.mxu0 0.0
    %3466 = vmatprep.subr.mxu0 0.0
    %3467 = vmatpush1.msra.mxu0 0.0
    %3468 = vmatprep.subr.mxu0 0.0
    %3469 = vmatpush1.msra.mxu0 0.0
    %3470 = vmatprep.subr.mxu0 0.0
    %3471 = vmatpush1.msra.mxu0 0.0
    %3472 = vmatprep.subr.mxu0 0.0
    %3473 = vmatpush1.msra.mxu0 0.0
    %3474 = vmatprep.subr.mxu0 0.0
    %3475 = vmatpush1.msra.mxu0 0.0
    %3476 = vmatprep.subr.mxu0 0.0
    %3477 = vmatpush1.msra.mxu0 0.0
    %3478 = vmatprep.subr.mxu0 0.0
    %3479 = vmatpush1.msra.mxu0 0.0
    %3480 = vmatprep.subr.mxu0 0.0
    %3481 = vmatpush1.msra.mxu0 0.0
    %3482 = vmatprep.subr.mxu0 0.0
    %3483 = vmatpush1.msra.mxu0 0.0
    %3484 = vmatprep.subr.mxu0 0.0
    %3485 = vmatpush1.msra.mxu0 0.0
    %3486 = vmatprep.subr.mxu0 0.0
    %3487 = vmatpush1.msra.mxu0 0.0
    %3488 = vmatprep.subr.mxu0 0.0
    %3489 = vmatpush1.msra.mxu0 0.0
    %3490 = vmatprep.subr.mxu0 0.0
    %3491 = vmatpush1.msra.mxu0 0.0
    %3492 = vmatprep.subr.mxu0 0.0
    %3493 = vmatpush1.msra.mxu0 0.0
    %3494 = vmatprep.subr.mxu0 0.0
    %3495 = vmatpush1.msra.mxu0 0.0
    %3496 = vmatprep.subr.mxu0 0.0
    %3497 = vmatpush1.msra.mxu0 0.0
    %3498 = vmatprep.subr.mxu0 0.0
    %3499 = vmatpush1.msra.mxu0 0.0
    %3500 = vmatprep.subr.mxu0 0.0
    %3501 = vmatpush1.msra.mxu0 0.0
    %3502 = vmatprep.subr.mxu0 0.0
    %3503 = vmatpush1.msra.mxu0 0.0
    %3504 = vmatprep.subr.mxu0 0.0
    %3505 = vmatpush1.msra.mxu0 0.0
    %3506 = vmatprep.subr.mxu0 0.0
    %3507 = vmatpush1.msra.mxu0 0.0
    %3508 = vmatprep.subr.mxu0 0.0
    %3509 = vmatpush1.msra.mxu0 0.0
    %3510 = vmatprep.subr.mxu0 0.0
    %3511 = vmatpush1.msra.mxu0 0.0
    %3512 = vmatprep.subr.mxu0 0.0
    %3513 = vmatpush1.msra.mxu0 0.0
    %3514 = vmatprep.subr.mxu0 0.0
    %3515 = vmatpush1.msra.mxu0 0.0
    %3516 = vmatprep.subr.mxu0 0.0
    %3517 = vmatpush1.msra.mxu0 0.0
    %3518 = vmatprep.subr.mxu0 0.0
    %3519 = vmatpush1.msra.mxu0 0.0
    %3520 = vmatprep.subr.mxu0 0.0
    %3521 = vmatpush1.msra.mxu0 0.0
    %3522 = vmatprep.subr.mxu0 0.0
    %3523 = vmatpush1.msra.mxu0 0.0
    %3524 = vmatprep.mubr.f32.mxu0 0.0
    %v3525 = vand.u32 %v3231, 4294901760
    %v3526 = vsub.f32 %v3231, %v3525
    %v3527 = vand.u32 %v3526, 4294901760
    %3528 = vmatmul.mubr.f32.gmra.mrb[0].mxu0 %v3527
    %v3529 = vpop.f32.mrb[0].mxu0
    %v3530 = vadd.f32 %v3456, %v3529
    %v3531 = vpop.f32.mrb[0].mxu0
    %3532 = vdwg.mxu0
    %3533 = vmatprep.subr.mxu0 0.0
    %v3534 = vand.u32 %v77, 4294901760
    %v3535 = vsub.f32 %v77, %v3534
    %v3536 = vand.u32 %v3535, 4294901760
    %3537 = vmatpush1.msra.mxu0 %v3536
    %3538 = vmatprep.subr.mxu0 0.0
    %3539 = vmatpush1.msra.mxu0 0.0
    %3540 = vmatprep.subr.mxu0 0.0
    %3541 = vmatpush1.msra.mxu0 0.0
    %3542 = vmatprep.subr.mxu0 0.0
    %3543 = vmatpush1.msra.mxu0 0.0
    %3544 = vmatprep.subr.mxu0 0.0
    %3545 = vmatpush1.msra.mxu0 0.0
    %3546 = vmatprep.subr.mxu0 0.0
    %3547 = vmatpush1.msra.mxu0 0.0
    %3548 = vmatprep.subr.mxu0 0.0
    %3549 = vmatpush1.msra.mxu0 0.0
    %3550 = vmatprep.subr.mxu0 0.0
    %3551 = vmatpush1.msra.mxu0 0.0
    %3552 = vmatprep.subr.mxu0 0.0
    %3553 = vmatpush1.msra.mxu0 0.0
    %3554 = vmatprep.subr.mxu0 0.0
    %3555 = vmatpush1.msra.mxu0 0.0
    %3556 = vmatprep.subr.mxu0 0.0
    %3557 = vmatpush1.msra.mxu0 0.0
    %3558 = vmatprep.subr.mxu0 0.0
    %3559 = vmatpush1.msra.mxu0 0.0
    %3560 = vmatprep.subr.mxu0 0.0
    %3561 = vmatpush1.msra.mxu0 0.0
    %3562 = vmatprep.subr.mxu0 0.0
    %3563 = vmatpush1.msra.mxu0 0.0
    %3564 = vmatprep.subr.mxu0 0.0
    %3565 = vmatpush1.msra.mxu0 0.0
    %3566 = vmatprep.subr.mxu0 0.0
    %3567 = vmatpush1.msra.mxu0 0.0
    %3568 = vmatprep.subr.mxu0 0.0
    %3569 = vmatpush1.msra.mxu0 0.0
    %3570 = vmatprep.subr.mxu0 0.0
    %3571 = vmatpush1.msra.mxu0 0.0
    %3572 = vmatprep.subr.mxu0 0.0
    %3573 = vmatpush1.msra.mxu0 0.0
    %3574 = vmatprep.subr.mxu0 0.0
    %3575 = vmatpush1.msra.mxu0 0.0
    %3576 = vmatprep.subr.mxu0 0.0
    %3577 = vmatpush1.msra.mxu0 0.0
    %3578 = vmatprep.subr.mxu0 0.0
    %3579 = vmatpush1.msra.mxu0 0.0
    %3580 = vmatprep.subr.mxu0 0.0
    %3581 = vmatpush1.msra.mxu0 0.0
    %3582 = vmatprep.subr.mxu0 0.0
    %3583 = vmatpush1.msra.mxu0 0.0
    %3584 = vmatprep.subr.mxu0 0.0
    %3585 = vmatpush1.msra.mxu0 0.0
    %3586 = vmatprep.subr.mxu0 0.0
    %3587 = vmatpush1.msra.mxu0 0.0
    %3588 = vmatprep.subr.mxu0 0.0
    %3589 = vmatpush1.msra.mxu0 0.0
    %3590 = vmatprep.subr.mxu0 0.0
    %3591 = vmatpush1.msra.mxu0 0.0
    %3592 = vmatprep.subr.mxu0 0.0
    %3593 = vmatpush1.msra.mxu0 0.0
    %3594 = vmatprep.subr.mxu0 0.0
    %3595 = vmatpush1.msra.mxu0 0.0
    %3596 = vmatprep.subr.mxu0 0.0
    %3597 = vmatpush1.msra.mxu0 0.0
    %3598 = vmatprep.subr.mxu0 0.0
    %3599 = vmatpush1.msra.mxu0 0.0
    %3600 = vmatprep.mubr.f32.mxu0 0.0
    %v3601 = vand.u32 %v3231, 4294901760
    %3602 = vmatmul.mubr.f32.gmra.mrb[0].mxu0 %v3601
    %v3603 = vpop.f32.mrb[0].mxu0
    %v3604 = vadd.f32 %v3530, %v3603
    %v3605 = vpop.f32.mrb[0].mxu0
    %3606 = vdwg.mxu0
    %3607 = vmatprep.subr.mxu0 0.0
    %v3608 = vand.u32 %v77, 4294901760
    %3609 = vmatpush1.msra.mxu0 %v3608
    %3610 = vmatprep.subr.mxu0 0.0
    %3611 = vmatpush1.msra.mxu0 0.0
    %3612 = vmatprep.subr.mxu0 0.0
    %3613 = vmatpush1.msra.mxu0 0.0
    %3614 = vmatprep.subr.mxu0 0.0
    %3615 = vmatpush1.msra.mxu0 0.0
    %3616 = vmatprep.subr.mxu0 0.0
    %3617 = vmatpush1.msra.mxu0 0.0
    %3618 = vmatprep.subr.mxu0 0.0
    %3619 = vmatpush1.msra.mxu0 0.0
    %3620 = vmatprep.subr.mxu0 0.0
    %3621 = vmatpush1.msra.mxu0 0.0
    %3622 = vmatprep.subr.mxu0 0.0
    %3623 = vmatpush1.msra.mxu0 0.0
    %3624 = vmatprep.subr.mxu0 0.0
    %3625 = vmatpush1.msra.mxu0 0.0
    %3626 = vmatprep.subr.mxu0 0.0
    %3627 = vmatpush1.msra.mxu0 0.0
    %3628 = vmatprep.subr.mxu0 0.0
    %3629 = vmatpush1.msra.mxu0 0.0
    %3630 = vmatprep.subr.mxu0 0.0
    %3631 = vmatpush1.msra.mxu0 0.0
    %3632 = vmatprep.subr.mxu0 0.0
    %3633 = vmatpush1.msra.mxu0 0.0
    %3634 = vmatprep.subr.mxu0 0.0
    %3635 = vmatpush1.msra.mxu0 0.0
    %3636 = vmatprep.subr.mxu0 0.0
    %3637 = vmatpush1.msra.mxu0 0.0
    %3638 = vmatprep.subr.mxu0 0.0
    %3639 = vmatpush1.msra.mxu0 0.0
    %3640 = vmatprep.subr.mxu0 0.0
    %3641 = vmatpush1.msra.mxu0 0.0
    %3642 = vmatprep.subr.mxu0 0.0
    %3643 = vmatpush1.msra.mxu0 0.0
    %3644 = vmatprep.subr.mxu0 0.0
    %3645 = vmatpush1.msra.mxu0 0.0
    %3646 = vmatprep.subr.mxu0 0.0
    %3647 = vmatpush1.msra.mxu0 0.0
    %3648 = vmatprep.subr.mxu0 0.0
    %3649 = vmatpush1.msra.mxu0 0.0
    %3650 = vmatprep.subr.mxu0 0.0
    %3651 = vmatpush1.msra.mxu0 0.0
    %3652 = vmatprep.subr.mxu0 0.0
    %3653 = vmatpush1.msra.mxu0 0.0
    %3654 = vmatprep.subr.mxu0 0.0
    %3655 = vmatpush1.msra.mxu0 0.0
    %3656 = vmatprep.subr.mxu0 0.0
    %3657 = vmatpush1.msra.mxu0 0.0
    %3658 = vmatprep.subr.mxu0 0.0
    %3659 = vmatpush1.msra.mxu0 0.0
    %3660 = vmatprep.subr.mxu0 0.0
    %3661 = vmatpush1.msra.mxu0 0.0
    %3662 = vmatprep.subr.mxu0 0.0
    %3663 = vmatpush1.msra.mxu0 0.0
    %3664 = vmatprep.subr.mxu0 0.0
    %3665 = vmatpush1.msra.mxu0 0.0
    %3666 = vmatprep.subr.mxu0 0.0
    %3667 = vmatpush1.msra.mxu0 0.0
    %3668 = vmatprep.subr.mxu0 0.0
    %3669 = vmatpush1.msra.mxu0 0.0
    %3670 = vmatprep.subr.mxu0 0.0
    %3671 = vmatpush1.msra.mxu0 0.0
    %3672 = vmatprep.mubr.f32.mxu0 0.0
    %v3673 = vand.u32 %v3231, 4294901760
    %3674 = vmatmul.mubr.f32.gmra.mrb[0].mxu0 %v3673
    %v3675 = vpop.f32.mrb[0].mxu0
    %v3676 = vadd.f32 %v3604, %v3675
    %v3677 = vpop.f32.mrb[0].mxu0
    %3678 = vdwg.mxu0
    %v3679 = vadd.f32 %v78, %v533
    %v3680 = vadd.f32 %v79, %v982
    %v3681 = vadd.f32 %v80, %v1431
    %v3682 = vadd.f32 %v81, %v1880
    %v3683 = vadd.f32 %v82, %v2329
    %v3684 = vadd.f32 %v83, %v2778
    %v3685 = vadd.f32 %v84, %v3227
    %v3686 = vadd.f32 %v85, %v3676
    %vm3687 = vcmask 253952
    %3688 = vst.msk [vmem:[#allocation2] sm:$0x1] %vm3687, %v3679
    %3689 = vst.msk [vmem:[#allocation2 + $0x1] sm:$0x1] %vm3687, %v3680
    %3690 = vst.msk [vmem:[#allocation2 + $0x2] sm:$0x1] %vm3687, %v3681
    %3691 = vst.msk [vmem:[#allocation2 + $0x3] sm:$0x1] %vm3687, %v3682
    %3692 = vst.msk [vmem:[#allocation2 + $0x4] sm:$0x1] %vm3687, %v3683
    %3693 = vst.msk [vmem:[#allocation2 + $0x5] sm:$0x1] %vm3687, %v3684
    %3694 = vst.msk [vmem:[#allocation2 + $0x6] sm:$0x1] %vm3687, %v3685
    %3695 = vst.msk [vmem:[#allocation2 + $0x7] sm:$0x1] %vm3687, %v3686
    %v3696 = vld [vmem:[#allocation3] sm:$0x1]
    %v3697 = vld [vmem:[#allocation3 + $0x1] sm:$0x1]
    %v3698 = vld [vmem:[#allocation3 + $0x2] sm:$0x1]
    %v3699 = vld [vmem:[#allocation3 + $0x3] sm:$0x1]
    %v3700 = vld [vmem:[#allocation3 + $0x4] sm:$0x1]
    %v3701 = vld [vmem:[#allocation3 + $0x5] sm:$0x1]
    %v3702 = vld [vmem:[#allocation3 + $0x6] sm:$0x1]
    %v3703 = vld [vmem:[#allocation3 + $0x7] sm:$0x1]
    %vm3704 = vcmask 57344
    %v3705 = vsel %vm3704, %v62, 0.0
    %3706 = vadd.xlane.f32.xlu0 %v3705
    %v3707 = vpop.xlane.xlu0 %3706
    %v3708 = vsel %vm3704, %v63, 0.0
    %3709 = vadd.xlane.f32.xlu0 %v3708
    %v3710 = vpop.xlane.xlu0 %3709
    %v3711 = vsel %vm3704, %v64, 0.0
    %3712 = vadd.xlane.f32.xlu0 %v3711
    %v3713 = vpop.xlane.xlu0 %3712
    %v3714 = vsel %vm3704, %v65, 0.0
    %3715 = vadd.xlane.f32.xlu0 %v3714
    %v3716 = vpop.xlane.xlu0 %3715
    %v3717 = vsel %vm3704, %v66, 0.0
    %3718 = vadd.xlane.f32.xlu0 %v3717
    %v3719 = vpop.xlane.xlu0 %3718
    %v3720 = vsel %vm3704, %v67, 0.0
    %3721 = vadd.xlane.f32.xlu0 %v3720
    %v3722 = vpop.xlane.xlu0 %3721
    %v3723 = vsel %vm3704, %v68, 0.0
    %3724 = vadd.xlane.f32.xlu0 %v3723
    %v3725 = vpop.xlane.xlu0 %3724
    %v3726 = vsel %vm3704, %v69, 0.0
    %3727 = vadd.xlane.f32.xlu0 %v3726
    %v3728 = vpop.xlane.xlu0 %3727
    %v3729 = vadd.f32 %v3696, %v3707
    %v3730 = vadd.f32 %v3697, %v3710
    %v3731 = vadd.f32 %v3698, %v3713
    %v3732 = vadd.f32 %v3699, %v3716
    %v3733 = vadd.f32 %v3700, %v3719
    %v3734 = vadd.f32 %v3701, %v3722
    %v3735 = vadd.f32 %v3702, %v3725
    %v3736 = vadd.f32 %v3703, %v3728
    %vm3737 = vcmask 0
    %3738 = vst.msk [vmem:[#allocation3] sm:$0x1] %vm3737, %v3729
    %3739 = vst.msk [vmem:[#allocation3 + $0x1] sm:$0x1] %vm3737, %v3730
    %3740 = vst.msk [vmem:[#allocation3 + $0x2] sm:$0x1] %vm3737, %v3731
    %3741 = vst.msk [vmem:[#allocation3 + $0x3] sm:$0x1] %vm3737, %v3732
    %3742 = vst.msk [vmem:[#allocation3 + $0x4] sm:$0x1] %vm3737, %v3733
    %3743 = vst.msk [vmem:[#allocation3 + $0x5] sm:$0x1] %vm3737, %v3734
    %3744 = vst.msk [vmem:[#allocation3 + $0x6] sm:$0x1] %vm3737, %v3735
    %3745 = vst.msk [vmem:[#allocation3 + $0x7] sm:$0x1] %vm3737, %v3736
    // Predicated region
    $region22: #{tpu_custom_call.1} parent=1 // pred_check
      %p3746 = pneg %p40
    $region23: #{tpu_custom_call.1} parent=1 // pred_check_branch
      %3748 = sbr.rel (%p3746) target = $region25
    $region24: #{tpu_custom_call.1} parent=1 // pred_region
      %v3749 = vld [vmem:[#allocation3] sm:$0x1]
      %v3750 = vld [vmem:[#allocation3 + $0x1] sm:$0x1]
      %v3751 = vld [vmem:[#allocation3 + $0x2] sm:$0x1]
      %v3752 = vld [vmem:[#allocation3 + $0x3] sm:$0x1]
      %v3753 = vld [vmem:[#allocation3 + $0x4] sm:$0x1]
      %v3754 = vld [vmem:[#allocation3 + $0x5] sm:$0x1]
      %v3755 = vld [vmem:[#allocation3 + $0x6] sm:$0x1]
      %v3756 = vld [vmem:[#allocation3 + $0x7] sm:$0x1]
      %v3757 = vmax.f32 %v3749, 1e-09
      %v3758 = vmax.f32 %v3750, 1e-09
      %v3759 = vmax.f32 %v3751, 1e-09
      %v3760 = vmax.f32 %v3752, 1e-09
      %v3761 = vmax.f32 %v3753, 1e-09
      %v3762 = vmax.f32 %v3754, 1e-09
      %v3763 = vmax.f32 %v3755, 1e-09
      %v3764 = vmax.f32 %v3756, 1e-09
      %v3765 = vld [vmem:[#allocation2] sm:$0x1]
      %v3766 = vld [vmem:[#allocation2 + $0x1] sm:$0x1]
      %v3767 = vld [vmem:[#allocation2 + $0x2] sm:$0x1]
      %v3768 = vld [vmem:[#allocation2 + $0x3] sm:$0x1]
      %v3769 = vld [vmem:[#allocation2 + $0x4] sm:$0x1]
      %v3770 = vld [vmem:[#allocation2 + $0x5] sm:$0x1]
      %v3771 = vld [vmem:[#allocation2 + $0x6] sm:$0x1]
      %v3772 = vld [vmem:[#allocation2 + $0x7] sm:$0x1]
      %3774 = vset.pattern.permute.xlu0 0
      %3775 = vperm.xlu0 %3774, %v3757
      %v3776 = vpop.permute.xlu0 %3775
      %v3778 = vlaneseq
      %v3779 = vshrl.u32 %v3778, 7
      %v3780 = vsub.s32 0, %v3779
      %v3781 = vrot.slane %v3776, %v3780
      %3783 = vset.pattern.permute.xlu0 0
      %3784 = vperm.xlu0 %3783, %v3758
      %v3785 = vpop.permute.xlu0 %3784
      %v3787 = vlaneseq
      %v3788 = vshrl.u32 %v3787, 7
      %v3789 = vsub.s32 0, %v3788
      %v3790 = vrot.slane %v3785, %v3789
      %3792 = vset.pattern.permute.xlu0 0
      %3793 = vperm.xlu0 %3792, %v3759
      %v3794 = vpop.permute.xlu0 %3793
      %v3796 = vlaneseq
      %v3797 = vshrl.u32 %v3796, 7
      %v3798 = vsub.s32 0, %v3797
      %v3799 = vrot.slane %v3794, %v3798
      %3801 = vset.pattern.permute.xlu0 0
      %3802 = vperm.xlu0 %3801, %v3760
      %v3803 = vpop.permute.xlu0 %3802
      %v3805 = vlaneseq
      %v3806 = vshrl.u32 %v3805, 7
      %v3807 = vsub.s32 0, %v3806
      %v3808 = vrot.slane %v3803, %v3807
      %3810 = vset.pattern.permute.xlu0 0
      %3811 = vperm.xlu0 %3810, %v3761
      %v3812 = vpop.permute.xlu0 %3811
      %v3814 = vlaneseq
      %v3815 = vshrl.u32 %v3814, 7
      %v3816 = vsub.s32 0, %v3815
      %v3817 = vrot.slane %v3812, %v3816
      %3819 = vset.pattern.permute.xlu0 0
      %3820 = vperm.xlu0 %3819, %v3762
      %v3821 = vpop.permute.xlu0 %3820
      %v3823 = vlaneseq
      %v3824 = vshrl.u32 %v3823, 7
      %v3825 = vsub.s32 0, %v3824
      %v3826 = vrot.slane %v3821, %v3825
      %3828 = vset.pattern.permute.xlu0 0
      %3829 = vperm.xlu0 %3828, %v3763
      %v3830 = vpop.permute.xlu0 %3829
      %v3832 = vlaneseq
      %v3833 = vshrl.u32 %v3832, 7
      %v3834 = vsub.s32 0, %v3833
      %v3835 = vrot.slane %v3830, %v3834
      %3837 = vset.pattern.permute.xlu0 0
      %3838 = vperm.xlu0 %3837, %v3764
      %v3839 = vpop.permute.xlu0 %3838
      %v3841 = vlaneseq
      %v3842 = vshrl.u32 %v3841, 7
      %v3843 = vsub.s32 0, %v3842
      %v3844 = vrot.slane %v3839, %v3843
      %v3845 = vrcp.pop %v3781
      %v3846 = vmul.f32 %v3765, %v3845
      %v3847 = vrcp.pop %v3790
      %v3848 = vmul.f32 %v3766, %v3847
      %v3849 = vrcp.pop %v3799
      %v3850 = vmul.f32 %v3767, %v3849
      %v3851 = vrcp.pop %v3808
      %v3852 = vmul.f32 %v3768, %v3851
      %v3853 = vrcp.pop %v3817
      %v3854 = vmul.f32 %v3769, %v3853
      %v3855 = vrcp.pop %v3826
      %v3856 = vmul.f32 %v3770, %v3855
      %v3857 = vrcp.pop %v3835
      %v3858 = vmul.f32 %v3771, %v3857
      %v3859 = vrcp.pop %v3844
      %v3860 = vmul.f32 %v3772, %v3859
      %3861 = vst.msk [vmem:[#allocation9] sm:$0x1] %vm3687, %v3846
      %3862 = vst.msk [vmem:[#allocation9 + $0x1] sm:$0x1] %vm3687, %v3848
      %3863 = vst.msk [vmem:[#allocation9 + $0x2] sm:$0x1] %vm3687, %v3850
      %3864 = vst.msk [vmem:[#allocation9 + $0x3] sm:$0x1] %vm3687, %v3852
      %3865 = vst.msk [vmem:[#allocation9 + $0x4] sm:$0x1] %vm3687, %v3854
      %3866 = vst.msk [vmem:[#allocation9 + $0x5] sm:$0x1] %vm3687, %v3856
      %3867 = vst.msk [vmem:[#allocation9 + $0x6] sm:$0x1] %vm3687, %v3858
      %3868 = vst.msk [vmem:[#allocation9 + $0x7] sm:$0x1] %vm3687, %v3860
    $region25: #{tpu_custom_call.1} parent=1 // pred_fallthru
      _
    // Predicated region
    $region26: #{tpu_custom_call.1} parent=1 // pred_check
      _
    $region27: #{tpu_custom_call.1} parent=1 // pred_check_branch
      %3870 = sbr.rel (0) target = $region29
    $region28: #{tpu_custom_call.1} parent=1 // pred_region
      %s3872 = ssub.s32 128, 128
      %3873 = vsyncadd [#allocation6], %s3872
      %s3874 = sshll.u32 [#allocation9], 4
      %s3875 = int_to_ptr.vmem [resolvable:$true] %s3874
      %3880 = dma.vmem_to_hbm [thread:$0]  %s3875, 128, %s2, [#allocation6], 16, 16, 1
    $region29: #{tpu_custom_call.1} parent=1 // pred_fallthru
      _
    // Predicated region
    $region30: #{tpu_custom_call.1} parent=1 // pred_check
      _
    $region31: #{tpu_custom_call.1} parent=1 // pred_check_branch
      %3882 = sbr.rel (0) target = $region33
    $region32: #{tpu_custom_call.1} parent=1 // pred_region
      %3883 = dma.done [#allocation6], 128
    $region33: #{tpu_custom_call.1} parent=1 // pred_fallthru
      _
    %3884 = vsyncpa [#allocation5], 1
    %3885 = vsyncpa [#allocation8], 1
    %3886 = vsyncpa [#allocation6], 1

</llo_original>
